<compile_context>
chip_gen: v7x
topology: tpu7x:2x2x1
jax: 0.10.0
libtpu: 0.0.40
codegen_flags: <defaults>
</compile_context>

<pallas_src>
import functools

import jax
import jax.numpy as jnp
from jax import lax
from jax.experimental import pallas as pl
from jax.experimental.pallas import tpu as pltpu

BN_EPS = 1e-5
MXU_DTYPE = jnp.bfloat16   # MXU operand dtype (accumulation is f32). Use jnp.float32 for exact f32.


# ----------------------------- fused block kernel ---------------------------

def _fused_block_kernel(H, W, downsample, *refs):
    """BN1+ReLU -> conv1(g=2) -> BN2+ReLU -> active-shift -> conv2(g=3) -> +shortcut.

    All activation refs are 2-D: rows = H*W pixels of one image, lanes = channels.
    """
    if downsample:
        (cat_ref, x_ref, s1_ref, b1_ref, w1_ref, s2_ref, b2_ref,
         rm_ref, r0_ref, rp_ref, cm_ref, c0_ref, cp_ref,
         w2_ref, wsc_ref, out_ref, fmap_ref) = refs
    else:
        (cat_ref, x_ref, s1_ref, b1_ref, w1_ref, s2_ref, b2_ref,
         rm_ref, r0_ref, rp_ref, cm_ref, c0_ref, cp_ref,
         w2_ref, out_ref, fmap_ref) = refs
    M = H * W

    # --- BN1 + ReLU (VPU), grouped 1x1 conv1 as a block-diagonal matmul (MXU) ---
    h1 = jnp.maximum(cat_ref[...] * s1_ref[...] + b1_ref[...], 0.0)
    fmap = jnp.dot(h1.astype(MXU_DTYPE), w1_ref[...],
                   preferred_element_type=jnp.float32)            # (M, P) f32
    fmap_ref[...] = fmap

    # --- BN2 + ReLU (VPU) ---
    h2 = jnp.maximum(fmap * s2_ref[...] + b2_ref[...], 0.0)

    # --- Active shift: separable 3-tap bilinear stencil, zero padding at borders.
    # Flattened row index r = i*W + j; spatial neighbours are sublane rotations
    # of the (M, P) slab masked at image borders.
    r = lax.broadcasted_iota(jnp.int32, (M, 1), 0)
    j = jnp.remainder(r, W)
    up = jnp.where(r >= W, pltpu.roll(h2, W, 0), 0.0)             # reads (i-1, j)
    dn = jnp.where(r < M - W, pltpu.roll(h2, M - W, 0), 0.0)      # reads (i+1, j)
    t = rm_ref[...] * up + r0_ref[...] * h2 + rp_ref[...] * dn
    lft = jnp.where(j > 0, pltpu.roll(t, 1, 0), 0.0)              # reads (i, j-1)
    rgt = jnp.where(j < W - 1, pltpu.roll(t, M - 1, 0), 0.0)      # reads (i, j+1)
    sft = cm_ref[...] * lft + c0_ref[...] * t + cp_ref[...] * rgt

    # --- Grouped 1x1 conv2 (MXU) with the shortcut fused into the epilogue ---
    out = jnp.dot(sft.astype(MXU_DTYPE), w2_ref[...],
                  preferred_element_type=jnp.float32)
    if downsample:
        out = out + jnp.dot(x_ref[...].astype(MXU_DTYPE), wsc_ref[...],
                            preferred_element_type=jnp.float32)   # 1x1 shortcut conv
    else:
        out = out + x_ref[...]                                    # identity shortcut
    out_ref[...] = out


# ------------------------------ wrapper / params -----------------------------

def _bn_fold(bn):
    scale = bn['gamma'] * lax.rsqrt(bn['var'] + BN_EPS)
    return scale, bn['beta'] - bn['mean'] * scale


def _shift_taps(a):
    """Separable 3-tap weights of a bilinear shift by `a` in (-1, 1)."""
    return (jnp.maximum(-a, 0.0).reshape(1, -1),    # tap at -1
            (1.0 - jnp.abs(a)).reshape(1, -1),      # tap at  0
            jnp.maximum(a, 0.0).reshape(1, -1))     # tap at +1


def basic_block_forward(params, x_nchw, prev_fmap_nchw, *, stride):
    """Forward of BasicBlock; inputs/outputs are NCHW to match the PyTorch module."""
    x = jnp.transpose(x_nchw, (0, 2, 3, 1)).astype(jnp.float32)         # boundary glue
    f = jnp.transpose(prev_fmap_nchw, (0, 2, 3, 1)).astype(jnp.float32)
    N, H, W, cin = x.shape
    planes = params['w2'].shape[0]
    half = cin // 2
    M = H * W

    # Channel shuffle: cat = (x0, f1, x1, f0)   (torch.chunk / torch.cat on dim=1).
    cat = jnp.concatenate([x[..., :half], f[..., half:],
                           x[..., half:], f[..., :half]], axis=-1)
    cat2 = cat.reshape(N, M, 2 * cin)
    x2 = x.reshape(N, M, cin)

    s1, b1 = _bn_fold(params['bn1'])
    s2, b2 = _bn_fold(params['bn2'])
    rm, r0, rp = _shift_taps(params['alpha'])
    cm, c0, cp = _shift_taps(params['beta'])

    downsample = (stride != 1) or (cin != planes)

    def _bcast(rows, cols):
        return pl.BlockSpec((rows, cols), lambda n: (0, 0))

    def _img(cols):
        return pl.BlockSpec((None, M, cols), lambda n: (n, 0, 0))

    inputs = [cat2, x2, s1.reshape(1, -1), b1.reshape(1, -1), params['w1'],
              s2.reshape(1, -1), b2.reshape(1, -1), rm, r0, rp, cm, c0, cp,
              params['w2']]
    in_specs = [_img(2 * cin), _img(cin),
                _bcast(1, 2 * cin), _bcast(1, 2 * cin),
                _bcast(2 * cin, planes),
                _bcast(1, planes), _bcast(1, planes),
                _bcast(1, planes), _bcast(1, planes), _bcast(1, planes),
                _bcast(1, planes), _bcast(1, planes), _bcast(1, planes),
                _bcast(planes, planes)]
    if downsample:
        inputs.append(params['w_sc'])
        in_specs.append(_bcast(cin, planes))

    out2, fmap2 = pl.pallas_call(
        functools.partial(_fused_block_kernel, H, W, downsample),
        out_shape=(jax.ShapeDtypeStruct((N, M, planes), jnp.float32),
                   jax.ShapeDtypeStruct((N, M, planes), jnp.float32)),
        grid=(N,),
        in_specs=in_specs,
        out_specs=(_img(planes), _img(planes)),
        compiler_params=pltpu.CompilerParams(dimension_semantics=("parallel",)),
    )(*inputs)

    out = out2.reshape(N, H, W, planes)
    fmap_out = fmap2.reshape(N, H, W, planes)
    if downsample:
        # TODO(synk): layout-only stride-2 subsample / 2x2 avg-pool in XLA glue.
        out = out[:, ::stride, ::stride, :]
        fmap_out = fmap_out.reshape(N, H // 2, 2, W // 2, 2, planes).mean(axis=(2, 4))
    return (jnp.transpose(out, (0, 3, 1, 2)),
            jnp.transpose(fmap_out, (0, 3, 1, 2)))


def _bn_init(c):
    return dict(gamma=jnp.ones((c,), jnp.float32), beta=jnp.zeros((c,), jnp.float32),
                mean=jnp.zeros((c,), jnp.float32), var=jnp.ones((c,), jnp.float32))


def _kaiming_conv(key, cout, cin_g, kh, kw):
    fan_in = cin_g * kh * kw
    std = (2.0 / fan_in) ** 0.5
    return (std * jax.random.normal(key, (cout, cin_g, kh, kw))).astype(jnp.float32)


def _grouped_1x1_dense(wt, groups):
    """PyTorch grouped 1x1 conv weight (Cout, Cin/g, 1, 1) -> block-diag dense (Cin, Cout)."""
    cout, cin_g = wt.shape[0], wt.shape[1]
    cin, cout_g = cin_g * groups, cout // groups
    dense = jnp.zeros((cin, cout), jnp.float32)
    for g in range(groups):
        blk = wt[g * cout_g:(g + 1) * cout_g, :, 0, 0]
        dense = dense.at[g * cin_g:(g + 1) * cin_g,
                         g * cout_g:(g + 1) * cout_g].set(blk.T)
    return dense


def init_basic_block(key, in_planes, planes, stride):
    assert planes % 3 == 0 and planes % 2 == 0, "conv1 uses groups=2, conv2 uses groups=3"
    ks = jax.random.split(key, 5)
    p = dict(
        bn1=_bn_init(2 * in_planes),
        w1=_grouped_1x1_dense(_kaiming_conv(ks[0], planes, in_planes, 1, 1), 2
                              ).astype(MXU_DTYPE),
        bn2=_bn_init(planes),
        alpha=jax.random.uniform(ks[1], (planes,), jnp.float32, -1.0, 1.0),
        beta=jax.random.uniform(ks[2], (planes,), jnp.float32, -1.0, 1.0),
        w2=_grouped_1x1_dense(_kaiming_conv(ks[3], planes, planes // 3, 1, 1), 3
                              ).astype(MXU_DTYPE),
    )
    if stride != 1 or in_planes != planes:
        p['w_sc'] = _kaiming_conv(ks[4], planes, in_planes, 1, 1)[:, :, 0, 0].T.astype(MXU_DTYPE)
    return p


# ----------------------------------- demo -----------------------------------

if __name__ == "__main__":
    key = jax.random.PRNGKey(0)
    kp1, kp2, kx, kf = jax.random.split(key, 4)
    N, in_planes, H, W = 2, 24, 16, 16

    x = jax.random.normal(kx, (N, in_planes, H, W), jnp.float32)            # NCHW
    prev_fmap = jax.random.normal(kf, (N, in_planes, H, W), jnp.float32)    # NCHW

    # stride=1, in_planes == planes: identity shortcut, fmap passthrough.
    params1 = init_basic_block(kp1, in_planes, in_planes, stride=1)
    fwd1 = jax.jit(functools.partial(basic_block_forward, stride=1))
    out1, fmap1 = fwd1(params1, x, prev_fmap)
    jax.block_until_ready((out1, fmap1))
    assert out1.shape == (N, in_planes, H, W)
    assert fmap1.shape == (N, in_planes, H, W)
    assert out1.dtype == jnp.float32

    # stride=2 with channel expansion: 1x1 conv shortcut + 2x2 avg-pooled fmap.
    planes2 = 48
    params2 = init_basic_block(kp2, in_planes, planes2, stride=2)
    fwd2 = jax.jit(functools.partial(basic_block_forward, stride=2))
    out2, fmap2 = fwd2(params2, x, prev_fmap)
    jax.block_until_ready((out2, fmap2))
    assert out2.shape == (N, planes2, H // 2, W // 2)
    assert fmap2.shape == (N, planes2, H // 2, W // 2)

    print("KERNEL_OK")
</pallas_src>

<mosaic_0001>
module attributes {stable_mosaic.version = 11 : i64} {
  func.func @_fused_block_kernel(%arg0: i32, %arg1: memref<1x256x48xf32, #tpu.memory_space<vmem>>, %arg2: memref<1x256x24xf32, #tpu.memory_space<vmem>>, %arg3: memref<1x48xf32, #tpu.memory_space<vmem>>, %arg4: memref<1x48xf32, #tpu.memory_space<vmem>>, %arg5: memref<48x24xbf16, #tpu.memory_space<vmem>>, %arg6: memref<1x24xf32, #tpu.memory_space<vmem>>, %arg7: memref<1x24xf32, #tpu.memory_space<vmem>>, %arg8: memref<1x24xf32, #tpu.memory_space<vmem>>, %arg9: memref<1x24xf32, #tpu.memory_space<vmem>>, %arg10: memref<1x24xf32, #tpu.memory_space<vmem>>, %arg11: memref<1x24xf32, #tpu.memory_space<vmem>>, %arg12: memref<1x24xf32, #tpu.memory_space<vmem>>, %arg13: memref<1x24xf32, #tpu.memory_space<vmem>>, %arg14: memref<24x24xbf16, #tpu.memory_space<vmem>>, %arg15: memref<1x256x24xf32, #tpu.memory_space<vmem>>, %arg16: memref<1x256x24xf32, #tpu.memory_space<vmem>>) attributes {dimension_semantics = [#tpu.dimension_semantics<parallel>], iteration_bounds = array<i64: 2>, scalar_prefetch = 0 : i64, scratch_operands = 0 : i64, tpu.core_type = #tpu.core_type<tc>, window_params = [{transform_indices = @transform_0, window_bounds = array<i64: 1, 256, 48>}, {transform_indices = @transform_1, window_bounds = array<i64: 1, 256, 24>}, {pipeline_mode = #tpu.pipeline_mode<synchronous>, transform_indices = @transform_2, window_bounds = array<i64: 1, 48>}, {pipeline_mode = #tpu.pipeline_mode<synchronous>, transform_indices = @transform_3, window_bounds = array<i64: 1, 48>}, {pipeline_mode = #tpu.pipeline_mode<synchronous>, transform_indices = @transform_4, window_bounds = array<i64: 48, 24>}, {pipeline_mode = #tpu.pipeline_mode<synchronous>, transform_indices = @transform_5, window_bounds = array<i64: 1, 24>}, {pipeline_mode = #tpu.pipeline_mode<synchronous>, transform_indices = @transform_6, window_bounds = array<i64: 1, 24>}, {pipeline_mode = #tpu.pipeline_mode<synchronous>, transform_indices = @transform_7, window_bounds = array<i64: 1, 24>}, {pipeline_mode = #tpu.pipeline_mode<synchronous>, transform_indices = @transform_8, window_bounds = array<i64: 1, 24>}, {pipeline_mode = #tpu.pipeline_mode<synchronous>, transform_indices = @transform_9, window_bounds = array<i64: 1, 24>}, {pipeline_mode = #tpu.pipeline_mode<synchronous>, transform_indices = @transform_10, window_bounds = array<i64: 1, 24>}, {pipeline_mode = #tpu.pipeline_mode<synchronous>, transform_indices = @transform_11, window_bounds = array<i64: 1, 24>}, {pipeline_mode = #tpu.pipeline_mode<synchronous>, transform_indices = @transform_12, window_bounds = array<i64: 1, 24>}, {pipeline_mode = #tpu.pipeline_mode<synchronous>, transform_indices = @transform_13, window_bounds = array<i64: 24, 24>}, {transform_indices = @transform_14, window_bounds = array<i64: 1, 256, 24>}, {transform_indices = @transform_15, window_bounds = array<i64: 1, 256, 24>}]} {
    %c0 = arith.constant 0 : index
    %c0_0 = arith.constant 0 : index
    %c0_1 = arith.constant 0 : index
    %0 = vector.load %arg1[%c0, %c0_0, %c0_1] : memref<1x256x48xf32, #tpu.memory_space<vmem>>, vector<1x256x48xf32>
    %1 = vector.shape_cast %0 : vector<1x256x48xf32> to vector<256x48xf32>
    %c0_2 = arith.constant 0 : index
    %c0_3 = arith.constant 0 : index
    %2 = vector.load %arg3[%c0_2, %c0_3] : memref<1x48xf32, #tpu.memory_space<vmem>>, vector<1x48xf32>
    %3 = vector.broadcast %2 : vector<1x48xf32> to vector<256x48xf32>
    %4 = arith.mulf %1, %3 : vector<256x48xf32>
    %c0_4 = arith.constant 0 : index
    %c0_5 = arith.constant 0 : index
    %5 = vector.load %arg4[%c0_4, %c0_5] : memref<1x48xf32, #tpu.memory_space<vmem>>, vector<1x48xf32>
    %6 = vector.broadcast %5 : vector<1x48xf32> to vector<256x48xf32>
    %7 = arith.addf %4, %6 : vector<256x48xf32>
    %cst = arith.constant 0.000000e+00 : f32
    %8 = vector.broadcast %cst : f32 to vector<256x48xf32>
    %9 = arith.maximumf %7, %8 : vector<256x48xf32>
    %10 = arith.truncf %9 : vector<256x48xf32> to vector<256x48xbf16>
    %c0_6 = arith.constant 0 : index
    %c0_7 = arith.constant 0 : index
    %11 = vector.load %arg5[%c0_6, %c0_7] : memref<48x24xbf16, #tpu.memory_space<vmem>>, vector<48x24xbf16>
    %cst_8 = arith.constant dense<0.000000e+00> : vector<256x24xf32>
    %12 = tpu.matmul %10, %11, %cst_8 {dimension_numbers = #tpu.dot_dimension_numbers<[1], [0], [0], [1], [0, 0, 1, 1], [], []>} : vector<256x48xbf16>, vector<48x24xbf16>, vector<256x24xf32> -> vector<256x24xf32>
    %c0_9 = arith.constant 0 : index
    %c0_10 = arith.constant 0 : index
    %c0_11 = arith.constant 0 : index
    %13 = vector.load %arg16[%c0_9, %c0_10, %c0_11] : memref<1x256x24xf32, #tpu.memory_space<vmem>>, vector<1x256x24xf32>
    %14 = vector.shape_cast %13 : vector<1x256x24xf32> to vector<256x24xf32>
    %15 = vector.shape_cast %12 : vector<256x24xf32> to vector<1x256x24xf32>
    tpu.vector_store %arg16[%c0_9, %c0_10, %c0_11], %15 {strides = array<i32>} : memref<1x256x24xf32, #tpu.memory_space<vmem>>, vector<1x256x24xf32>,
    %c0_12 = arith.constant 0 : index
    %c0_13 = arith.constant 0 : index
    %16 = vector.load %arg6[%c0_12, %c0_13] : memref<1x24xf32, #tpu.memory_space<vmem>>, vector<1x24xf32>
    %17 = vector.broadcast %16 : vector<1x24xf32> to vector<256x24xf32>
    %18 = arith.mulf %12, %17 : vector<256x24xf32>
    %c0_14 = arith.constant 0 : index
    %c0_15 = arith.constant 0 : index
    %19 = vector.load %arg7[%c0_14, %c0_15] : memref<1x24xf32, #tpu.memory_space<vmem>>, vector<1x24xf32>
    %20 = vector.broadcast %19 : vector<1x24xf32> to vector<256x24xf32>
    %21 = arith.addf %18, %20 : vector<256x24xf32>
    %cst_16 = arith.constant 0.000000e+00 : f32
    %22 = vector.broadcast %cst_16 : f32 to vector<256x24xf32>
    %23 = arith.maximumf %21, %22 : vector<256x24xf32>
    %24 = tpu.iota {dimensions = array<i32: 0>} : vector<256x1xi32>
    %c16_i32 = arith.constant 16 : i32
    %c0_i32 = arith.constant 0 : i32
    %25 = arith.cmpi eq, %c16_i32, %c0_i32 : i32
    %c1_i32 = arith.constant 1 : i32
    %26 = arith.select %25, %c1_i32, %c16_i32 : i32
    %27 = vector.broadcast %26 : i32 to vector<256x1xi32>
    %28 = arith.remsi %24, %27 : vector<256x1xi32>
    %c0_i32_17 = arith.constant 0 : i32
    %29 = vector.broadcast %c0_i32_17 : i32 to vector<256x1xi32>
    %30 = arith.cmpi ne, %28, %29 : vector<256x1xi32>
    %c0_i32_18 = arith.constant 0 : i32
    %31 = vector.broadcast %c0_i32_18 : i32 to vector<256x1xi32>
    %32 = arith.cmpi slt, %28, %31 : vector<256x1xi32>
    %c0_i32_19 = arith.constant 0 : i32
    %33 = arith.cmpi slt, %26, %c0_i32_19 : i32
    %34 = vector.broadcast %33 : i1 to vector<256x1xi1>
    %35 = vector.broadcast %34 : vector<256x1xi1> to vector<256x1xi1>
    %36 = arith.xori %32, %35 : vector<256x1xi1>
    %37 = arith.andi %36, %30 : vector<256x1xi1>
    %38 = vector.broadcast %26 : i32 to vector<256x1xi32>
    %39 = arith.addi %28, %38 : vector<256x1xi32>
    %40 = arith.select %37, %39, %28 : vector<256x1xi1>, vector<256x1xi32>
    %c16_i32_20 = arith.constant 16 : i32
    %41 = vector.broadcast %c16_i32_20 : i32 to vector<256x1xi32>
    %42 = arith.cmpi sge, %24, %41 : vector<256x1xi32>
    %c16_i32_21 = arith.constant 16 : i32
    %43 = tpu.dynamic_rotate %23 by %c16_i32_21 dim 0 : vector<256x24xf32>, i32 -> vector<256x24xf32>
    %cst_22 = arith.constant 0.000000e+00 : f32
    %44 = vector.shape_cast %42 : vector<256x1xi1> to vector<256x1xi1>
    %45 = vector.broadcast %44 : vector<256x1xi1> to vector<256x24xi1>
    %46 = vector.broadcast %cst_22 : f32 to vector<256x24xf32>
    %47 = arith.select %45, %43, %46 : vector<256x24xi1>, vector<256x24xf32>
    %c240_i32 = arith.constant 240 : i32
    %48 = vector.broadcast %c240_i32 : i32 to vector<256x1xi32>
    %49 = arith.cmpi slt, %24, %48 : vector<256x1xi32>
    %c240_i32_23 = arith.constant 240 : i32
    %50 = tpu.dynamic_rotate %23 by %c240_i32_23 dim 0 : vector<256x24xf32>, i32 -> vector<256x24xf32>
    %cst_24 = arith.constant 0.000000e+00 : f32
    %51 = vector.shape_cast %49 : vector<256x1xi1> to vector<256x1xi1>
    %52 = vector.broadcast %51 : vector<256x1xi1> to vector<256x24xi1>
    %53 = vector.broadcast %cst_24 : f32 to vector<256x24xf32>
    %54 = arith.select %52, %50, %53 : vector<256x24xi1>, vector<256x24xf32>
    %c0_25 = arith.constant 0 : index
    %c0_26 = arith.constant 0 : index
    %55 = vector.load %arg8[%c0_25, %c0_26] : memref<1x24xf32, #tpu.memory_space<vmem>>, vector<1x24xf32>
    %56 = vector.broadcast %55 : vector<1x24xf32> to vector<256x24xf32>
    %57 = arith.mulf %56, %47 : vector<256x24xf32>
    %c0_27 = arith.constant 0 : index
    %c0_28 = arith.constant 0 : index
    %58 = vector.load %arg9[%c0_27, %c0_28] : memref<1x24xf32, #tpu.memory_space<vmem>>, vector<1x24xf32>
    %59 = vector.broadcast %58 : vector<1x24xf32> to vector<256x24xf32>
    %60 = arith.mulf %59, %23 : vector<256x24xf32>
    %61 = arith.addf %57, %60 : vector<256x24xf32>
    %c0_29 = arith.constant 0 : index
    %c0_30 = arith.constant 0 : index
    %62 = vector.load %arg10[%c0_29, %c0_30] : memref<1x24xf32, #tpu.memory_space<vmem>>, vector<1x24xf32>
    %63 = vector.broadcast %62 : vector<1x24xf32> to vector<256x24xf32>
    %64 = arith.mulf %63, %54 : vector<256x24xf32>
    %65 = arith.addf %61, %64 : vector<256x24xf32>
    %c0_i32_31 = arith.constant 0 : i32
    %66 = vector.broadcast %c0_i32_31 : i32 to vector<256x1xi32>
    %67 = arith.cmpi sgt, %40, %66 : vector<256x1xi32>
    %c1_i32_32 = arith.constant 1 : i32
    %68 = tpu.dynamic_rotate %65 by %c1_i32_32 dim 0 : vector<256x24xf32>, i32 -> vector<256x24xf32>
    %cst_33 = arith.constant 0.000000e+00 : f32
    %69 = vector.shape_cast %67 : vector<256x1xi1> to vector<256x1xi1>
    %70 = vector.broadcast %69 : vector<256x1xi1> to vector<256x24xi1>
    %71 = vector.broadcast %cst_33 : f32 to vector<256x24xf32>
    %72 = arith.select %70, %68, %71 : vector<256x24xi1>, vector<256x24xf32>
    %c15_i32 = arith.constant 15 : i32
    %73 = vector.broadcast %c15_i32 : i32 to vector<256x1xi32>
    %74 = arith.cmpi slt, %40, %73 : vector<256x1xi32>
    %c255_i32 = arith.constant 255 : i32
    %75 = tpu.dynamic_rotate %65 by %c255_i32 dim 0 : vector<256x24xf32>, i32 -> vector<256x24xf32>
    %cst_34 = arith.constant 0.000000e+00 : f32
    %76 = vector.shape_cast %74 : vector<256x1xi1> to vector<256x1xi1>
    %77 = vector.broadcast %76 : vector<256x1xi1> to vector<256x24xi1>
    %78 = vector.broadcast %cst_34 : f32 to vector<256x24xf32>
    %79 = arith.select %77, %75, %78 : vector<256x24xi1>, vector<256x24xf32>
    %c0_35 = arith.constant 0 : index
    %c0_36 = arith.constant 0 : index
    %80 = vector.load %arg11[%c0_35, %c0_36] : memref<1x24xf32, #tpu.memory_space<vmem>>, vector<1x24xf32>
    %81 = vector.broadcast %80 : vector<1x24xf32> to vector<256x24xf32>
    %82 = arith.mulf %81, %72 : vector<256x24xf32>
    %c0_37 = arith.constant 0 : index
    %c0_38 = arith.constant 0 : index
    %83 = vector.load %arg12[%c0_37, %c0_38] : memref<1x24xf32, #tpu.memory_space<vmem>>, vector<1x24xf32>
    %84 = vector.broadcast %83 : vector<1x24xf32> to vector<256x24xf32>
    %85 = arith.mulf %84, %65 : vector<256x24xf32>
    %86 = arith.addf %82, %85 : vector<256x24xf32>
    %c0_39 = arith.constant 0 : index
    %c0_40 = arith.constant 0 : index
    %87 = vector.load %arg13[%c0_39, %c0_40] : memref<1x24xf32, #tpu.memory_space<vmem>>, vector<1x24xf32>
    %88 = vector.broadcast %87 : vector<1x24xf32> to vector<256x24xf32>
    %89 = arith.mulf %88, %79 : vector<256x24xf32>
    %90 = arith.addf %86, %89 : vector<256x24xf32>
    %91 = arith.truncf %90 : vector<256x24xf32> to vector<256x24xbf16>
    %c0_41 = arith.constant 0 : index
    %c0_42 = arith.constant 0 : index
    %92 = vector.load %arg14[%c0_41, %c0_42] : memref<24x24xbf16, #tpu.memory_space<vmem>>, vector<24x24xbf16>
    %cst_43 = arith.constant dense<0.000000e+00> : vector<256x24xf32>
    %93 = tpu.matmul %91, %92, %cst_43 {dimension_numbers = #tpu.dot_dimension_numbers<[1], [0], [0], [1], [0, 0, 1, 1], [], []>} : vector<256x24xbf16>, vector<24x24xbf16>, vector<256x24xf32> -> vector<256x24xf32>
    %c0_44 = arith.constant 0 : index
    %c0_45 = arith.constant 0 : index
    %c0_46 = arith.constant 0 : index
    %94 = vector.load %arg2[%c0_44, %c0_45, %c0_46] : memref<1x256x24xf32, #tpu.memory_space<vmem>>, vector<1x256x24xf32>
    %95 = vector.shape_cast %94 : vector<1x256x24xf32> to vector<256x24xf32>
    %96 = arith.addf %93, %95 : vector<256x24xf32>
    %c0_47 = arith.constant 0 : index
    %c0_48 = arith.constant 0 : index
    %c0_49 = arith.constant 0 : index
    %97 = vector.load %arg15[%c0_47, %c0_48, %c0_49] : memref<1x256x24xf32, #tpu.memory_space<vmem>>, vector<1x256x24xf32>
    %98 = vector.shape_cast %97 : vector<1x256x24xf32> to vector<256x24xf32>
    %99 = vector.shape_cast %96 : vector<256x24xf32> to vector<1x256x24xf32>
    tpu.vector_store %arg15[%c0_47, %c0_48, %c0_49], %99 {strides = array<i32>} : memref<1x256x24xf32, #tpu.memory_space<vmem>>, vector<1x256x24xf32>,
    return
  }
  func.func @transform_0(%arg0: i32) -> (i32, i32, i32) {
    %c0_i32 = arith.constant 0 : i32
    %c0_i32_0 = arith.constant 0 : i32
    %c0_i32_1 = arith.constant 0 : i32
    return %arg0, %c0_i32, %c0_i32_0 : i32, i32, i32
  }
  func.func @transform_1(%arg0: i32) -> (i32, i32, i32) {
    %c0_i32 = arith.constant 0 : i32
    %c0_i32_0 = arith.constant 0 : i32
    %c0_i32_1 = arith.constant 0 : i32
    return %arg0, %c0_i32, %c0_i32_0 : i32, i32, i32
  }
  func.func @transform_2(%arg0: i32) -> (i32, i32) {
    %c0_i32 = arith.constant 0 : i32
    %c0_i32_0 = arith.constant 0 : i32
    %c0_i32_1 = arith.constant 0 : i32
    return %c0_i32, %c0_i32_0 : i32, i32
  }
  func.func @transform_3(%arg0: i32) -> (i32, i32) {
    %c0_i32 = arith.constant 0 : i32
    %c0_i32_0 = arith.constant 0 : i32
    %c0_i32_1 = arith.constant 0 : i32
    return %c0_i32, %c0_i32_0 : i32, i32
  }
  func.func @transform_4(%arg0: i32) -> (i32, i32) {
    %c0_i32 = arith.constant 0 : i32
    %c0_i32_0 = arith.constant 0 : i32
    %c0_i32_1 = arith.constant 0 : i32
    return %c0_i32, %c0_i32_0 : i32, i32
  }
  func.func @transform_5(%arg0: i32) -> (i32, i32) {
    %c0_i32 = arith.constant 0 : i32
    %c0_i32_0 = arith.constant 0 : i32
    %c0_i32_1 = arith.constant 0 : i32
    return %c0_i32, %c0_i32_0 : i32, i32
  }
  func.func @transform_6(%arg0: i32) -> (i32, i32) {
    %c0_i32 = arith.constant 0 : i32
    %c0_i32_0 = arith.constant 0 : i32
    %c0_i32_1 = arith.constant 0 : i32
    return %c0_i32, %c0_i32_0 : i32, i32
  }
  func.func @transform_7(%arg0: i32) -> (i32, i32) {
    %c0_i32 = arith.constant 0 : i32
    %c0_i32_0 = arith.constant 0 : i32
    %c0_i32_1 = arith.constant 0 : i32
    return %c0_i32, %c0_i32_0 : i32, i32
  }
  func.func @transform_8(%arg0: i32) -> (i32, i32) {
    %c0_i32 = arith.constant 0 : i32
    %c0_i32_0 = arith.constant 0 : i32
    %c0_i32_1 = arith.constant 0 : i32
    return %c0_i32, %c0_i32_0 : i32, i32
  }
  func.func @transform_9(%arg0: i32) -> (i32, i32) {
    %c0_i32 = arith.constant 0 : i32
    %c0_i32_0 = arith.constant 0 : i32
    %c0_i32_1 = arith.constant 0 : i32
    return %c0_i32, %c0_i32_0 : i32, i32
  }
  func.func @transform_10(%arg0: i32) -> (i32, i32) {
    %c0_i32 = arith.constant 0 : i32
    %c0_i32_0 = arith.constant 0 : i32
    %c0_i32_1 = arith.constant 0 : i32
    return %c0_i32, %c0_i32_0 : i32, i32
  }
  func.func @transform_11(%arg0: i32) -> (i32, i32) {
    %c0_i32 = arith.constant 0 : i32
    %c0_i32_0 = arith.constant 0 : i32
    %c0_i32_1 = arith.constant 0 : i32
    return %c0_i32, %c0_i32_0 : i32, i32
  }
  func.func @transform_12(%arg0: i32) -> (i32, i32) {
    %c0_i32 = arith.constant 0 : i32
    %c0_i32_0 = arith.constant 0 : i32
    %c0_i32_1 = arith.constant 0 : i32
    return %c0_i32, %c0_i32_0 : i32, i32
  }
  func.func @transform_13(%arg0: i32) -> (i32, i32) {
    %c0_i32 = arith.constant 0 : i32
    %c0_i32_0 = arith.constant 0 : i32
    %c0_i32_1 = arith.constant 0 : i32
    return %c0_i32, %c0_i32_0 : i32, i32
  }
  func.func @transform_14(%arg0: i32) -> (i32, i32, i32) {
    %c0_i32 = arith.constant 0 : i32
    %c0_i32_0 = arith.constant 0 : i32
    %c0_i32_1 = arith.constant 0 : i32
    return %arg0, %c0_i32, %c0_i32_0 : i32, i32, i32
  }
  func.func @transform_15(%arg0: i32) -> (i32, i32, i32) {
    %c0_i32 = arith.constant 0 : i32
    %c0_i32_0 = arith.constant 0 : i32
    %c0_i32_1 = arith.constant 0 : i32
    return %arg0, %c0_i32, %c0_i32_0 : i32, i32, i32
  }
}

</mosaic_0001>

<llo_original>
// kernel: basic_block_forward.1
$region0: #{basic_block_forward.1}
  #allocation0 [shape = 'u32[]', space=smem, size = 0x4, offset = 0x4, fixed_abs, tag = 'smem constant byte address 0x4 - core index']
  #allocation1 [shape = 'u32[144,128]{1,0:T(1,128)}', space=vmem, size = 0x12000, scoped, tag = 'internal scratch']
  %s0 = inlined_call_operand.vmem [shape: f32[2,256,48], index: 0, kind: input, shape index: {}]
  %s1 = inlined_call_operand.vmem [shape: f32[2,256,24], index: 1, kind: input, shape index: {}]
  %s2 = inlined_call_operand.vmem [shape: f32[1,48], index: 2, kind: input, shape index: {}]
  %s3 = inlined_call_operand.vmem [shape: f32[1,48], index: 3, kind: input, shape index: {}]
  %s4 = inlined_call_operand.vmem [shape: bf16[48,24], index: 4, kind: input, shape index: {}]
  %s5 = inlined_call_operand.vmem [shape: f32[1,24], index: 5, kind: input, shape index: {}]
  %s6 = inlined_call_operand.vmem [shape: f32[1,24], index: 6, kind: input, shape index: {}]
  %s7 = inlined_call_operand.vmem [shape: f32[1,24], index: 7, kind: input, shape index: {}]
  %s8 = inlined_call_operand.vmem [shape: f32[1,24], index: 8, kind: input, shape index: {}]
  %s9 = inlined_call_operand.vmem [shape: f32[1,24], index: 9, kind: input, shape index: {}]
  %s10 = inlined_call_operand.vmem [shape: f32[1,24], index: 10, kind: input, shape index: {}]
  %s11 = inlined_call_operand.vmem [shape: f32[1,24], index: 11, kind: input, shape index: {}]
  %s12 = inlined_call_operand.vmem [shape: f32[1,24], index: 12, kind: input, shape index: {}]
  %s13 = inlined_call_operand.vmem [shape: bf16[24,24], index: 13, kind: input, shape index: {}]
  %s14 = inlined_call_operand.hbm [shape: f32[2,256,24], index: 14, kind: output, shape index: {0}]
  %s15 = inlined_call_operand.hbm [shape: f32[2,256,24], index: 15, kind: output, shape index: {1}]
  %16 = xla_tuple %s14, %s15
  %s17 = sld [smem:[#allocation0]]
  $region97: #{basic_block_forward.1} parent=0
    _
  %s19 = ssub.s32 1, %s17
  %s20 = scalar_select 0, %s19, %s17
  $region1: #{basic_block_forward.1} parent=0
    #allocation2 [shape = 'u8[262144]{0}', space=vmem, size = 0x40000, scoped, tag = 'output window, operand 0']
    #allocation3 [shape = 's32[2]{0}', space=sflag, size = 0x8, scoped, tag = 'scoped memory for basic_block_forward.1']
    #allocation4 [shape = 'u8[262144]{0}', space=vmem, size = 0x40000, scoped, tag = 'output window, operand 1']
    #allocation5 [shape = 's32[2]{0}', space=sflag, size = 0x8, scoped, tag = 'scoped memory for basic_block_forward.1']
    %21 = vsyncpa [#allocation3], 0
    %s22 = scalar_lea.sflag [#allocation3], 1
    %23 = vsyncpa %s22, 0
    %24 = vsyncpa [#allocation5], 0
    %s25 = scalar_lea.sflag [#allocation5], 1
    %26 = vsyncpa %s25, 0
    loop: start=0, step=1, limit=4
    $region2: #{basic_block_forward.1} parent=1 // loop_pre_header
      _
    $region3: #{basic_block_forward.1} parent=1 // loop_header
      %s28 = sphi 0, %s32
      %p29 = scmp.ge.s32.totalorder %s28, 4
      %s38 = sphi 0, %s40
      %s41 = sphi 0, %s38
      %s42 = sphi 0, %s41
      %s58 = sphi 0, %s42
      %s64 = sphi 0, %s66
      %s67 = sphi 0, %s64
      %s68 = sphi 0, %s67
      %s84 = sphi 0, %s68
      %s88 = sphi 0, %s88
      %s90 = sphi 0, %s88
      %s91 = sphi 0, %s90
      %s105 = sphi 0, %s91
      %s109 = sphi 0, %s109
      %s111 = sphi 0, %s109
      %s112 = sphi 0, %s111
      %s126 = sphi 0, %s112
      %s130 = sphi 0, %s130
      %s132 = sphi 0, %s130
      %s133 = sphi 0, %s132
      %s147 = sphi 0, %s133
      %s151 = sphi 0, %s151
      %s153 = sphi 0, %s151
      %s154 = sphi 0, %s153
      %s168 = sphi 0, %s154
      %s172 = sphi 0, %s172
      %s174 = sphi 0, %s172
      %s175 = sphi 0, %s174
      %s189 = sphi 0, %s175
      %s193 = sphi 0, %s193
      %s195 = sphi 0, %s193
      %s196 = sphi 0, %s195
      %s210 = sphi 0, %s196
      %s214 = sphi 0, %s214
      %s216 = sphi 0, %s214
      %s217 = sphi 0, %s216
      %s231 = sphi 0, %s217
      %s235 = sphi 0, %s235
      %s237 = sphi 0, %s235
      %s238 = sphi 0, %s237
      %s252 = sphi 0, %s238
      %s256 = sphi 0, %s256
      %s258 = sphi 0, %s256
      %s259 = sphi 0, %s258
      %s273 = sphi 0, %s259
      %s277 = sphi 0, %s277
      %s279 = sphi 0, %s277
      %s280 = sphi 0, %s279
      %s294 = sphi 0, %s280
      %s298 = sphi 0, %s298
      %s300 = sphi 0, %s298
      %s301 = sphi 0, %s300
      %s315 = sphi 0, %s301
      %s319 = sphi 0, %s319
      %s321 = sphi 0, %s319
      %s322 = sphi 0, %s321
      %s336 = sphi 0, %s322
      %s342 = sphi 0, %s344
      %s345 = sphi 0, %s342
      %s346 = sphi 0, %s345
      %s362 = sphi 0, %s346
      %s368 = sphi 0, %s370
      %s371 = sphi 0, %s368
      %s372 = sphi 0, %s371
      %s388 = sphi 0, %s372
    $region4: #{basic_block_forward.1} parent=1 // loop_header_branch
      %31 = sbr.rel (%p29) target = $region8
    $region5: #{basic_block_forward.1} parent=1 // loop_body
      %s33 = ssub.s32 %s28, 1
      %s34 = ssub.s32 %s28, 2
      %s35 = sadd.s32 %s28, 1
      %s36 = ssub.s32 %s28, %s35
      %p37 = scmp.eq.s32.totalorder %s36, 0
      %s39 = sadd.s32 %s38, 1
      %s40 = scalar_select %p37, %s38, %s39
      %p43 = pneg %p37
      %p44 = scmp.eq.s32.totalorder %s28, 1
      %p45 = por %p43, %p44
      %p46 = scmp.ne.s32.totalorder %s38, %s41
      %p47 = scmp.eq.s32.totalorder %s28, 0
      %p48 = por %p46, %p47
      %p49 = scmp.ne.s32.totalorder %s38, %s41
      %p50 = scmp.eq.s32.totalorder %s33, 1
      %p51 = por %p49, %p50
      %p52 = scmp.ne.s32.totalorder %s41, %s42
      %p53 = scmp.eq.s32.totalorder %s33, 0
      %p54 = por %p52, %p53
      %p55 = scmp.ne.s32.totalorder %s41, %s42
      %p56 = scmp.eq.s32.totalorder %s34, 1
      %p57 = por %p55, %p56
      %p59 = scmp.ne.s32.totalorder %s42, %s58
      %p60 = scmp.eq.s32.totalorder %s34, 0
      %p61 = por %p59, %p60
      %s62 = ssub.s32 %s28, %s35
      %p63 = scmp.eq.s32.totalorder %s62, 0
      %s65 = sadd.s32 %s64, 1
      %s66 = scalar_select %p63, %s64, %s65
      %p69 = pneg %p63
      %p70 = scmp.eq.s32.totalorder %s28, 1
      %p71 = por %p69, %p70
      %p72 = scmp.ne.s32.totalorder %s64, %s67
      %p73 = scmp.eq.s32.totalorder %s28, 0
      %p74 = por %p72, %p73
      %p75 = scmp.ne.s32.totalorder %s64, %s67
      %p76 = scmp.eq.s32.totalorder %s33, 1
      %p77 = por %p75, %p76
      %p78 = scmp.ne.s32.totalorder %s67, %s68
      %p79 = scmp.eq.s32.totalorder %s33, 0
      %p80 = por %p78, %p79
      %p81 = scmp.ne.s32.totalorder %s67, %s68
      %p82 = scmp.eq.s32.totalorder %s34, 1
      %p83 = por %p81, %p82
      %p85 = scmp.ne.s32.totalorder %s68, %s84
      %p86 = scmp.eq.s32.totalorder %s34, 0
      %p87 = por %p85, %p86
      %s89 = sadd.s32 %s88, 1
      %p92 = scmp.eq.s32.totalorder %s28, 1
      %p93 = scmp.ne.s32.totalorder %s88, %s90
      %p94 = scmp.eq.s32.totalorder %s28, 0
      %p95 = por %p93, %p94
      %p96 = scmp.ne.s32.totalorder %s88, %s90
      %p97 = scmp.eq.s32.totalorder %s33, 1
      %p98 = por %p96, %p97
      %p99 = scmp.ne.s32.totalorder %s90, %s91
      %p100 = scmp.eq.s32.totalorder %s33, 0
      %p101 = por %p99, %p100
      %p102 = scmp.ne.s32.totalorder %s90, %s91
      %p103 = scmp.eq.s32.totalorder %s34, 1
      %p104 = por %p102, %p103
      %p106 = scmp.ne.s32.totalorder %s91, %s105
      %p107 = scmp.eq.s32.totalorder %s34, 0
      %p108 = por %p106, %p107
      %s110 = sadd.s32 %s109, 1
      %p113 = scmp.eq.s32.totalorder %s28, 1
      %p114 = scmp.ne.s32.totalorder %s109, %s111
      %p115 = scmp.eq.s32.totalorder %s28, 0
      %p116 = por %p114, %p115
      %p117 = scmp.ne.s32.totalorder %s109, %s111
      %p118 = scmp.eq.s32.totalorder %s33, 1
      %p119 = por %p117, %p118
      %p120 = scmp.ne.s32.totalorder %s111, %s112
      %p121 = scmp.eq.s32.totalorder %s33, 0
      %p122 = por %p120, %p121
      %p123 = scmp.ne.s32.totalorder %s111, %s112
      %p124 = scmp.eq.s32.totalorder %s34, 1
      %p125 = por %p123, %p124
      %p127 = scmp.ne.s32.totalorder %s112, %s126
      %p128 = scmp.eq.s32.totalorder %s34, 0
      %p129 = por %p127, %p128
      %s131 = sadd.s32 %s130, 1
      %p134 = scmp.eq.s32.totalorder %s28, 1
      %p135 = scmp.ne.s32.totalorder %s130, %s132
      %p136 = scmp.eq.s32.totalorder %s28, 0
      %p137 = por %p135, %p136
      %p138 = scmp.ne.s32.totalorder %s130, %s132
      %p139 = scmp.eq.s32.totalorder %s33, 1
      %p140 = por %p138, %p139
      %p141 = scmp.ne.s32.totalorder %s132, %s133
      %p142 = scmp.eq.s32.totalorder %s33, 0
      %p143 = por %p141, %p142
      %p144 = scmp.ne.s32.totalorder %s132, %s133
      %p145 = scmp.eq.s32.totalorder %s34, 1
      %p146 = por %p144, %p145
      %p148 = scmp.ne.s32.totalorder %s133, %s147
      %p149 = scmp.eq.s32.totalorder %s34, 0
      %p150 = por %p148, %p149
      %s152 = sadd.s32 %s151, 1
      %p155 = scmp.eq.s32.totalorder %s28, 1
      %p156 = scmp.ne.s32.totalorder %s151, %s153
      %p157 = scmp.eq.s32.totalorder %s28, 0
      %p158 = por %p156, %p157
      %p159 = scmp.ne.s32.totalorder %s151, %s153
      %p160 = scmp.eq.s32.totalorder %s33, 1
      %p161 = por %p159, %p160
      %p162 = scmp.ne.s32.totalorder %s153, %s154
      %p163 = scmp.eq.s32.totalorder %s33, 0
      %p164 = por %p162, %p163
      %p165 = scmp.ne.s32.totalorder %s153, %s154
      %p166 = scmp.eq.s32.totalorder %s34, 1
      %p167 = por %p165, %p166
      %p169 = scmp.ne.s32.totalorder %s154, %s168
      %p170 = scmp.eq.s32.totalorder %s34, 0
      %p171 = por %p169, %p170
      %s173 = sadd.s32 %s172, 1
      %p176 = scmp.eq.s32.totalorder %s28, 1
      %p177 = scmp.ne.s32.totalorder %s172, %s174
      %p178 = scmp.eq.s32.totalorder %s28, 0
      %p179 = por %p177, %p178
      %p180 = scmp.ne.s32.totalorder %s172, %s174
      %p181 = scmp.eq.s32.totalorder %s33, 1
      %p182 = por %p180, %p181
      %p183 = scmp.ne.s32.totalorder %s174, %s175
      %p184 = scmp.eq.s32.totalorder %s33, 0
      %p185 = por %p183, %p184
      %p186 = scmp.ne.s32.totalorder %s174, %s175
      %p187 = scmp.eq.s32.totalorder %s34, 1
      %p188 = por %p186, %p187
      %p190 = scmp.ne.s32.totalorder %s175, %s189
      %p191 = scmp.eq.s32.totalorder %s34, 0
      %p192 = por %p190, %p191
      %s194 = sadd.s32 %s193, 1
      %p197 = scmp.eq.s32.totalorder %s28, 1
      %p198 = scmp.ne.s32.totalorder %s193, %s195
      %p199 = scmp.eq.s32.totalorder %s28, 0
      %p200 = por %p198, %p199
      %p201 = scmp.ne.s32.totalorder %s193, %s195
      %p202 = scmp.eq.s32.totalorder %s33, 1
      %p203 = por %p201, %p202
      %p204 = scmp.ne.s32.totalorder %s195, %s196
      %p205 = scmp.eq.s32.totalorder %s33, 0
      %p206 = por %p204, %p205
      %p207 = scmp.ne.s32.totalorder %s195, %s196
      %p208 = scmp.eq.s32.totalorder %s34, 1
      %p209 = por %p207, %p208
      %p211 = scmp.ne.s32.totalorder %s196, %s210
      %p212 = scmp.eq.s32.totalorder %s34, 0
      %p213 = por %p211, %p212
      %s215 = sadd.s32 %s214, 1
      %p218 = scmp.eq.s32.totalorder %s28, 1
      %p219 = scmp.ne.s32.totalorder %s214, %s216
      %p220 = scmp.eq.s32.totalorder %s28, 0
      %p221 = por %p219, %p220
      %p222 = scmp.ne.s32.totalorder %s214, %s216
      %p223 = scmp.eq.s32.totalorder %s33, 1
      %p224 = por %p222, %p223
      %p225 = scmp.ne.s32.totalorder %s216, %s217
      %p226 = scmp.eq.s32.totalorder %s33, 0
      %p227 = por %p225, %p226
      %p228 = scmp.ne.s32.totalorder %s216, %s217
      %p229 = scmp.eq.s32.totalorder %s34, 1
      %p230 = por %p228, %p229
      %p232 = scmp.ne.s32.totalorder %s217, %s231
      %p233 = scmp.eq.s32.totalorder %s34, 0
      %p234 = por %p232, %p233
      %s236 = sadd.s32 %s235, 1
      %p239 = scmp.eq.s32.totalorder %s28, 1
      %p240 = scmp.ne.s32.totalorder %s235, %s237
      %p241 = scmp.eq.s32.totalorder %s28, 0
      %p242 = por %p240, %p241
      %p243 = scmp.ne.s32.totalorder %s235, %s237
      %p244 = scmp.eq.s32.totalorder %s33, 1
      %p245 = por %p243, %p244
      %p246 = scmp.ne.s32.totalorder %s237, %s238
      %p247 = scmp.eq.s32.totalorder %s33, 0
      %p248 = por %p246, %p247
      %p249 = scmp.ne.s32.totalorder %s237, %s238
      %p250 = scmp.eq.s32.totalorder %s34, 1
      %p251 = por %p249, %p250
      %p253 = scmp.ne.s32.totalorder %s238, %s252
      %p254 = scmp.eq.s32.totalorder %s34, 0
      %p255 = por %p253, %p254
      %s257 = sadd.s32 %s256, 1
      %p260 = scmp.eq.s32.totalorder %s28, 1
      %p261 = scmp.ne.s32.totalorder %s256, %s258
      %p262 = scmp.eq.s32.totalorder %s28, 0
      %p263 = por %p261, %p262
      %p264 = scmp.ne.s32.totalorder %s256, %s258
      %p265 = scmp.eq.s32.totalorder %s33, 1
      %p266 = por %p264, %p265
      %p267 = scmp.ne.s32.totalorder %s258, %s259
      %p268 = scmp.eq.s32.totalorder %s33, 0
      %p269 = por %p267, %p268
      %p270 = scmp.ne.s32.totalorder %s258, %s259
      %p271 = scmp.eq.s32.totalorder %s34, 1
      %p272 = por %p270, %p271
      %p274 = scmp.ne.s32.totalorder %s259, %s273
      %p275 = scmp.eq.s32.totalorder %s34, 0
      %p276 = por %p274, %p275
      %s278 = sadd.s32 %s277, 1
      %p281 = scmp.eq.s32.totalorder %s28, 1
      %p282 = scmp.ne.s32.totalorder %s277, %s279
      %p283 = scmp.eq.s32.totalorder %s28, 0
      %p284 = por %p282, %p283
      %p285 = scmp.ne.s32.totalorder %s277, %s279
      %p286 = scmp.eq.s32.totalorder %s33, 1
      %p287 = por %p285, %p286
      %p288 = scmp.ne.s32.totalorder %s279, %s280
      %p289 = scmp.eq.s32.totalorder %s33, 0
      %p290 = por %p288, %p289
      %p291 = scmp.ne.s32.totalorder %s279, %s280
      %p292 = scmp.eq.s32.totalorder %s34, 1
      %p293 = por %p291, %p292
      %p295 = scmp.ne.s32.totalorder %s280, %s294
      %p296 = scmp.eq.s32.totalorder %s34, 0
      %p297 = por %p295, %p296
      %s299 = sadd.s32 %s298, 1
      %p302 = scmp.eq.s32.totalorder %s28, 1
      %p303 = scmp.ne.s32.totalorder %s298, %s300
      %p304 = scmp.eq.s32.totalorder %s28, 0
      %p305 = por %p303, %p304
      %p306 = scmp.ne.s32.totalorder %s298, %s300
      %p307 = scmp.eq.s32.totalorder %s33, 1
      %p308 = por %p306, %p307
      %p309 = scmp.ne.s32.totalorder %s300, %s301
      %p310 = scmp.eq.s32.totalorder %s33, 0
      %p311 = por %p309, %p310
      %p312 = scmp.ne.s32.totalorder %s300, %s301
      %p313 = scmp.eq.s32.totalorder %s34, 1
      %p314 = por %p312, %p313
      %p316 = scmp.ne.s32.totalorder %s301, %s315
      %p317 = scmp.eq.s32.totalorder %s34, 0
      %p318 = por %p316, %p317
      %s320 = sadd.s32 %s319, 1
      %p323 = scmp.eq.s32.totalorder %s28, 1
      %p324 = scmp.ne.s32.totalorder %s319, %s321
      %p325 = scmp.eq.s32.totalorder %s28, 0
      %p326 = por %p324, %p325
      %p327 = scmp.ne.s32.totalorder %s319, %s321
      %p328 = scmp.eq.s32.totalorder %s33, 1
      %p329 = por %p327, %p328
      %p330 = scmp.ne.s32.totalorder %s321, %s322
      %p331 = scmp.eq.s32.totalorder %s33, 0
      %p332 = por %p330, %p331
      %p333 = scmp.ne.s32.totalorder %s321, %s322
      %p334 = scmp.eq.s32.totalorder %s34, 1
      %p335 = por %p333, %p334
      %p337 = scmp.ne.s32.totalorder %s322, %s336
      %p338 = scmp.eq.s32.totalorder %s34, 0
      %p339 = por %p337, %p338
      %s340 = ssub.s32 %s28, %s35
      %p341 = scmp.eq.s32.totalorder %s340, 0
      %s343 = sadd.s32 %s342, 1
      %s344 = scalar_select %p341, %s342, %s343
      %p347 = pneg %p341
      %p348 = scmp.eq.s32.totalorder %s28, 1
      %p349 = por %p347, %p348
      %p350 = scmp.ne.s32.totalorder %s342, %s345
      %p351 = scmp.eq.s32.totalorder %s28, 0
      %p352 = por %p350, %p351
      %p353 = scmp.ne.s32.totalorder %s342, %s345
      %p354 = scmp.eq.s32.totalorder %s33, 1
      %p355 = por %p353, %p354
      %p356 = scmp.ne.s32.totalorder %s345, %s346
      %p357 = scmp.eq.s32.totalorder %s33, 0
      %p358 = por %p356, %p357
      %p359 = scmp.ne.s32.totalorder %s345, %s346
      %p360 = scmp.eq.s32.totalorder %s34, 1
      %p361 = por %p359, %p360
      %p363 = scmp.ne.s32.totalorder %s346, %s362
      %p364 = scmp.eq.s32.totalorder %s34, 0
      %p365 = por %p363, %p364
      %s366 = ssub.s32 %s28, %s35
      %p367 = scmp.eq.s32.totalorder %s366, 0
      %s369 = sadd.s32 %s368, 1
      %s370 = scalar_select %p367, %s368, %s369
      %p373 = pneg %p367
      %p374 = scmp.eq.s32.totalorder %s28, 1
      %p375 = por %p373, %p374
      %p376 = scmp.ne.s32.totalorder %s368, %s371
      %p377 = scmp.eq.s32.totalorder %s28, 0
      %p378 = por %p376, %p377
      %p379 = scmp.ne.s32.totalorder %s368, %s371
      %p380 = scmp.eq.s32.totalorder %s33, 1
      %p381 = por %p379, %p380
      %p382 = scmp.ne.s32.totalorder %s371, %s372
      %p383 = scmp.eq.s32.totalorder %s33, 0
      %p384 = por %p382, %p383
      %p385 = scmp.ne.s32.totalorder %s371, %s372
      %p386 = scmp.eq.s32.totalorder %s34, 1
      %p387 = por %p385, %p386
      %p389 = scmp.ne.s32.totalorder %s372, %s388
      %p390 = scmp.eq.s32.totalorder %s34, 0
      %p391 = por %p389, %p390
      %p392 = scmp.le.s32.totalorder 1, %s28
      %p393 = scmp.lt.s32.totalorder %s28, 3
      %p394 = pnand %p392, %p393
      %p395 = pneg %p394
      // Predicated region
      $region9: #{basic_block_forward.1} parent=5 // pred_check
        _
      $region10: #{basic_block_forward.1} parent=5 // pred_check_branch
        %397 = sbr.rel (%p394) target = $region12
      $region11: #{basic_block_forward.1} parent=5 // pred_region
        %s398 = ssub.s32 %s28, 1
        // Predicated region
        $region13: #{basic_block_forward.1} parent=11 // pred_check
          %p399 = pneg %p101
        $region14: #{basic_block_forward.1} parent=11 // pred_check_branch
          %401 = sbr.rel (%p399) target = $region16
        $region15: #{basic_block_forward.1} parent=11 // pred_region
          _
        $region16: #{basic_block_forward.1} parent=11 // pred_fallthru
          _
        // Predicated region
        $region17: #{basic_block_forward.1} parent=11 // pred_check
          %p402 = pneg %p122
        $region18: #{basic_block_forward.1} parent=11 // pred_check_branch
          %404 = sbr.rel (%p402) target = $region20
        $region19: #{basic_block_forward.1} parent=11 // pred_region
          _
        $region20: #{basic_block_forward.1} parent=11 // pred_fallthru
          _
        // Predicated region
        $region21: #{basic_block_forward.1} parent=11 // pred_check
          %p405 = pneg %p143
        $region22: #{basic_block_forward.1} parent=11 // pred_check_branch
          %407 = sbr.rel (%p405) target = $region24
        $region23: #{basic_block_forward.1} parent=11 // pred_region
          _
        $region24: #{basic_block_forward.1} parent=11 // pred_fallthru
          _
        // Predicated region
        $region25: #{basic_block_forward.1} parent=11 // pred_check
          %p408 = pneg %p164
        $region26: #{basic_block_forward.1} parent=11 // pred_check_branch
          %410 = sbr.rel (%p408) target = $region28
        $region27: #{basic_block_forward.1} parent=11 // pred_region
          _
        $region28: #{basic_block_forward.1} parent=11 // pred_fallthru
          _
        // Predicated region
        $region29: #{basic_block_forward.1} parent=11 // pred_check
          %p411 = pneg %p185
        $region30: #{basic_block_forward.1} parent=11 // pred_check_branch
          %413 = sbr.rel (%p411) target = $region32
        $region31: #{basic_block_forward.1} parent=11 // pred_region
          _
        $region32: #{basic_block_forward.1} parent=11 // pred_fallthru
          _
        // Predicated region
        $region33: #{basic_block_forward.1} parent=11 // pred_check
          %p414 = pneg %p206
        $region34: #{basic_block_forward.1} parent=11 // pred_check_branch
          %416 = sbr.rel (%p414) target = $region36
        $region35: #{basic_block_forward.1} parent=11 // pred_region
          _
        $region36: #{basic_block_forward.1} parent=11 // pred_fallthru
          _
        // Predicated region
        $region37: #{basic_block_forward.1} parent=11 // pred_check
          %p417 = pneg %p227
        $region38: #{basic_block_forward.1} parent=11 // pred_check_branch
          %419 = sbr.rel (%p417) target = $region40
        $region39: #{basic_block_forward.1} parent=11 // pred_region
          _
        $region40: #{basic_block_forward.1} parent=11 // pred_fallthru
          _
        // Predicated region
        $region41: #{basic_block_forward.1} parent=11 // pred_check
          %p420 = pneg %p248
        $region42: #{basic_block_forward.1} parent=11 // pred_check_branch
          %422 = sbr.rel (%p420) target = $region44
        $region43: #{basic_block_forward.1} parent=11 // pred_region
          _
        $region44: #{basic_block_forward.1} parent=11 // pred_fallthru
          _
        // Predicated region
        $region45: #{basic_block_forward.1} parent=11 // pred_check
          %p423 = pneg %p269
        $region46: #{basic_block_forward.1} parent=11 // pred_check_branch
          %425 = sbr.rel (%p423) target = $region48
        $region47: #{basic_block_forward.1} parent=11 // pred_region
          _
        $region48: #{basic_block_forward.1} parent=11 // pred_fallthru
          _
        // Predicated region
        $region49: #{basic_block_forward.1} parent=11 // pred_check
          %p426 = pneg %p290
        $region50: #{basic_block_forward.1} parent=11 // pred_check_branch
          %428 = sbr.rel (%p426) target = $region52
        $region51: #{basic_block_forward.1} parent=11 // pred_region
          _
        $region52: #{basic_block_forward.1} parent=11 // pred_fallthru
          _
        // Predicated region
        $region53: #{basic_block_forward.1} parent=11 // pred_check
          %p429 = pneg %p311
        $region54: #{basic_block_forward.1} parent=11 // pred_check_branch
          %431 = sbr.rel (%p429) target = $region56
        $region55: #{basic_block_forward.1} parent=11 // pred_region
          _
        $region56: #{basic_block_forward.1} parent=11 // pred_fallthru
          _
        // Predicated region
        $region57: #{basic_block_forward.1} parent=11 // pred_check
          %p432 = pneg %p332
        $region58: #{basic_block_forward.1} parent=11 // pred_check_branch
          %434 = sbr.rel (%p432) target = $region60
        $region59: #{basic_block_forward.1} parent=11 // pred_region
          _
        $region60: #{basic_block_forward.1} parent=11 // pred_fallthru
          _
      $region12: #{basic_block_forward.1} parent=5 // pred_fallthru
        _
      %p435 = scmp.lt.s32.totalorder %s28, 2
      // Predicated region
      $region61: #{basic_block_forward.1} parent=5 // pred_check
        %p436 = pneg %p435
      $region62: #{basic_block_forward.1} parent=5 // pred_check_branch
        %438 = sbr.rel (%p436) target = $region64
      $region63: #{basic_block_forward.1} parent=5 // pred_region
        // Predicated region
        $region65: #{basic_block_forward.1} parent=63 // pred_check
          %p439 = pneg %p48
        $region66: #{basic_block_forward.1} parent=63 // pred_check_branch
          %441 = sbr.rel (%p439) target = $region68
        $region67: #{basic_block_forward.1} parent=63 // pred_region
          %p442 = scmp.lt.s32.totalorder %s28, 1
          %s443 = scalar_select %p442, %s28, 1
          %s444 = smul.addr %s443, 32
          %s445 = smul.addr %s444, 8
          %s446 = scalar_lea.vmem %s0, %s445
        $region68: #{basic_block_forward.1} parent=63 // pred_fallthru
          _
        // Predicated region
        $region69: #{basic_block_forward.1} parent=63 // pred_check
          %p447 = pneg %p74
        $region70: #{basic_block_forward.1} parent=63 // pred_check_branch
          %449 = sbr.rel (%p447) target = $region72
        $region71: #{basic_block_forward.1} parent=63 // pred_region
          %p450 = scmp.lt.s32.totalorder %s28, 1
          %s451 = scalar_select %p450, %s28, 1
          %s452 = smul.addr %s451, 32
          %s453 = smul.addr %s452, 8
          %s454 = scalar_lea.vmem %s1, %s453
        $region72: #{basic_block_forward.1} parent=63 // pred_fallthru
          _
      $region64: #{basic_block_forward.1} parent=5 // pred_fallthru
        _
      %p455 = scmp.le.s32.totalorder 1, %s28
      %p456 = scmp.lt.s32.totalorder %s28, 3
      %p457 = pnand %p455, %p456
      %p458 = pneg %p457
      // Predicated region
      $region73: #{basic_block_forward.1} parent=5 // pred_check
        _
      $region74: #{basic_block_forward.1} parent=5 // pred_check_branch
        %460 = sbr.rel (%p457) target = $region76
      $region75: #{basic_block_forward.1} parent=5 // pred_region
        %s461 = ssub.s32 %s28, 1
        %p462 = scmp.lt.s32.totalorder %s33, 1
        %s463 = scalar_select %p462, %s33, 1
        %s464 = smul.addr %s463, 32
        %s465 = smul.addr %s464, 8
        %s466 = scalar_lea.vmem %s0, %s465
        %p467 = pneg %p54
        %p468 = pneg %p51
        %p469 = scmp.lt.s32.totalorder %s33, 1
        %s470 = scalar_select %p469, %s33, 1
        %s471 = smul.addr %s470, 32
        %s472 = smul.addr %s471, 8
        %s473 = scalar_lea.vmem %s1, %s472
        %p474 = pneg %p80
        %p475 = pneg %p77
        %p476 = pneg %p101
        %p477 = pneg %p98
        %p478 = pneg %p122
        %p479 = pneg %p119
        %p480 = pneg %p143
        %p481 = pneg %p140
        %p482 = pneg %p164
        %p483 = pneg %p161
        %p484 = pneg %p185
        %p485 = pneg %p182
        %p486 = pneg %p206
        %p487 = pneg %p203
        %p488 = pneg %p227
        %p489 = pneg %p224
        %p490 = pneg %p248
        %p491 = pneg %p245
        %p492 = pneg %p269
        %p493 = pneg %p266
        %p494 = pneg %p290
        %p495 = pneg %p287
        %p496 = pneg %p311
        %p497 = pneg %p308
        %p498 = pneg %p332
        %p499 = pneg %p329
        %p500 = pneg %p358
        %p501 = pneg %p355
        %s502 = sand.u32 %s345, 1
        %s503 = scalar_lea.sflag [#allocation3], %s502
        %s504 = sand.u32 %s345, 1
        %s505 = smul.addr %s504, 256
        %s506 = scalar_lea.vmem [#allocation2], %s505
        %p507 = pneg %p384
        %p508 = pneg %p381
        %s509 = sand.u32 %s371, 1
        %s510 = scalar_lea.sflag [#allocation5], %s509
        %s511 = sand.u32 %s371, 1
        %s512 = smul.addr %s511, 256
        %s513 = scalar_lea.vmem [#allocation4], %s512
        %p514 = scmp.lt.s32.totalorder %s33, 1
        %s515 = scalar_select %p514, %s33, 1
        %s516 = smul.addr %s515, 32
        %s517 = smul.addr %s516, 8
        %s518 = scalar_lea.vmem %s0, %s517
        %p519 = scmp.lt.s32.totalorder %s33, 1
        %s520 = scalar_select %p519, %s33, 1
        %s521 = smul.addr %s520, 32
        %s522 = smul.addr %s521, 8
        %s523 = scalar_lea.vmem %s1, %s522
        %v525 = vld [vmem:[%s518] sm:$0xff]
        %v526 = vld [vmem:[%s518 + $0x8] sm:$0xff]
        %v527 = vld [vmem:[%s518 + $0x10] sm:$0xff]
        %v528 = vld [vmem:[%s518 + $0x18] sm:$0xff]
        %v529 = vld [vmem:[%s518 + $0x20] sm:$0xff]
        %v530 = vld [vmem:[%s518 + $0x28] sm:$0xff]
        %v531 = vld [vmem:[%s518 + $0x30] sm:$0xff]
        %v532 = vld [vmem:[%s518 + $0x38] sm:$0xff]
        %v533 = vld [vmem:[%s518 + $0x40] sm:$0xff]
        %v534 = vld [vmem:[%s518 + $0x48] sm:$0xff]
        %v535 = vld [vmem:[%s518 + $0x50] sm:$0xff]
        %v536 = vld [vmem:[%s518 + $0x58] sm:$0xff]
        %v537 = vld [vmem:[%s518 + $0x60] sm:$0xff]
        %v538 = vld [vmem:[%s518 + $0x68] sm:$0xff]
        %v539 = vld [vmem:[%s518 + $0x70] sm:$0xff]
        %v540 = vld [vmem:[%s518 + $0x78] sm:$0xff]
        %v541 = vld [vmem:[%s518 + $0x80] sm:$0xff]
        %v542 = vld [vmem:[%s518 + $0x88] sm:$0xff]
        %v543 = vld [vmem:[%s518 + $0x90] sm:$0xff]
        %v544 = vld [vmem:[%s518 + $0x98] sm:$0xff]
        %v545 = vld [vmem:[%s518 + $0xa0] sm:$0xff]
        %v546 = vld [vmem:[%s518 + $0xa8] sm:$0xff]
        %v547 = vld [vmem:[%s518 + $0xb0] sm:$0xff]
        %v548 = vld [vmem:[%s518 + $0xb8] sm:$0xff]
        %v549 = vld [vmem:[%s518 + $0xc0] sm:$0xff]
        %v550 = vld [vmem:[%s518 + $0xc8] sm:$0xff]
        %v551 = vld [vmem:[%s518 + $0xd0] sm:$0xff]
        %v552 = vld [vmem:[%s518 + $0xd8] sm:$0xff]
        %v553 = vld [vmem:[%s518 + $0xe0] sm:$0xff]
        %v554 = vld [vmem:[%s518 + $0xe8] sm:$0xff]
        %v555 = vld [vmem:[%s518 + $0xf0] sm:$0xff]
        %v556 = vld [vmem:[%s518 + $0xf8] sm:$0xff]
        %v557 = vld [vmem:[%s2] sm:$0x1]
        %v559 = vlaneseq
        %v560 = vshrl.u32 %v559, 7
        %v561 = vsub.s32 0, %v560
        %v562 = vrot.slane %v557, %v561
        %v564 = vmul.f32 %v525, %v562
        %v565 = vmul.f32 %v526, %v562
        %v566 = vmul.f32 %v527, %v562
        %v567 = vmul.f32 %v528, %v562
        %v568 = vmul.f32 %v529, %v562
        %v569 = vmul.f32 %v530, %v562
        %v570 = vmul.f32 %v531, %v562
        %v571 = vmul.f32 %v532, %v562
        %v572 = vmul.f32 %v533, %v562
        %v573 = vmul.f32 %v534, %v562
        %v574 = vmul.f32 %v535, %v562
        %v575 = vmul.f32 %v536, %v562
        %v576 = vmul.f32 %v537, %v562
        %v577 = vmul.f32 %v538, %v562
        %v578 = vmul.f32 %v539, %v562
        %v579 = vmul.f32 %v540, %v562
        %v580 = vmul.f32 %v541, %v562
        %v581 = vmul.f32 %v542, %v562
        %v582 = vmul.f32 %v543, %v562
        %v583 = vmul.f32 %v544, %v562
        %v584 = vmul.f32 %v545, %v562
        %v585 = vmul.f32 %v546, %v562
        %v586 = vmul.f32 %v547, %v562
        %v587 = vmul.f32 %v548, %v562
        %v588 = vmul.f32 %v549, %v562
        %v589 = vmul.f32 %v550, %v562
        %v590 = vmul.f32 %v551, %v562
        %v591 = vmul.f32 %v552, %v562
        %v592 = vmul.f32 %v553, %v562
        %v593 = vmul.f32 %v554, %v562
        %v594 = vmul.f32 %v555, %v562
        %v595 = vmul.f32 %v556, %v562
        %v596 = vld [vmem:[%s3] sm:$0x1]
        %v598 = vlaneseq
        %v599 = vshrl.u32 %v598, 7
        %v600 = vsub.s32 0, %v599
        %v601 = vrot.slane %v596, %v600
        %v603 = vadd.f32 %v564, %v601
        %v604 = vadd.f32 %v565, %v601
        %v605 = vadd.f32 %v566, %v601
        %v606 = vadd.f32 %v567, %v601
        %v607 = vadd.f32 %v568, %v601
        %v608 = vadd.f32 %v569, %v601
        %v609 = vadd.f32 %v570, %v601
        %v610 = vadd.f32 %v571, %v601
        %v611 = vadd.f32 %v572, %v601
        %v612 = vadd.f32 %v573, %v601
        %v613 = vadd.f32 %v574, %v601
        %v614 = vadd.f32 %v575, %v601
        %v615 = vadd.f32 %v576, %v601
        %v616 = vadd.f32 %v577, %v601
        %v617 = vadd.f32 %v578, %v601
        %v618 = vadd.f32 %v579, %v601
        %v619 = vadd.f32 %v580, %v601
        %v620 = vadd.f32 %v581, %v601
        %v621 = vadd.f32 %v582, %v601
        %v622 = vadd.f32 %v583, %v601
        %v623 = vadd.f32 %v584, %v601
        %v624 = vadd.f32 %v585, %v601
        %v625 = vadd.f32 %v586, %v601
        %v626 = vadd.f32 %v587, %v601
        %v627 = vadd.f32 %v588, %v601
        %v628 = vadd.f32 %v589, %v601
        %v629 = vadd.f32 %v590, %v601
        %v630 = vadd.f32 %v591, %v601
        %v631 = vadd.f32 %v592, %v601
        %v632 = vadd.f32 %v593, %v601
        %v633 = vadd.f32 %v594, %v601
        %v634 = vadd.f32 %v595, %v601
        %v635 = vmax.f32 %v603, 0.0
        %v636 = vmax.f32 %v604, 0.0
        %v637 = vmax.f32 %v605, 0.0
        %v638 = vmax.f32 %v606, 0.0
        %v639 = vmax.f32 %v607, 0.0
        %v640 = vmax.f32 %v608, 0.0
        %v641 = vmax.f32 %v609, 0.0
        %v642 = vmax.f32 %v610, 0.0
        %v643 = vmax.f32 %v611, 0.0
        %v644 = vmax.f32 %v612, 0.0
        %v645 = vmax.f32 %v613, 0.0
        %v646 = vmax.f32 %v614, 0.0
        %v647 = vmax.f32 %v615, 0.0
        %v648 = vmax.f32 %v616, 0.0
        %v649 = vmax.f32 %v617, 0.0
        %v650 = vmax.f32 %v618, 0.0
        %v651 = vmax.f32 %v619, 0.0
        %v652 = vmax.f32 %v620, 0.0
        %v653 = vmax.f32 %v621, 0.0
        %v654 = vmax.f32 %v622, 0.0
        %v655 = vmax.f32 %v623, 0.0
        %v656 = vmax.f32 %v624, 0.0
        %v657 = vmax.f32 %v625, 0.0
        %v658 = vmax.f32 %v626, 0.0
        %v659 = vmax.f32 %v627, 0.0
        %v660 = vmax.f32 %v628, 0.0
        %v661 = vmax.f32 %v629, 0.0
        %v662 = vmax.f32 %v630, 0.0
        %v663 = vmax.f32 %v631, 0.0
        %v664 = vmax.f32 %v632, 0.0
        %v665 = vmax.f32 %v633, 0.0
        %v666 = vmax.f32 %v634, 0.0
        %v667 = vpack.c.bf16 %v636, %v635
        %v668 = vpack.c.bf16 %v638, %v637
        %v669 = vpack.c.bf16 %v640, %v639
        %v670 = vpack.c.bf16 %v642, %v641
        %v671 = vpack.c.bf16 %v644, %v643
        %v672 = vpack.c.bf16 %v646, %v645
        %v673 = vpack.c.bf16 %v648, %v647
        %v674 = vpack.c.bf16 %v650, %v649
        %v675 = vpack.c.bf16 %v652, %v651
        %v676 = vpack.c.bf16 %v654, %v653
        %v677 = vpack.c.bf16 %v656, %v655
        %v678 = vpack.c.bf16 %v658, %v657
        %v679 = vpack.c.bf16 %v660, %v659
        %v680 = vpack.c.bf16 %v662, %v661
        %v681 = vpack.c.bf16 %v664, %v663
        %v682 = vpack.c.bf16 %v666, %v665
        %v683 = vld [vmem:[%s4] sm:$0xf]
        %v684 = vld [vmem:[%s4 + $0x4] sm:$0xf]
        %v685 = vld [vmem:[%s4 + $0x8] sm:$0xf]
        %v686 = vld [vmem:[%s4 + $0xc] sm:$0xf]
        %v687 = vld [vmem:[%s4 + $0x10] sm:$0xf]
        %v688 = vld [vmem:[%s4 + $0x14] sm:$0xf]
        %v695 = vunpack.c.l.b16 %v683
        %v696 = vunpack.c.l.b16 %v684
        %v697 = vunpack.c.l.b16 %v685
        %v698 = vunpack.c.l.b16 %v686
        %v699 = vunpack.c.l.b16 %v687
        %v700 = vunpack.c.l.b16 %v688
        %v701 = vpack.c.b16 %v696, %v695
        %v702 = vpack.c.b16 %v698, %v697
        %v703 = vpack.c.b16 %v700, %v699
        %vm707 = vcmask 392192
        %v709 = vsel %vm707, %v667, 0
        %v712 = vsel %vm707, %v668, 0
        %v715 = vsel %vm707, %v669, 0
        %v718 = vsel %vm707, %v670, 0
        %v721 = vsel %vm707, %v671, 0
        %v724 = vsel %vm707, %v672, 0
        %v727 = vsel %vm707, %v673, 0
        %v730 = vsel %vm707, %v674, 0
        %v733 = vsel %vm707, %v675, 0
        %v736 = vsel %vm707, %v676, 0
        %v739 = vsel %vm707, %v677, 0
        %v742 = vsel %vm707, %v678, 0
        %v745 = vsel %vm707, %v679, 0
        %v748 = vsel %vm707, %v680, 0
        %v751 = vsel %vm707, %v681, 0
        %v754 = vsel %vm707, %v682, 0
        %756 = vmatprep.subr.bf16.mxu0 0
        %757 = vmatpush1.bf16.msra.mxu0 %v701
        %758 = vmatprep.subr.bf16.mxu0 0
        %759 = vmatpush1.bf16.msra.mxu0 %v702
        %760 = vmatprep.subr.bf16.mxu0 0
        %761 = vmatpush1.bf16.msra.mxu0 %v703
        %762 = vmatprep.subr.bf16.mxu0 0
        %763 = vmatpush1.bf16.msra.mxu0 0
        %764 = vmatprep.subr.bf16.mxu0 0
        %765 = vmatpush1.bf16.msra.mxu0 0
        %766 = vmatprep.subr.bf16.mxu0 0
        %767 = vmatpush1.bf16.msra.mxu0 0
        %768 = vmatprep.subr.bf16.mxu0 0
        %769 = vmatpush1.bf16.msra.mxu0 0
        %770 = vmatprep.subr.bf16.mxu0 0
        %771 = vmatpush1.bf16.msra.mxu0 0
        %772 = vmatprep.subr.bf16.mxu0 0
        %773 = vmatpush1.bf16.msra.mxu0 0
        %774 = vmatprep.subr.bf16.mxu0 0
        %775 = vmatpush1.bf16.msra.mxu0 0
        %776 = vmatprep.subr.bf16.mxu0 0
        %777 = vmatpush1.bf16.msra.mxu0 0
        %778 = vmatprep.subr.bf16.mxu0 0
        %779 = vmatpush1.bf16.msra.mxu0 0
        %780 = vmatprep.subr.bf16.mxu0 0
        %781 = vmatpush1.bf16.msra.mxu0 0
        %782 = vmatprep.subr.bf16.mxu0 0
        %783 = vmatpush1.bf16.msra.mxu0 0
        %784 = vmatprep.subr.bf16.mxu0 0
        %785 = vmatpush1.bf16.msra.mxu0 0
        %786 = vmatprep.subr.bf16.mxu0 0
        %787 = vmatpush1.bf16.msra.mxu0 0
        %788 = vmatprep.mubr.bf16.mxu0 0
        %789 = vmatmul.mubr.bf16.gmra.mrb[0].mxu0 %v709
        %v790 = vpop.f32.mrb[0].mxu0
        %v791 = vadd.f32 0.0, %v790
        %v792 = vpop.f32.mrb[0].mxu0
        %v793 = vpop.f32.mrb[0].mxu0
        %v794 = vadd.f32 0.0, %v793
        %v795 = vpop.f32.mrb[0].mxu0
        %796 = vmatprep.mubr.bf16.mxu0 0
        %797 = vmatmul.mubr.bf16.gmra.mrb[0].mxu0 %v712
        %v798 = vpop.f32.mrb[0].mxu0
        %v799 = vadd.f32 0.0, %v798
        %v800 = vpop.f32.mrb[0].mxu0
        %v801 = vpop.f32.mrb[0].mxu0
        %v802 = vadd.f32 0.0, %v801
        %v803 = vpop.f32.mrb[0].mxu0
        %804 = vmatprep.mubr.bf16.mxu0 0
        %805 = vmatmul.mubr.bf16.gmra.mrb[0].mxu0 %v715
        %v806 = vpop.f32.mrb[0].mxu0
        %v807 = vadd.f32 0.0, %v806
        %v808 = vpop.f32.mrb[0].mxu0
        %v809 = vpop.f32.mrb[0].mxu0
        %v810 = vadd.f32 0.0, %v809
        %v811 = vpop.f32.mrb[0].mxu0
        %812 = vmatprep.mubr.bf16.mxu0 0
        %813 = vmatmul.mubr.bf16.gmra.mrb[0].mxu0 %v718
        %v814 = vpop.f32.mrb[0].mxu0
        %v815 = vadd.f32 0.0, %v814
        %v816 = vpop.f32.mrb[0].mxu0
        %v817 = vpop.f32.mrb[0].mxu0
        %v818 = vadd.f32 0.0, %v817
        %v819 = vpop.f32.mrb[0].mxu0
        %820 = vmatprep.mubr.bf16.mxu0 0
        %821 = vmatmul.mubr.bf16.gmra.mrb[0].mxu0 %v721
        %v822 = vpop.f32.mrb[0].mxu0
        %v823 = vadd.f32 0.0, %v822
        %v824 = vpop.f32.mrb[0].mxu0
        %v825 = vpop.f32.mrb[0].mxu0
        %v826 = vadd.f32 0.0, %v825
        %v827 = vpop.f32.mrb[0].mxu0
        %828 = vmatprep.mubr.bf16.mxu0 0
        %829 = vmatmul.mubr.bf16.gmra.mrb[0].mxu0 %v724
        %v830 = vpop.f32.mrb[0].mxu0
        %v831 = vadd.f32 0.0, %v830
        %v832 = vpop.f32.mrb[0].mxu0
        %v833 = vpop.f32.mrb[0].mxu0
        %v834 = vadd.f32 0.0, %v833
        %v835 = vpop.f32.mrb[0].mxu0
        %836 = vmatprep.mubr.bf16.mxu0 0
        %837 = vmatmul.mubr.bf16.gmra.mrb[0].mxu0 %v727
        %v838 = vpop.f32.mrb[0].mxu0
        %v839 = vadd.f32 0.0, %v838
        %v840 = vpop.f32.mrb[0].mxu0
        %v841 = vpop.f32.mrb[0].mxu0
        %v842 = vadd.f32 0.0, %v841
        %v843 = vpop.f32.mrb[0].mxu0
        %844 = vmatprep.mubr.bf16.mxu0 0
        %845 = vmatmul.mubr.bf16.gmra.mrb[0].mxu0 %v730
        %v846 = vpop.f32.mrb[0].mxu0
        %v847 = vadd.f32 0.0, %v846
        %v848 = vpop.f32.mrb[0].mxu0
        %v849 = vpop.f32.mrb[0].mxu0
        %v850 = vadd.f32 0.0, %v849
        %v851 = vpop.f32.mrb[0].mxu0
        %852 = vmatprep.mubr.bf16.mxu0 0
        %853 = vmatmul.mubr.bf16.gmra.mrb[0].mxu0 %v733
        %v854 = vpop.f32.mrb[0].mxu0
        %v855 = vadd.f32 0.0, %v854
        %v856 = vpop.f32.mrb[0].mxu0
        %v857 = vpop.f32.mrb[0].mxu0
        %v858 = vadd.f32 0.0, %v857
        %v859 = vpop.f32.mrb[0].mxu0
        %860 = vmatprep.mubr.bf16.mxu0 0
        %861 = vmatmul.mubr.bf16.gmra.mrb[0].mxu0 %v736
        %v862 = vpop.f32.mrb[0].mxu0
        %v863 = vadd.f32 0.0, %v862
        %v864 = vpop.f32.mrb[0].mxu0
        %v865 = vpop.f32.mrb[0].mxu0
        %v866 = vadd.f32 0.0, %v865
        %v867 = vpop.f32.mrb[0].mxu0
        %868 = vmatprep.mubr.bf16.mxu0 0
        %869 = vmatmul.mubr.bf16.gmra.mrb[0].mxu0 %v739
        %v870 = vpop.f32.mrb[0].mxu0
        %v871 = vadd.f32 0.0, %v870
        %v872 = vpop.f32.mrb[0].mxu0
        %v873 = vpop.f32.mrb[0].mxu0
        %v874 = vadd.f32 0.0, %v873
        %v875 = vpop.f32.mrb[0].mxu0
        %876 = vmatprep.mubr.bf16.mxu0 0
        %877 = vmatmul.mubr.bf16.gmra.mrb[0].mxu0 %v742
        %v878 = vpop.f32.mrb[0].mxu0
        %v879 = vadd.f32 0.0, %v878
        %v880 = vpop.f32.mrb[0].mxu0
        %v881 = vpop.f32.mrb[0].mxu0
        %v882 = vadd.f32 0.0, %v881
        %v883 = vpop.f32.mrb[0].mxu0
        %884 = vmatprep.mubr.bf16.mxu0 0
        %885 = vmatmul.mubr.bf16.gmra.mrb[0].mxu0 %v745
        %v886 = vpop.f32.mrb[0].mxu0
        %v887 = vadd.f32 0.0, %v886
        %v888 = vpop.f32.mrb[0].mxu0
        %v889 = vpop.f32.mrb[0].mxu0
        %v890 = vadd.f32 0.0, %v889
        %v891 = vpop.f32.mrb[0].mxu0
        %892 = vmatprep.mubr.bf16.mxu0 0
        %893 = vmatmul.mubr.bf16.gmra.mrb[0].mxu0 %v748
        %v894 = vpop.f32.mrb[0].mxu0
        %v895 = vadd.f32 0.0, %v894
        %v896 = vpop.f32.mrb[0].mxu0
        %v897 = vpop.f32.mrb[0].mxu0
        %v898 = vadd.f32 0.0, %v897
        %v899 = vpop.f32.mrb[0].mxu0
        %900 = vmatprep.mubr.bf16.mxu0 0
        %901 = vmatmul.mubr.bf16.gmra.mrb[0].mxu0 %v751
        %v902 = vpop.f32.mrb[0].mxu0
        %v903 = vadd.f32 0.0, %v902
        %v904 = vpop.f32.mrb[0].mxu0
        %v905 = vpop.f32.mrb[0].mxu0
        %v906 = vadd.f32 0.0, %v905
        %v907 = vpop.f32.mrb[0].mxu0
        %908 = vmatprep.mubr.bf16.mxu0 0
        %909 = vmatmul.mubr.bf16.gmra.mrb[0].mxu0 %v754
        %v910 = vpop.f32.mrb[0].mxu0
        %v911 = vadd.f32 0.0, %v910
        %v912 = vpop.f32.mrb[0].mxu0
        %v913 = vpop.f32.mrb[0].mxu0
        %v914 = vadd.f32 0.0, %v913
        %v915 = vpop.f32.mrb[0].mxu0
        %916 = vdwg.mxu0
        %vm917 = vcmask 195584
        %918 = vst.msk [vmem:[%s513] sm:$0xff] %vm917, %v791
        %919 = vst.msk [vmem:[%s513 + $0x8] sm:$0xff] %vm917, %v794
        %920 = vst.msk [vmem:[%s513 + $0x10] sm:$0xff] %vm917, %v799
        %921 = vst.msk [vmem:[%s513 + $0x18] sm:$0xff] %vm917, %v802
        %922 = vst.msk [vmem:[%s513 + $0x20] sm:$0xff] %vm917, %v807
        %923 = vst.msk [vmem:[%s513 + $0x28] sm:$0xff] %vm917, %v810
        %924 = vst.msk [vmem:[%s513 + $0x30] sm:$0xff] %vm917, %v815
        %925 = vst.msk [vmem:[%s513 + $0x38] sm:$0xff] %vm917, %v818
        %926 = vst.msk [vmem:[%s513 + $0x40] sm:$0xff] %vm917, %v823
        %927 = vst.msk [vmem:[%s513 + $0x48] sm:$0xff] %vm917, %v826
        %928 = vst.msk [vmem:[%s513 + $0x50] sm:$0xff] %vm917, %v831
        %929 = vst.msk [vmem:[%s513 + $0x58] sm:$0xff] %vm917, %v834
        %930 = vst.msk [vmem:[%s513 + $0x60] sm:$0xff] %vm917, %v839
        %931 = vst.msk [vmem:[%s513 + $0x68] sm:$0xff] %vm917, %v842
        %932 = vst.msk [vmem:[%s513 + $0x70] sm:$0xff] %vm917, %v847
        %933 = vst.msk [vmem:[%s513 + $0x78] sm:$0xff] %vm917, %v850
        %934 = vst.msk [vmem:[%s513 + $0x80] sm:$0xff] %vm917, %v855
        %935 = vst.msk [vmem:[%s513 + $0x88] sm:$0xff] %vm917, %v858
        %936 = vst.msk [vmem:[%s513 + $0x90] sm:$0xff] %vm917, %v863
        %937 = vst.msk [vmem:[%s513 + $0x98] sm:$0xff] %vm917, %v866
        %938 = vst.msk [vmem:[%s513 + $0xa0] sm:$0xff] %vm917, %v871
        %939 = vst.msk [vmem:[%s513 + $0xa8] sm:$0xff] %vm917, %v874
        %940 = vst.msk [vmem:[%s513 + $0xb0] sm:$0xff] %vm917, %v879
        %941 = vst.msk [vmem:[%s513 + $0xb8] sm:$0xff] %vm917, %v882
        %942 = vst.msk [vmem:[%s513 + $0xc0] sm:$0xff] %vm917, %v887
        %943 = vst.msk [vmem:[%s513 + $0xc8] sm:$0xff] %vm917, %v890
        %944 = vst.msk [vmem:[%s513 + $0xd0] sm:$0xff] %vm917, %v895
        %945 = vst.msk [vmem:[%s513 + $0xd8] sm:$0xff] %vm917, %v898
        %946 = vst.msk [vmem:[%s513 + $0xe0] sm:$0xff] %vm917, %v903
        %947 = vst.msk [vmem:[%s513 + $0xe8] sm:$0xff] %vm917, %v906
        %948 = vst.msk [vmem:[%s513 + $0xf0] sm:$0xff] %vm917, %v911
        %949 = vst.msk [vmem:[%s513 + $0xf8] sm:$0xff] %vm917, %v914
        %v950 = vld [vmem:[%s5] sm:$0x1]
        %v952 = vlaneseq
        %v953 = vshrl.u32 %v952, 7
        %v954 = vsub.s32 0, %v953
        %v955 = vrot.slane %v950, %v954
        %v957 = vmul.f32 %v791, %v955
        %v958 = vmul.f32 %v794, %v955
        %v959 = vmul.f32 %v799, %v955
        %v960 = vmul.f32 %v802, %v955
        %v961 = vmul.f32 %v807, %v955
        %v962 = vmul.f32 %v810, %v955
        %v963 = vmul.f32 %v815, %v955
        %v964 = vmul.f32 %v818, %v955
        %v965 = vmul.f32 %v823, %v955
        %v966 = vmul.f32 %v826, %v955
        %v967 = vmul.f32 %v831, %v955
        %v968 = vmul.f32 %v834, %v955
        %v969 = vmul.f32 %v839, %v955
        %v970 = vmul.f32 %v842, %v955
        %v971 = vmul.f32 %v847, %v955
        %v972 = vmul.f32 %v850, %v955
        %v973 = vmul.f32 %v855, %v955
        %v974 = vmul.f32 %v858, %v955
        %v975 = vmul.f32 %v863, %v955
        %v976 = vmul.f32 %v866, %v955
        %v977 = vmul.f32 %v871, %v955
        %v978 = vmul.f32 %v874, %v955
        %v979 = vmul.f32 %v879, %v955
        %v980 = vmul.f32 %v882, %v955
        %v981 = vmul.f32 %v887, %v955
        %v982 = vmul.f32 %v890, %v955
        %v983 = vmul.f32 %v895, %v955
        %v984 = vmul.f32 %v898, %v955
        %v985 = vmul.f32 %v903, %v955
        %v986 = vmul.f32 %v906, %v955
        %v987 = vmul.f32 %v911, %v955
        %v988 = vmul.f32 %v914, %v955
        %v989 = vld [vmem:[%s6] sm:$0x1]
        %v991 = vlaneseq
        %v992 = vshrl.u32 %v991, 7
        %v993 = vsub.s32 0, %v992
        %v994 = vrot.slane %v989, %v993
        %v996 = vadd.f32 %v957, %v994
        %v997 = vadd.f32 %v958, %v994
        %v998 = vadd.f32 %v959, %v994
        %v999 = vadd.f32 %v960, %v994
        %v1000 = vadd.f32 %v961, %v994
        %v1001 = vadd.f32 %v962, %v994
        %v1002 = vadd.f32 %v963, %v994
        %v1003 = vadd.f32 %v964, %v994
        %v1004 = vadd.f32 %v965, %v994
        %v1005 = vadd.f32 %v966, %v994
        %v1006 = vadd.f32 %v967, %v994
        %v1007 = vadd.f32 %v968, %v994
        %v1008 = vadd.f32 %v969, %v994
        %v1009 = vadd.f32 %v970, %v994
        %v1010 = vadd.f32 %v971, %v994
        %v1011 = vadd.f32 %v972, %v994
        %v1012 = vadd.f32 %v973, %v994
        %v1013 = vadd.f32 %v974, %v994
        %v1014 = vadd.f32 %v975, %v994
        %v1015 = vadd.f32 %v976, %v994
        %v1016 = vadd.f32 %v977, %v994
        %v1017 = vadd.f32 %v978, %v994
        %v1018 = vadd.f32 %v979, %v994
        %v1019 = vadd.f32 %v980, %v994
        %v1020 = vadd.f32 %v981, %v994
        %v1021 = vadd.f32 %v982, %v994
        %v1022 = vadd.f32 %v983, %v994
        %v1023 = vadd.f32 %v984, %v994
        %v1024 = vadd.f32 %v985, %v994
        %v1025 = vadd.f32 %v986, %v994
        %v1026 = vadd.f32 %v987, %v994
        %v1027 = vadd.f32 %v988, %v994
        %v1028 = vmax.f32 %v996, 0.0
        %v1029 = vmax.f32 %v997, 0.0
        %v1030 = vmax.f32 %v998, 0.0
        %v1031 = vmax.f32 %v999, 0.0
        %v1032 = vmax.f32 %v1000, 0.0
        %v1033 = vmax.f32 %v1001, 0.0
        %v1034 = vmax.f32 %v1002, 0.0
        %v1035 = vmax.f32 %v1003, 0.0
        %v1036 = vmax.f32 %v1004, 0.0
        %v1037 = vmax.f32 %v1005, 0.0
        %v1038 = vmax.f32 %v1006, 0.0
        %v1039 = vmax.f32 %v1007, 0.0
        %v1040 = vmax.f32 %v1008, 0.0
        %v1041 = vmax.f32 %v1009, 0.0
        %v1042 = vmax.f32 %v1010, 0.0
        %v1043 = vmax.f32 %v1011, 0.0
        %v1044 = vmax.f32 %v1012, 0.0
        %v1045 = vmax.f32 %v1013, 0.0
        %v1046 = vmax.f32 %v1014, 0.0
        %v1047 = vmax.f32 %v1015, 0.0
        %v1048 = vmax.f32 %v1016, 0.0
        %v1049 = vmax.f32 %v1017, 0.0
        %v1050 = vmax.f32 %v1018, 0.0
        %v1051 = vmax.f32 %v1019, 0.0
        %v1052 = vmax.f32 %v1020, 0.0
        %v1053 = vmax.f32 %v1021, 0.0
        %v1054 = vmax.f32 %v1022, 0.0
        %v1055 = vmax.f32 %v1023, 0.0
        %v1056 = vmax.f32 %v1024, 0.0
        %v1057 = vmax.f32 %v1025, 0.0
        %v1058 = vmax.f32 %v1026, 0.0
        %v1059 = vmax.f32 %v1027, 0.0
        %v1060 = vlaneseq
        %v1061 = vshrl.u32 %v1060, 7
        %v1062 = vadd.s32 %v1061, 8
        %v1063 = vadd.s32 %v1061, 16
        %v1064 = vadd.s32 %v1061, 24
        %v1065 = vadd.s32 %v1061, 32
        %v1066 = vadd.s32 %v1061, 40
        %v1067 = vadd.s32 %v1061, 48
        %v1068 = vadd.s32 %v1061, 56
        %v1069 = vadd.s32 %v1061, 64
        %v1070 = vadd.s32 %v1061, 72
        %v1071 = vadd.s32 %v1061, 80
        %v1072 = vadd.s32 %v1061, 88
        %v1073 = vadd.s32 %v1061, 96
        %v1074 = vadd.s32 %v1061, 104
        %v1075 = vadd.s32 %v1061, 112
        %v1076 = vadd.s32 %v1061, 120
        %v1077 = vadd.s32 %v1061, 128
        %v1078 = vadd.s32 %v1061, 136
        %v1079 = vadd.s32 %v1061, 144
        %v1080 = vadd.s32 %v1061, 152
        %v1081 = vadd.s32 %v1061, 160
        %v1082 = vadd.s32 %v1061, 168
        %v1083 = vadd.s32 %v1061, 176
        %v1084 = vadd.s32 %v1061, 184
        %v1085 = vadd.s32 %v1061, 192
        %v1086 = vadd.s32 %v1061, 200
        %v1087 = vadd.s32 %v1061, 208
        %v1088 = vadd.s32 %v1061, 216
        %v1089 = vadd.s32 %v1061, 224
        %v1090 = vadd.s32 %v1061, 232
        %v1091 = vadd.s32 %v1061, 240
        %v1092 = vadd.s32 %v1061, 248
        %vm1093 = vcmp.lt.s32.totalorder %v1061, 0
        %v1094 = vsub.s32 0, %v1061
        %v1095 = vsel %vm1093, %v1094, %v1061
        %v1096 = vshrl.u32 %v1095, 4
        %v1097 = vand.u32 %v1095, 15
        %v1098 = vsub.s32 0, %v1097
        %v1099 = vsel %vm1093, %v1098, %v1097
        %vm1100 = vcmp.lt.s32.totalorder %v1062, 0
        %v1101 = vsub.s32 0, %v1062
        %v1102 = vsel %vm1100, %v1101, %v1062
        %v1103 = vshrl.u32 %v1102, 4
        %v1104 = vand.u32 %v1102, 15
        %v1105 = vsub.s32 0, %v1104
        %v1106 = vsel %vm1100, %v1105, %v1104
        %vm1107 = vcmp.lt.s32.totalorder %v1063, 0
        %v1108 = vsub.s32 0, %v1063
        %v1109 = vsel %vm1107, %v1108, %v1063
        %v1110 = vshrl.u32 %v1109, 4
        %v1111 = vand.u32 %v1109, 15
        %v1112 = vsub.s32 0, %v1111
        %v1113 = vsel %vm1107, %v1112, %v1111
        %vm1114 = vcmp.lt.s32.totalorder %v1064, 0
        %v1115 = vsub.s32 0, %v1064
        %v1116 = vsel %vm1114, %v1115, %v1064
        %v1117 = vshrl.u32 %v1116, 4
        %v1118 = vand.u32 %v1116, 15
        %v1119 = vsub.s32 0, %v1118
        %v1120 = vsel %vm1114, %v1119, %v1118
        %vm1121 = vcmp.lt.s32.totalorder %v1065, 0
        %v1122 = vsub.s32 0, %v1065
        %v1123 = vsel %vm1121, %v1122, %v1065
        %v1124 = vshrl.u32 %v1123, 4
        %v1125 = vand.u32 %v1123, 15
        %v1126 = vsub.s32 0, %v1125
        %v1127 = vsel %vm1121, %v1126, %v1125
        %vm1128 = vcmp.lt.s32.totalorder %v1066, 0
        %v1129 = vsub.s32 0, %v1066
        %v1130 = vsel %vm1128, %v1129, %v1066
        %v1131 = vshrl.u32 %v1130, 4
        %v1132 = vand.u32 %v1130, 15
        %v1133 = vsub.s32 0, %v1132
        %v1134 = vsel %vm1128, %v1133, %v1132
        %vm1135 = vcmp.lt.s32.totalorder %v1067, 0
        %v1136 = vsub.s32 0, %v1067
        %v1137 = vsel %vm1135, %v1136, %v1067
        %v1138 = vshrl.u32 %v1137, 4
        %v1139 = vand.u32 %v1137, 15
        %v1140 = vsub.s32 0, %v1139
        %v1141 = vsel %vm1135, %v1140, %v1139
        %vm1142 = vcmp.lt.s32.totalorder %v1068, 0
        %v1143 = vsub.s32 0, %v1068
        %v1144 = vsel %vm1142, %v1143, %v1068
        %v1145 = vshrl.u32 %v1144, 4
        %v1146 = vand.u32 %v1144, 15
        %v1147 = vsub.s32 0, %v1146
        %v1148 = vsel %vm1142, %v1147, %v1146
        %vm1149 = vcmp.lt.s32.totalorder %v1069, 0
        %v1150 = vsub.s32 0, %v1069
        %v1151 = vsel %vm1149, %v1150, %v1069
        %v1152 = vshrl.u32 %v1151, 4
        %v1153 = vand.u32 %v1151, 15
        %v1154 = vsub.s32 0, %v1153
        %v1155 = vsel %vm1149, %v1154, %v1153
        %vm1156 = vcmp.lt.s32.totalorder %v1070, 0
        %v1157 = vsub.s32 0, %v1070
        %v1158 = vsel %vm1156, %v1157, %v1070
        %v1159 = vshrl.u32 %v1158, 4
        %v1160 = vand.u32 %v1158, 15
        %v1161 = vsub.s32 0, %v1160
        %v1162 = vsel %vm1156, %v1161, %v1160
        %vm1163 = vcmp.lt.s32.totalorder %v1071, 0
        %v1164 = vsub.s32 0, %v1071
        %v1165 = vsel %vm1163, %v1164, %v1071
        %v1166 = vshrl.u32 %v1165, 4
        %v1167 = vand.u32 %v1165, 15
        %v1168 = vsub.s32 0, %v1167
        %v1169 = vsel %vm1163, %v1168, %v1167
        %vm1170 = vcmp.lt.s32.totalorder %v1072, 0
        %v1171 = vsub.s32 0, %v1072
        %v1172 = vsel %vm1170, %v1171, %v1072
        %v1173 = vshrl.u32 %v1172, 4
        %v1174 = vand.u32 %v1172, 15
        %v1175 = vsub.s32 0, %v1174
        %v1176 = vsel %vm1170, %v1175, %v1174
        %vm1177 = vcmp.lt.s32.totalorder %v1073, 0
        %v1178 = vsub.s32 0, %v1073
        %v1179 = vsel %vm1177, %v1178, %v1073
        %v1180 = vshrl.u32 %v1179, 4
        %v1181 = vand.u32 %v1179, 15
        %v1182 = vsub.s32 0, %v1181
        %v1183 = vsel %vm1177, %v1182, %v1181
        %vm1184 = vcmp.lt.s32.totalorder %v1074, 0
        %v1185 = vsub.s32 0, %v1074
        %v1186 = vsel %vm1184, %v1185, %v1074
        %v1187 = vshrl.u32 %v1186, 4
        %v1188 = vand.u32 %v1186, 15
        %v1189 = vsub.s32 0, %v1188
        %v1190 = vsel %vm1184, %v1189, %v1188
        %vm1191 = vcmp.lt.s32.totalorder %v1075, 0
        %v1192 = vsub.s32 0, %v1075
        %v1193 = vsel %vm1191, %v1192, %v1075
        %v1194 = vshrl.u32 %v1193, 4
        %v1195 = vand.u32 %v1193, 15
        %v1196 = vsub.s32 0, %v1195
        %v1197 = vsel %vm1191, %v1196, %v1195
        %vm1198 = vcmp.lt.s32.totalorder %v1076, 0
        %v1199 = vsub.s32 0, %v1076
        %v1200 = vsel %vm1198, %v1199, %v1076
        %v1201 = vshrl.u32 %v1200, 4
        %v1202 = vand.u32 %v1200, 15
        %v1203 = vsub.s32 0, %v1202
        %v1204 = vsel %vm1198, %v1203, %v1202
        %vm1205 = vcmp.lt.s32.totalorder %v1077, 0
        %v1206 = vsub.s32 0, %v1077
        %v1207 = vsel %vm1205, %v1206, %v1077
        %v1208 = vshrl.u32 %v1207, 4
        %v1209 = vand.u32 %v1207, 15
        %v1210 = vsub.s32 0, %v1209
        %v1211 = vsel %vm1205, %v1210, %v1209
        %vm1212 = vcmp.lt.s32.totalorder %v1078, 0
        %v1213 = vsub.s32 0, %v1078
        %v1214 = vsel %vm1212, %v1213, %v1078
        %v1215 = vshrl.u32 %v1214, 4
        %v1216 = vand.u32 %v1214, 15
        %v1217 = vsub.s32 0, %v1216
        %v1218 = vsel %vm1212, %v1217, %v1216
        %vm1219 = vcmp.lt.s32.totalorder %v1079, 0
        %v1220 = vsub.s32 0, %v1079
        %v1221 = vsel %vm1219, %v1220, %v1079
        %v1222 = vshrl.u32 %v1221, 4
        %v1223 = vand.u32 %v1221, 15
        %v1224 = vsub.s32 0, %v1223
        %v1225 = vsel %vm1219, %v1224, %v1223
        %vm1226 = vcmp.lt.s32.totalorder %v1080, 0
        %v1227 = vsub.s32 0, %v1080
        %v1228 = vsel %vm1226, %v1227, %v1080
        %v1229 = vshrl.u32 %v1228, 4
        %v1230 = vand.u32 %v1228, 15
        %v1231 = vsub.s32 0, %v1230
        %v1232 = vsel %vm1226, %v1231, %v1230
        %vm1233 = vcmp.lt.s32.totalorder %v1081, 0
        %v1234 = vsub.s32 0, %v1081
        %v1235 = vsel %vm1233, %v1234, %v1081
        %v1236 = vshrl.u32 %v1235, 4
        %v1237 = vand.u32 %v1235, 15
        %v1238 = vsub.s32 0, %v1237
        %v1239 = vsel %vm1233, %v1238, %v1237
        %vm1240 = vcmp.lt.s32.totalorder %v1082, 0
        %v1241 = vsub.s32 0, %v1082
        %v1242 = vsel %vm1240, %v1241, %v1082
        %v1243 = vshrl.u32 %v1242, 4
        %v1244 = vand.u32 %v1242, 15
        %v1245 = vsub.s32 0, %v1244
        %v1246 = vsel %vm1240, %v1245, %v1244
        %vm1247 = vcmp.lt.s32.totalorder %v1083, 0
        %v1248 = vsub.s32 0, %v1083
        %v1249 = vsel %vm1247, %v1248, %v1083
        %v1250 = vshrl.u32 %v1249, 4
        %v1251 = vand.u32 %v1249, 15
        %v1252 = vsub.s32 0, %v1251
        %v1253 = vsel %vm1247, %v1252, %v1251
        %vm1254 = vcmp.lt.s32.totalorder %v1084, 0
        %v1255 = vsub.s32 0, %v1084
        %v1256 = vsel %vm1254, %v1255, %v1084
        %v1257 = vshrl.u32 %v1256, 4
        %v1258 = vand.u32 %v1256, 15
        %v1259 = vsub.s32 0, %v1258
        %v1260 = vsel %vm1254, %v1259, %v1258
        %vm1261 = vcmp.lt.s32.totalorder %v1085, 0
        %v1262 = vsub.s32 0, %v1085
        %v1263 = vsel %vm1261, %v1262, %v1085
        %v1264 = vshrl.u32 %v1263, 4
        %v1265 = vand.u32 %v1263, 15
        %v1266 = vsub.s32 0, %v1265
        %v1267 = vsel %vm1261, %v1266, %v1265
        %vm1268 = vcmp.lt.s32.totalorder %v1086, 0
        %v1269 = vsub.s32 0, %v1086
        %v1270 = vsel %vm1268, %v1269, %v1086
        %v1271 = vshrl.u32 %v1270, 4
        %v1272 = vand.u32 %v1270, 15
        %v1273 = vsub.s32 0, %v1272
        %v1274 = vsel %vm1268, %v1273, %v1272
        %vm1275 = vcmp.lt.s32.totalorder %v1087, 0
        %v1276 = vsub.s32 0, %v1087
        %v1277 = vsel %vm1275, %v1276, %v1087
        %v1278 = vshrl.u32 %v1277, 4
        %v1279 = vand.u32 %v1277, 15
        %v1280 = vsub.s32 0, %v1279
        %v1281 = vsel %vm1275, %v1280, %v1279
        %vm1282 = vcmp.lt.s32.totalorder %v1088, 0
        %v1283 = vsub.s32 0, %v1088
        %v1284 = vsel %vm1282, %v1283, %v1088
        %v1285 = vshrl.u32 %v1284, 4
        %v1286 = vand.u32 %v1284, 15
        %v1287 = vsub.s32 0, %v1286
        %v1288 = vsel %vm1282, %v1287, %v1286
        %vm1289 = vcmp.lt.s32.totalorder %v1089, 0
        %v1290 = vsub.s32 0, %v1089
        %v1291 = vsel %vm1289, %v1290, %v1089
        %v1292 = vshrl.u32 %v1291, 4
        %v1293 = vand.u32 %v1291, 15
        %v1294 = vsub.s32 0, %v1293
        %v1295 = vsel %vm1289, %v1294, %v1293
        %vm1296 = vcmp.lt.s32.totalorder %v1090, 0
        %v1297 = vsub.s32 0, %v1090
        %v1298 = vsel %vm1296, %v1297, %v1090
        %v1299 = vshrl.u32 %v1298, 4
        %v1300 = vand.u32 %v1298, 15
        %v1301 = vsub.s32 0, %v1300
        %v1302 = vsel %vm1296, %v1301, %v1300
        %vm1303 = vcmp.lt.s32.totalorder %v1091, 0
        %v1304 = vsub.s32 0, %v1091
        %v1305 = vsel %vm1303, %v1304, %v1091
        %v1306 = vshrl.u32 %v1305, 4
        %v1307 = vand.u32 %v1305, 15
        %v1308 = vsub.s32 0, %v1307
        %v1309 = vsel %vm1303, %v1308, %v1307
        %vm1310 = vcmp.lt.s32.totalorder %v1092, 0
        %v1311 = vsub.s32 0, %v1092
        %v1312 = vsel %vm1310, %v1311, %v1092
        %v1313 = vshrl.u32 %v1312, 4
        %v1314 = vand.u32 %v1312, 15
        %v1315 = vsub.s32 0, %v1314
        %v1316 = vsel %vm1310, %v1315, %v1314
        %vm1317 = vcmp.ne.s32.totalorder %v1099, 0
        %vm1318 = vcmp.ne.s32.totalorder %v1106, 0
        %vm1319 = vcmp.ne.s32.totalorder %v1113, 0
        %vm1320 = vcmp.ne.s32.totalorder %v1120, 0
        %vm1321 = vcmp.ne.s32.totalorder %v1127, 0
        %vm1322 = vcmp.ne.s32.totalorder %v1134, 0
        %vm1323 = vcmp.ne.s32.totalorder %v1141, 0
        %vm1324 = vcmp.ne.s32.totalorder %v1148, 0
        %vm1325 = vcmp.ne.s32.totalorder %v1155, 0
        %vm1326 = vcmp.ne.s32.totalorder %v1162, 0
        %vm1327 = vcmp.ne.s32.totalorder %v1169, 0
        %vm1328 = vcmp.ne.s32.totalorder %v1176, 0
        %vm1329 = vcmp.ne.s32.totalorder %v1183, 0
        %vm1330 = vcmp.ne.s32.totalorder %v1190, 0
        %vm1331 = vcmp.ne.s32.totalorder %v1197, 0
        %vm1332 = vcmp.ne.s32.totalorder %v1204, 0
        %vm1333 = vcmp.ne.s32.totalorder %v1211, 0
        %vm1334 = vcmp.ne.s32.totalorder %v1218, 0
        %vm1335 = vcmp.ne.s32.totalorder %v1225, 0
        %vm1336 = vcmp.ne.s32.totalorder %v1232, 0
        %vm1337 = vcmp.ne.s32.totalorder %v1239, 0
        %vm1338 = vcmp.ne.s32.totalorder %v1246, 0
        %vm1339 = vcmp.ne.s32.totalorder %v1253, 0
        %vm1340 = vcmp.ne.s32.totalorder %v1260, 0
        %vm1341 = vcmp.ne.s32.totalorder %v1267, 0
        %vm1342 = vcmp.ne.s32.totalorder %v1274, 0
        %vm1343 = vcmp.ne.s32.totalorder %v1281, 0
        %vm1344 = vcmp.ne.s32.totalorder %v1288, 0
        %vm1345 = vcmp.ne.s32.totalorder %v1295, 0
        %vm1346 = vcmp.ne.s32.totalorder %v1302, 0
        %vm1347 = vcmp.ne.s32.totalorder %v1309, 0
        %vm1348 = vcmp.ne.s32.totalorder %v1316, 0
        %vm1349 = vcmp.lt.s32.totalorder %v1099, 0
        %vm1350 = vcmp.lt.s32.totalorder %v1106, 0
        %vm1351 = vcmp.lt.s32.totalorder %v1113, 0
        %vm1352 = vcmp.lt.s32.totalorder %v1120, 0
        %vm1353 = vcmp.lt.s32.totalorder %v1127, 0
        %vm1354 = vcmp.lt.s32.totalorder %v1134, 0
        %vm1355 = vcmp.lt.s32.totalorder %v1141, 0
        %vm1356 = vcmp.lt.s32.totalorder %v1148, 0
        %vm1357 = vcmp.lt.s32.totalorder %v1155, 0
        %vm1358 = vcmp.lt.s32.totalorder %v1162, 0
        %vm1359 = vcmp.lt.s32.totalorder %v1169, 0
        %vm1360 = vcmp.lt.s32.totalorder %v1176, 0
        %vm1361 = vcmp.lt.s32.totalorder %v1183, 0
        %vm1362 = vcmp.lt.s32.totalorder %v1190, 0
        %vm1363 = vcmp.lt.s32.totalorder %v1197, 0
        %vm1364 = vcmp.lt.s32.totalorder %v1204, 0
        %vm1365 = vcmp.lt.s32.totalorder %v1211, 0
        %vm1366 = vcmp.lt.s32.totalorder %v1218, 0
        %vm1367 = vcmp.lt.s32.totalorder %v1225, 0
        %vm1368 = vcmp.lt.s32.totalorder %v1232, 0
        %vm1369 = vcmp.lt.s32.totalorder %v1239, 0
        %vm1370 = vcmp.lt.s32.totalorder %v1246, 0
        %vm1371 = vcmp.lt.s32.totalorder %v1253, 0
        %vm1372 = vcmp.lt.s32.totalorder %v1260, 0
        %vm1373 = vcmp.lt.s32.totalorder %v1267, 0
        %vm1374 = vcmp.lt.s32.totalorder %v1274, 0
        %vm1375 = vcmp.lt.s32.totalorder %v1281, 0
        %vm1376 = vcmp.lt.s32.totalorder %v1288, 0
        %vm1377 = vcmp.lt.s32.totalorder %v1295, 0
        %vm1378 = vcmp.lt.s32.totalorder %v1302, 0
        %vm1379 = vcmp.lt.s32.totalorder %v1309, 0
        %vm1380 = vcmp.lt.s32.totalorder %v1316, 0
        %vm1381 = vmand %vm1349, %vm1317
        %vm1382 = vmand %vm1350, %vm1318
        %vm1383 = vmand %vm1351, %vm1319
        %vm1384 = vmand %vm1352, %vm1320
        %vm1385 = vmand %vm1353, %vm1321
        %vm1386 = vmand %vm1354, %vm1322
        %vm1387 = vmand %vm1355, %vm1323
        %vm1388 = vmand %vm1356, %vm1324
        %vm1389 = vmand %vm1357, %vm1325
        %vm1390 = vmand %vm1358, %vm1326
        %vm1391 = vmand %vm1359, %vm1327
        %vm1392 = vmand %vm1360, %vm1328
        %vm1393 = vmand %vm1361, %vm1329
        %vm1394 = vmand %vm1362, %vm1330
        %vm1395 = vmand %vm1363, %vm1331
        %vm1396 = vmand %vm1364, %vm1332
        %vm1397 = vmand %vm1365, %vm1333
        %vm1398 = vmand %vm1366, %vm1334
        %vm1399 = vmand %vm1367, %vm1335
        %vm1400 = vmand %vm1368, %vm1336
        %vm1401 = vmand %vm1369, %vm1337
        %vm1402 = vmand %vm1370, %vm1338
        %vm1403 = vmand %vm1371, %vm1339
        %vm1404 = vmand %vm1372, %vm1340
        %vm1405 = vmand %vm1373, %vm1341
        %vm1406 = vmand %vm1374, %vm1342
        %vm1407 = vmand %vm1375, %vm1343
        %vm1408 = vmand %vm1376, %vm1344
        %vm1409 = vmand %vm1377, %vm1345
        %vm1410 = vmand %vm1378, %vm1346
        %vm1411 = vmand %vm1379, %vm1347
        %vm1412 = vmand %vm1380, %vm1348
        %v1413 = vadd.s32 %v1099, 16
        %v1414 = vadd.s32 %v1106, 16
        %v1415 = vadd.s32 %v1113, 16
        %v1416 = vadd.s32 %v1120, 16
        %v1417 = vadd.s32 %v1127, 16
        %v1418 = vadd.s32 %v1134, 16
        %v1419 = vadd.s32 %v1141, 16
        %v1420 = vadd.s32 %v1148, 16
        %v1421 = vadd.s32 %v1155, 16
        %v1422 = vadd.s32 %v1162, 16
        %v1423 = vadd.s32 %v1169, 16
        %v1424 = vadd.s32 %v1176, 16
        %v1425 = vadd.s32 %v1183, 16
        %v1426 = vadd.s32 %v1190, 16
        %v1427 = vadd.s32 %v1197, 16
        %v1428 = vadd.s32 %v1204, 16
        %v1429 = vadd.s32 %v1211, 16
        %v1430 = vadd.s32 %v1218, 16
        %v1431 = vadd.s32 %v1225, 16
        %v1432 = vadd.s32 %v1232, 16
        %v1433 = vadd.s32 %v1239, 16
        %v1434 = vadd.s32 %v1246, 16
        %v1435 = vadd.s32 %v1253, 16
        %v1436 = vadd.s32 %v1260, 16
        %v1437 = vadd.s32 %v1267, 16
        %v1438 = vadd.s32 %v1274, 16
        %v1439 = vadd.s32 %v1281, 16
        %v1440 = vadd.s32 %v1288, 16
        %v1441 = vadd.s32 %v1295, 16
        %v1442 = vadd.s32 %v1302, 16
        %v1443 = vadd.s32 %v1309, 16
        %v1444 = vadd.s32 %v1316, 16
        %v1445 = vsel %vm1381, %v1413, %v1099
        %v1446 = vsel %vm1382, %v1414, %v1106
        %v1447 = vsel %vm1383, %v1415, %v1113
        %v1448 = vsel %vm1384, %v1416, %v1120
        %v1449 = vsel %vm1385, %v1417, %v1127
        %v1450 = vsel %vm1386, %v1418, %v1134
        %v1451 = vsel %vm1387, %v1419, %v1141
        %v1452 = vsel %vm1388, %v1420, %v1148
        %v1453 = vsel %vm1389, %v1421, %v1155
        %v1454 = vsel %vm1390, %v1422, %v1162
        %v1455 = vsel %vm1391, %v1423, %v1169
        %v1456 = vsel %vm1392, %v1424, %v1176
        %v1457 = vsel %vm1393, %v1425, %v1183
        %v1458 = vsel %vm1394, %v1426, %v1190
        %v1459 = vsel %vm1395, %v1427, %v1197
        %v1460 = vsel %vm1396, %v1428, %v1204
        %v1461 = vsel %vm1397, %v1429, %v1211
        %v1462 = vsel %vm1398, %v1430, %v1218
        %v1463 = vsel %vm1399, %v1431, %v1225
        %v1464 = vsel %vm1400, %v1432, %v1232
        %v1465 = vsel %vm1401, %v1433, %v1239
        %v1466 = vsel %vm1402, %v1434, %v1246
        %v1467 = vsel %vm1403, %v1435, %v1253
        %v1468 = vsel %vm1404, %v1436, %v1260
        %v1469 = vsel %vm1405, %v1437, %v1267
        %v1470 = vsel %vm1406, %v1438, %v1274
        %v1471 = vsel %vm1407, %v1439, %v1281
        %v1472 = vsel %vm1408, %v1440, %v1288
        %v1473 = vsel %vm1409, %v1441, %v1295
        %v1474 = vsel %vm1410, %v1442, %v1302
        %v1475 = vsel %vm1411, %v1443, %v1309
        %v1476 = vsel %vm1412, %v1444, %v1316
        %vm1477 = vcmp.ge.s32.totalorder %v1061, 16
        %vm1478 = vcmp.ge.s32.totalorder %v1062, 16
        %vm1479 = vcmp.ge.s32.totalorder %v1063, 16
        %vm1480 = vcmp.ge.s32.totalorder %v1064, 16
        %vm1481 = vcmp.ge.s32.totalorder %v1065, 16
        %vm1482 = vcmp.ge.s32.totalorder %v1066, 16
        %vm1483 = vcmp.ge.s32.totalorder %v1067, 16
        %vm1484 = vcmp.ge.s32.totalorder %v1068, 16
        %vm1485 = vcmp.ge.s32.totalorder %v1069, 16
        %vm1486 = vcmp.ge.s32.totalorder %v1070, 16
        %vm1487 = vcmp.ge.s32.totalorder %v1071, 16
        %vm1488 = vcmp.ge.s32.totalorder %v1072, 16
        %vm1489 = vcmp.ge.s32.totalorder %v1073, 16
        %vm1490 = vcmp.ge.s32.totalorder %v1074, 16
        %vm1491 = vcmp.ge.s32.totalorder %v1075, 16
        %vm1492 = vcmp.ge.s32.totalorder %v1076, 16
        %vm1493 = vcmp.ge.s32.totalorder %v1077, 16
        %vm1494 = vcmp.ge.s32.totalorder %v1078, 16
        %vm1495 = vcmp.ge.s32.totalorder %v1079, 16
        %vm1496 = vcmp.ge.s32.totalorder %v1080, 16
        %vm1497 = vcmp.ge.s32.totalorder %v1081, 16
        %vm1498 = vcmp.ge.s32.totalorder %v1082, 16
        %vm1499 = vcmp.ge.s32.totalorder %v1083, 16
        %vm1500 = vcmp.ge.s32.totalorder %v1084, 16
        %vm1501 = vcmp.ge.s32.totalorder %v1085, 16
        %vm1502 = vcmp.ge.s32.totalorder %v1086, 16
        %vm1503 = vcmp.ge.s32.totalorder %v1087, 16
        %vm1504 = vcmp.ge.s32.totalorder %v1088, 16
        %vm1505 = vcmp.ge.s32.totalorder %v1089, 16
        %vm1506 = vcmp.ge.s32.totalorder %v1090, 16
        %vm1507 = vcmp.ge.s32.totalorder %v1091, 16
        %vm1508 = vcmp.ge.s32.totalorder %v1092, 16
        %v1509 = vsel %vm1477, 1, 0
        %v1510 = vsel %vm1478, 1, 0
        %v1511 = vsel %vm1479, 1, 0
        %v1512 = vsel %vm1480, 1, 0
        %v1513 = vsel %vm1481, 1, 0
        %v1514 = vsel %vm1482, 1, 0
        %v1515 = vsel %vm1483, 1, 0
        %v1516 = vsel %vm1484, 1, 0
        %v1517 = vsel %vm1485, 1, 0
        %v1518 = vsel %vm1486, 1, 0
        %v1519 = vsel %vm1487, 1, 0
        %v1520 = vsel %vm1488, 1, 0
        %v1521 = vsel %vm1489, 1, 0
        %v1522 = vsel %vm1490, 1, 0
        %v1523 = vsel %vm1491, 1, 0
        %v1524 = vsel %vm1492, 1, 0
        %v1525 = vsel %vm1493, 1, 0
        %v1526 = vsel %vm1494, 1, 0
        %v1527 = vsel %vm1495, 1, 0
        %v1528 = vsel %vm1496, 1, 0
        %v1529 = vsel %vm1497, 1, 0
        %v1530 = vsel %vm1498, 1, 0
        %v1531 = vsel %vm1499, 1, 0
        %v1532 = vsel %vm1500, 1, 0
        %v1533 = vsel %vm1501, 1, 0
        %v1534 = vsel %vm1502, 1, 0
        %v1535 = vsel %vm1503, 1, 0
        %v1536 = vsel %vm1504, 1, 0
        %v1537 = vsel %vm1505, 1, 0
        %v1538 = vsel %vm1506, 1, 0
        %v1539 = vsel %vm1507, 1, 0
        %v1540 = vsel %vm1508, 1, 0
        %vm1541 = vcmp.eq.s32.totalorder %v1509, 1
        %vm1542 = vcmp.eq.s32.totalorder %v1510, 1
        %vm1543 = vcmp.eq.s32.totalorder %v1511, 1
        %vm1544 = vcmp.eq.s32.totalorder %v1512, 1
        %vm1545 = vcmp.eq.s32.totalorder %v1513, 1
        %vm1546 = vcmp.eq.s32.totalorder %v1514, 1
        %vm1547 = vcmp.eq.s32.totalorder %v1515, 1
        %vm1548 = vcmp.eq.s32.totalorder %v1516, 1
        %vm1549 = vcmp.eq.s32.totalorder %v1517, 1
        %vm1550 = vcmp.eq.s32.totalorder %v1518, 1
        %vm1551 = vcmp.eq.s32.totalorder %v1519, 1
        %vm1552 = vcmp.eq.s32.totalorder %v1520, 1
        %vm1553 = vcmp.eq.s32.totalorder %v1521, 1
        %vm1554 = vcmp.eq.s32.totalorder %v1522, 1
        %vm1555 = vcmp.eq.s32.totalorder %v1523, 1
        %vm1556 = vcmp.eq.s32.totalorder %v1524, 1
        %vm1557 = vcmp.eq.s32.totalorder %v1525, 1
        %vm1558 = vcmp.eq.s32.totalorder %v1526, 1
        %vm1559 = vcmp.eq.s32.totalorder %v1527, 1
        %vm1560 = vcmp.eq.s32.totalorder %v1528, 1
        %vm1561 = vcmp.eq.s32.totalorder %v1529, 1
        %vm1562 = vcmp.eq.s32.totalorder %v1530, 1
        %vm1563 = vcmp.eq.s32.totalorder %v1531, 1
        %vm1564 = vcmp.eq.s32.totalorder %v1532, 1
        %vm1565 = vcmp.eq.s32.totalorder %v1533, 1
        %vm1566 = vcmp.eq.s32.totalorder %v1534, 1
        %vm1567 = vcmp.eq.s32.totalorder %v1535, 1
        %vm1568 = vcmp.eq.s32.totalorder %v1536, 1
        %vm1569 = vcmp.eq.s32.totalorder %v1537, 1
        %vm1570 = vcmp.eq.s32.totalorder %v1538, 1
        %vm1571 = vcmp.eq.s32.totalorder %v1539, 1
        %vm1572 = vcmp.eq.s32.totalorder %v1540, 1
        %v1573 = vsel %vm1541, %v1058, 0.0
        %v1574 = vsel %vm1542, %v1059, 0.0
        %v1575 = vsel %vm1543, %v1028, 0.0
        %v1576 = vsel %vm1544, %v1029, 0.0
        %v1577 = vsel %vm1545, %v1030, 0.0
        %v1578 = vsel %vm1546, %v1031, 0.0
        %v1579 = vsel %vm1547, %v1032, 0.0
        %v1580 = vsel %vm1548, %v1033, 0.0
        %v1581 = vsel %vm1549, %v1034, 0.0
        %v1582 = vsel %vm1550, %v1035, 0.0
        %v1583 = vsel %vm1551, %v1036, 0.0
        %v1584 = vsel %vm1552, %v1037, 0.0
        %v1585 = vsel %vm1553, %v1038, 0.0
        %v1586 = vsel %vm1554, %v1039, 0.0
        %v1587 = vsel %vm1555, %v1040, 0.0
        %v1588 = vsel %vm1556, %v1041, 0.0
        %v1589 = vsel %vm1557, %v1042, 0.0
        %v1590 = vsel %vm1558, %v1043, 0.0
        %v1591 = vsel %vm1559, %v1044, 0.0
        %v1592 = vsel %vm1560, %v1045, 0.0
        %v1593 = vsel %vm1561, %v1046, 0.0
        %v1594 = vsel %vm1562, %v1047, 0.0
        %v1595 = vsel %vm1563, %v1048, 0.0
        %v1596 = vsel %vm1564, %v1049, 0.0
        %v1597 = vsel %vm1565, %v1050, 0.0
        %v1598 = vsel %vm1566, %v1051, 0.0
        %v1599 = vsel %vm1567, %v1052, 0.0
        %v1600 = vsel %vm1568, %v1053, 0.0
        %v1601 = vsel %vm1569, %v1054, 0.0
        %v1602 = vsel %vm1570, %v1055, 0.0
        %v1603 = vsel %vm1571, %v1056, 0.0
        %v1604 = vsel %vm1572, %v1057, 0.0
        %vm1605 = vcmp.lt.s32.totalorder %v1061, 240
        %vm1606 = vcmp.lt.s32.totalorder %v1062, 240
        %vm1607 = vcmp.lt.s32.totalorder %v1063, 240
        %vm1608 = vcmp.lt.s32.totalorder %v1064, 240
        %vm1609 = vcmp.lt.s32.totalorder %v1065, 240
        %vm1610 = vcmp.lt.s32.totalorder %v1066, 240
        %vm1611 = vcmp.lt.s32.totalorder %v1067, 240
        %vm1612 = vcmp.lt.s32.totalorder %v1068, 240
        %vm1613 = vcmp.lt.s32.totalorder %v1069, 240
        %vm1614 = vcmp.lt.s32.totalorder %v1070, 240
        %vm1615 = vcmp.lt.s32.totalorder %v1071, 240
        %vm1616 = vcmp.lt.s32.totalorder %v1072, 240
        %vm1617 = vcmp.lt.s32.totalorder %v1073, 240
        %vm1618 = vcmp.lt.s32.totalorder %v1074, 240
        %vm1619 = vcmp.lt.s32.totalorder %v1075, 240
        %vm1620 = vcmp.lt.s32.totalorder %v1076, 240
        %vm1621 = vcmp.lt.s32.totalorder %v1077, 240
        %vm1622 = vcmp.lt.s32.totalorder %v1078, 240
        %vm1623 = vcmp.lt.s32.totalorder %v1079, 240
        %vm1624 = vcmp.lt.s32.totalorder %v1080, 240
        %vm1625 = vcmp.lt.s32.totalorder %v1081, 240
        %vm1626 = vcmp.lt.s32.totalorder %v1082, 240
        %vm1627 = vcmp.lt.s32.totalorder %v1083, 240
        %vm1628 = vcmp.lt.s32.totalorder %v1084, 240
        %vm1629 = vcmp.lt.s32.totalorder %v1085, 240
        %vm1630 = vcmp.lt.s32.totalorder %v1086, 240
        %vm1631 = vcmp.lt.s32.totalorder %v1087, 240
        %vm1632 = vcmp.lt.s32.totalorder %v1088, 240
        %vm1633 = vcmp.lt.s32.totalorder %v1089, 240
        %vm1634 = vcmp.lt.s32.totalorder %v1090, 240
        %vm1635 = vcmp.lt.s32.totalorder %v1091, 240
        %vm1636 = vcmp.lt.s32.totalorder %v1092, 240
        %v1637 = vsel %vm1605, 1, 0
        %v1638 = vsel %vm1606, 1, 0
        %v1639 = vsel %vm1607, 1, 0
        %v1640 = vsel %vm1608, 1, 0
        %v1641 = vsel %vm1609, 1, 0
        %v1642 = vsel %vm1610, 1, 0
        %v1643 = vsel %vm1611, 1, 0
        %v1644 = vsel %vm1612, 1, 0
        %v1645 = vsel %vm1613, 1, 0
        %v1646 = vsel %vm1614, 1, 0
        %v1647 = vsel %vm1615, 1, 0
        %v1648 = vsel %vm1616, 1, 0
        %v1649 = vsel %vm1617, 1, 0
        %v1650 = vsel %vm1618, 1, 0
        %v1651 = vsel %vm1619, 1, 0
        %v1652 = vsel %vm1620, 1, 0
        %v1653 = vsel %vm1621, 1, 0
        %v1654 = vsel %vm1622, 1, 0
        %v1655 = vsel %vm1623, 1, 0
        %v1656 = vsel %vm1624, 1, 0
        %v1657 = vsel %vm1625, 1, 0
        %v1658 = vsel %vm1626, 1, 0
        %v1659 = vsel %vm1627, 1, 0
        %v1660 = vsel %vm1628, 1, 0
        %v1661 = vsel %vm1629, 1, 0
        %v1662 = vsel %vm1630, 1, 0
        %v1663 = vsel %vm1631, 1, 0
        %v1664 = vsel %vm1632, 1, 0
        %v1665 = vsel %vm1633, 1, 0
        %v1666 = vsel %vm1634, 1, 0
        %v1667 = vsel %vm1635, 1, 0
        %v1668 = vsel %vm1636, 1, 0
        %vm1669 = vcmp.eq.s32.totalorder %v1637, 1
        %vm1670 = vcmp.eq.s32.totalorder %v1638, 1
        %vm1671 = vcmp.eq.s32.totalorder %v1639, 1
        %vm1672 = vcmp.eq.s32.totalorder %v1640, 1
        %vm1673 = vcmp.eq.s32.totalorder %v1641, 1
        %vm1674 = vcmp.eq.s32.totalorder %v1642, 1
        %vm1675 = vcmp.eq.s32.totalorder %v1643, 1
        %vm1676 = vcmp.eq.s32.totalorder %v1644, 1
        %vm1677 = vcmp.eq.s32.totalorder %v1645, 1
        %vm1678 = vcmp.eq.s32.totalorder %v1646, 1
        %vm1679 = vcmp.eq.s32.totalorder %v1647, 1
        %vm1680 = vcmp.eq.s32.totalorder %v1648, 1
        %vm1681 = vcmp.eq.s32.totalorder %v1649, 1
        %vm1682 = vcmp.eq.s32.totalorder %v1650, 1
        %vm1683 = vcmp.eq.s32.totalorder %v1651, 1
        %vm1684 = vcmp.eq.s32.totalorder %v1652, 1
        %vm1685 = vcmp.eq.s32.totalorder %v1653, 1
        %vm1686 = vcmp.eq.s32.totalorder %v1654, 1
        %vm1687 = vcmp.eq.s32.totalorder %v1655, 1
        %vm1688 = vcmp.eq.s32.totalorder %v1656, 1
        %vm1689 = vcmp.eq.s32.totalorder %v1657, 1
        %vm1690 = vcmp.eq.s32.totalorder %v1658, 1
        %vm1691 = vcmp.eq.s32.totalorder %v1659, 1
        %vm1692 = vcmp.eq.s32.totalorder %v1660, 1
        %vm1693 = vcmp.eq.s32.totalorder %v1661, 1
        %vm1694 = vcmp.eq.s32.totalorder %v1662, 1
        %vm1695 = vcmp.eq.s32.totalorder %v1663, 1
        %vm1696 = vcmp.eq.s32.totalorder %v1664, 1
        %vm1697 = vcmp.eq.s32.totalorder %v1665, 1
        %vm1698 = vcmp.eq.s32.totalorder %v1666, 1
        %vm1699 = vcmp.eq.s32.totalorder %v1667, 1
        %vm1700 = vcmp.eq.s32.totalorder %v1668, 1
        %v1701 = vsel %vm1669, %v1030, 0.0
        %v1702 = vsel %vm1670, %v1031, 0.0
        %v1703 = vsel %vm1671, %v1032, 0.0
        %v1704 = vsel %vm1672, %v1033, 0.0
        %v1705 = vsel %vm1673, %v1034, 0.0
        %v1706 = vsel %vm1674, %v1035, 0.0
        %v1707 = vsel %vm1675, %v1036, 0.0
        %v1708 = vsel %vm1676, %v1037, 0.0
        %v1709 = vsel %vm1677, %v1038, 0.0
        %v1710 = vsel %vm1678, %v1039, 0.0
        %v1711 = vsel %vm1679, %v1040, 0.0
        %v1712 = vsel %vm1680, %v1041, 0.0
        %v1713 = vsel %vm1681, %v1042, 0.0
        %v1714 = vsel %vm1682, %v1043, 0.0
        %v1715 = vsel %vm1683, %v1044, 0.0
        %v1716 = vsel %vm1684, %v1045, 0.0
        %v1717 = vsel %vm1685, %v1046, 0.0
        %v1718 = vsel %vm1686, %v1047, 0.0
        %v1719 = vsel %vm1687, %v1048, 0.0
        %v1720 = vsel %vm1688, %v1049, 0.0
        %v1721 = vsel %vm1689, %v1050, 0.0
        %v1722 = vsel %vm1690, %v1051, 0.0
        %v1723 = vsel %vm1691, %v1052, 0.0
        %v1724 = vsel %vm1692, %v1053, 0.0
        %v1725 = vsel %vm1693, %v1054, 0.0
        %v1726 = vsel %vm1694, %v1055, 0.0
        %v1727 = vsel %vm1695, %v1056, 0.0
        %v1728 = vsel %vm1696, %v1057, 0.0
        %v1729 = vsel %vm1697, %v1058, 0.0
        %v1730 = vsel %vm1698, %v1059, 0.0
        %v1731 = vsel %vm1699, %v1028, 0.0
        %v1732 = vsel %vm1700, %v1029, 0.0
        %v1733 = vld [vmem:[%s7] sm:$0x1]
        %v1735 = vlaneseq
        %v1736 = vshrl.u32 %v1735, 7
        %v1737 = vsub.s32 0, %v1736
        %v1738 = vrot.slane %v1733, %v1737
        %v1740 = vmul.f32 %v1738, %v1573
        %v1741 = vmul.f32 %v1738, %v1574
        %v1742 = vmul.f32 %v1738, %v1575
        %v1743 = vmul.f32 %v1738, %v1576
        %v1744 = vmul.f32 %v1738, %v1577
        %v1745 = vmul.f32 %v1738, %v1578
        %v1746 = vmul.f32 %v1738, %v1579
        %v1747 = vmul.f32 %v1738, %v1580
        %v1748 = vmul.f32 %v1738, %v1581
        %v1749 = vmul.f32 %v1738, %v1582
        %v1750 = vmul.f32 %v1738, %v1583
        %v1751 = vmul.f32 %v1738, %v1584
        %v1752 = vmul.f32 %v1738, %v1585
        %v1753 = vmul.f32 %v1738, %v1586
        %v1754 = vmul.f32 %v1738, %v1587
        %v1755 = vmul.f32 %v1738, %v1588
        %v1756 = vmul.f32 %v1738, %v1589
        %v1757 = vmul.f32 %v1738, %v1590
        %v1758 = vmul.f32 %v1738, %v1591
        %v1759 = vmul.f32 %v1738, %v1592
        %v1760 = vmul.f32 %v1738, %v1593
        %v1761 = vmul.f32 %v1738, %v1594
        %v1762 = vmul.f32 %v1738, %v1595
        %v1763 = vmul.f32 %v1738, %v1596
        %v1764 = vmul.f32 %v1738, %v1597
        %v1765 = vmul.f32 %v1738, %v1598
        %v1766 = vmul.f32 %v1738, %v1599
        %v1767 = vmul.f32 %v1738, %v1600
        %v1768 = vmul.f32 %v1738, %v1601
        %v1769 = vmul.f32 %v1738, %v1602
        %v1770 = vmul.f32 %v1738, %v1603
        %v1771 = vmul.f32 %v1738, %v1604
        %v1772 = vld [vmem:[%s8] sm:$0x1]
        %v1774 = vlaneseq
        %v1775 = vshrl.u32 %v1774, 7
        %v1776 = vsub.s32 0, %v1775
        %v1777 = vrot.slane %v1772, %v1776
        %v1779 = vmul.f32 %v1777, %v1028
        %v1780 = vmul.f32 %v1777, %v1029
        %v1781 = vmul.f32 %v1777, %v1030
        %v1782 = vmul.f32 %v1777, %v1031
        %v1783 = vmul.f32 %v1777, %v1032
        %v1784 = vmul.f32 %v1777, %v1033
        %v1785 = vmul.f32 %v1777, %v1034
        %v1786 = vmul.f32 %v1777, %v1035
        %v1787 = vmul.f32 %v1777, %v1036
        %v1788 = vmul.f32 %v1777, %v1037
        %v1789 = vmul.f32 %v1777, %v1038
        %v1790 = vmul.f32 %v1777, %v1039
        %v1791 = vmul.f32 %v1777, %v1040
        %v1792 = vmul.f32 %v1777, %v1041
        %v1793 = vmul.f32 %v1777, %v1042
        %v1794 = vmul.f32 %v1777, %v1043
        %v1795 = vmul.f32 %v1777, %v1044
        %v1796 = vmul.f32 %v1777, %v1045
        %v1797 = vmul.f32 %v1777, %v1046
        %v1798 = vmul.f32 %v1777, %v1047
        %v1799 = vmul.f32 %v1777, %v1048
        %v1800 = vmul.f32 %v1777, %v1049
        %v1801 = vmul.f32 %v1777, %v1050
        %v1802 = vmul.f32 %v1777, %v1051
        %v1803 = vmul.f32 %v1777, %v1052
        %v1804 = vmul.f32 %v1777, %v1053
        %v1805 = vmul.f32 %v1777, %v1054
        %v1806 = vmul.f32 %v1777, %v1055
        %v1807 = vmul.f32 %v1777, %v1056
        %v1808 = vmul.f32 %v1777, %v1057
        %v1809 = vmul.f32 %v1777, %v1058
        %v1810 = vmul.f32 %v1777, %v1059
        %v1811 = vadd.f32 %v1740, %v1779
        %v1812 = vadd.f32 %v1741, %v1780
        %v1813 = vadd.f32 %v1742, %v1781
        %v1814 = vadd.f32 %v1743, %v1782
        %v1815 = vadd.f32 %v1744, %v1783
        %v1816 = vadd.f32 %v1745, %v1784
        %v1817 = vadd.f32 %v1746, %v1785
        %v1818 = vadd.f32 %v1747, %v1786
        %v1819 = vadd.f32 %v1748, %v1787
        %v1820 = vadd.f32 %v1749, %v1788
        %v1821 = vadd.f32 %v1750, %v1789
        %v1822 = vadd.f32 %v1751, %v1790
        %v1823 = vadd.f32 %v1752, %v1791
        %v1824 = vadd.f32 %v1753, %v1792
        %v1825 = vadd.f32 %v1754, %v1793
        %v1826 = vadd.f32 %v1755, %v1794
        %v1827 = vadd.f32 %v1756, %v1795
        %v1828 = vadd.f32 %v1757, %v1796
        %v1829 = vadd.f32 %v1758, %v1797
        %v1830 = vadd.f32 %v1759, %v1798
        %v1831 = vadd.f32 %v1760, %v1799
        %v1832 = vadd.f32 %v1761, %v1800
        %v1833 = vadd.f32 %v1762, %v1801
        %v1834 = vadd.f32 %v1763, %v1802
        %v1835 = vadd.f32 %v1764, %v1803
        %v1836 = vadd.f32 %v1765, %v1804
        %v1837 = vadd.f32 %v1766, %v1805
        %v1838 = vadd.f32 %v1767, %v1806
        %v1839 = vadd.f32 %v1768, %v1807
        %v1840 = vadd.f32 %v1769, %v1808
        %v1841 = vadd.f32 %v1770, %v1809
        %v1842 = vadd.f32 %v1771, %v1810
        %v1843 = vld [vmem:[%s9] sm:$0x1]
        %v1845 = vlaneseq
        %v1846 = vshrl.u32 %v1845, 7
        %v1847 = vsub.s32 0, %v1846
        %v1848 = vrot.slane %v1843, %v1847
        %v1850 = vmul.f32 %v1848, %v1701
        %v1851 = vmul.f32 %v1848, %v1702
        %v1852 = vmul.f32 %v1848, %v1703
        %v1853 = vmul.f32 %v1848, %v1704
        %v1854 = vmul.f32 %v1848, %v1705
        %v1855 = vmul.f32 %v1848, %v1706
        %v1856 = vmul.f32 %v1848, %v1707
        %v1857 = vmul.f32 %v1848, %v1708
        %v1858 = vmul.f32 %v1848, %v1709
        %v1859 = vmul.f32 %v1848, %v1710
        %v1860 = vmul.f32 %v1848, %v1711
        %v1861 = vmul.f32 %v1848, %v1712
        %v1862 = vmul.f32 %v1848, %v1713
        %v1863 = vmul.f32 %v1848, %v1714
        %v1864 = vmul.f32 %v1848, %v1715
        %v1865 = vmul.f32 %v1848, %v1716
        %v1866 = vmul.f32 %v1848, %v1717
        %v1867 = vmul.f32 %v1848, %v1718
        %v1868 = vmul.f32 %v1848, %v1719
        %v1869 = vmul.f32 %v1848, %v1720
        %v1870 = vmul.f32 %v1848, %v1721
        %v1871 = vmul.f32 %v1848, %v1722
        %v1872 = vmul.f32 %v1848, %v1723
        %v1873 = vmul.f32 %v1848, %v1724
        %v1874 = vmul.f32 %v1848, %v1725
        %v1875 = vmul.f32 %v1848, %v1726
        %v1876 = vmul.f32 %v1848, %v1727
        %v1877 = vmul.f32 %v1848, %v1728
        %v1878 = vmul.f32 %v1848, %v1729
        %v1879 = vmul.f32 %v1848, %v1730
        %v1880 = vmul.f32 %v1848, %v1731
        %v1881 = vmul.f32 %v1848, %v1732
        %v1882 = vadd.f32 %v1811, %v1850
        %v1883 = vadd.f32 %v1812, %v1851
        %v1884 = vadd.f32 %v1813, %v1852
        %v1885 = vadd.f32 %v1814, %v1853
        %v1886 = vadd.f32 %v1815, %v1854
        %v1887 = vadd.f32 %v1816, %v1855
        %v1888 = vadd.f32 %v1817, %v1856
        %v1889 = vadd.f32 %v1818, %v1857
        %v1890 = vadd.f32 %v1819, %v1858
        %v1891 = vadd.f32 %v1820, %v1859
        %v1892 = vadd.f32 %v1821, %v1860
        %v1893 = vadd.f32 %v1822, %v1861
        %v1894 = vadd.f32 %v1823, %v1862
        %v1895 = vadd.f32 %v1824, %v1863
        %v1896 = vadd.f32 %v1825, %v1864
        %v1897 = vadd.f32 %v1826, %v1865
        %v1898 = vadd.f32 %v1827, %v1866
        %v1899 = vadd.f32 %v1828, %v1867
        %v1900 = vadd.f32 %v1829, %v1868
        %v1901 = vadd.f32 %v1830, %v1869
        %v1902 = vadd.f32 %v1831, %v1870
        %v1903 = vadd.f32 %v1832, %v1871
        %v1904 = vadd.f32 %v1833, %v1872
        %v1905 = vadd.f32 %v1834, %v1873
        %v1906 = vadd.f32 %v1835, %v1874
        %v1907 = vadd.f32 %v1836, %v1875
        %v1908 = vadd.f32 %v1837, %v1876
        %v1909 = vadd.f32 %v1838, %v1877
        %v1910 = vadd.f32 %v1839, %v1878
        %v1911 = vadd.f32 %v1840, %v1879
        %v1912 = vadd.f32 %v1841, %v1880
        %v1913 = vadd.f32 %v1842, %v1881
        %vm1914 = vcmp.gt.s32.totalorder %v1445, 0
        %vm1915 = vcmp.gt.s32.totalorder %v1446, 0
        %vm1916 = vcmp.gt.s32.totalorder %v1447, 0
        %vm1917 = vcmp.gt.s32.totalorder %v1448, 0
        %vm1918 = vcmp.gt.s32.totalorder %v1449, 0
        %vm1919 = vcmp.gt.s32.totalorder %v1450, 0
        %vm1920 = vcmp.gt.s32.totalorder %v1451, 0
        %vm1921 = vcmp.gt.s32.totalorder %v1452, 0
        %vm1922 = vcmp.gt.s32.totalorder %v1453, 0
        %vm1923 = vcmp.gt.s32.totalorder %v1454, 0
        %vm1924 = vcmp.gt.s32.totalorder %v1455, 0
        %vm1925 = vcmp.gt.s32.totalorder %v1456, 0
        %vm1926 = vcmp.gt.s32.totalorder %v1457, 0
        %vm1927 = vcmp.gt.s32.totalorder %v1458, 0
        %vm1928 = vcmp.gt.s32.totalorder %v1459, 0
        %vm1929 = vcmp.gt.s32.totalorder %v1460, 0
        %vm1930 = vcmp.gt.s32.totalorder %v1461, 0
        %vm1931 = vcmp.gt.s32.totalorder %v1462, 0
        %vm1932 = vcmp.gt.s32.totalorder %v1463, 0
        %vm1933 = vcmp.gt.s32.totalorder %v1464, 0
        %vm1934 = vcmp.gt.s32.totalorder %v1465, 0
        %vm1935 = vcmp.gt.s32.totalorder %v1466, 0
        %vm1936 = vcmp.gt.s32.totalorder %v1467, 0
        %vm1937 = vcmp.gt.s32.totalorder %v1468, 0
        %vm1938 = vcmp.gt.s32.totalorder %v1469, 0
        %vm1939 = vcmp.gt.s32.totalorder %v1470, 0
        %vm1940 = vcmp.gt.s32.totalorder %v1471, 0
        %vm1941 = vcmp.gt.s32.totalorder %v1472, 0
        %vm1942 = vcmp.gt.s32.totalorder %v1473, 0
        %vm1943 = vcmp.gt.s32.totalorder %v1474, 0
        %vm1944 = vcmp.gt.s32.totalorder %v1475, 0
        %vm1945 = vcmp.gt.s32.totalorder %v1476, 0
        %v1946 = vrot.slane %v1882, 7
        %v1947 = vrot.slane %v1883, 7
        %v1948 = vrot.slane %v1884, 7
        %v1949 = vrot.slane %v1885, 7
        %v1950 = vrot.slane %v1886, 7
        %v1951 = vrot.slane %v1887, 7
        %v1952 = vrot.slane %v1888, 7
        %v1953 = vrot.slane %v1889, 7
        %v1954 = vrot.slane %v1890, 7
        %v1955 = vrot.slane %v1891, 7
        %v1956 = vrot.slane %v1892, 7
        %v1957 = vrot.slane %v1893, 7
        %v1958 = vrot.slane %v1894, 7
        %v1959 = vrot.slane %v1895, 7
        %v1960 = vrot.slane %v1896, 7
        %v1961 = vrot.slane %v1897, 7
        %v1962 = vrot.slane %v1898, 7
        %v1963 = vrot.slane %v1899, 7
        %v1964 = vrot.slane %v1900, 7
        %v1965 = vrot.slane %v1901, 7
        %v1966 = vrot.slane %v1902, 7
        %v1967 = vrot.slane %v1903, 7
        %v1968 = vrot.slane %v1904, 7
        %v1969 = vrot.slane %v1905, 7
        %v1970 = vrot.slane %v1906, 7
        %v1971 = vrot.slane %v1907, 7
        %v1972 = vrot.slane %v1908, 7
        %v1973 = vrot.slane %v1909, 7
        %v1974 = vrot.slane %v1910, 7
        %v1975 = vrot.slane %v1911, 7
        %v1976 = vrot.slane %v1912, 7
        %v1977 = vrot.slane %v1913, 7
        %vm1978 = vcmp.lt.s32.totalorder %v1061, 1
        %v1979 = vsel %vm1978, %v1976, %v1977
        %v1980 = vsel %vm1978, %v1975, %v1976
        %v1981 = vsel %vm1978, %v1974, %v1975
        %v1982 = vsel %vm1978, %v1973, %v1974
        %v1983 = vsel %vm1978, %v1972, %v1973
        %v1984 = vsel %vm1978, %v1971, %v1972
        %v1985 = vsel %vm1978, %v1970, %v1971
        %v1986 = vsel %vm1978, %v1969, %v1970
        %v1987 = vsel %vm1978, %v1968, %v1969
        %v1988 = vsel %vm1978, %v1967, %v1968
        %v1989 = vsel %vm1978, %v1966, %v1967
        %v1990 = vsel %vm1978, %v1965, %v1966
        %v1991 = vsel %vm1978, %v1964, %v1965
        %v1992 = vsel %vm1978, %v1963, %v1964
        %v1993 = vsel %vm1978, %v1962, %v1963
        %v1994 = vsel %vm1978, %v1961, %v1962
        %v1995 = vsel %vm1978, %v1960, %v1961
        %v1996 = vsel %vm1978, %v1959, %v1960
        %v1997 = vsel %vm1978, %v1958, %v1959
        %v1998 = vsel %vm1978, %v1957, %v1958
        %v1999 = vsel %vm1978, %v1956, %v1957
        %v2000 = vsel %vm1978, %v1955, %v1956
        %v2001 = vsel %vm1978, %v1954, %v1955
        %v2002 = vsel %vm1978, %v1953, %v1954
        %v2003 = vsel %vm1978, %v1952, %v1953
        %v2004 = vsel %vm1978, %v1951, %v1952
        %v2005 = vsel %vm1978, %v1950, %v1951
        %v2006 = vsel %vm1978, %v1949, %v1950
        %v2007 = vsel %vm1978, %v1948, %v1949
        %v2008 = vsel %vm1978, %v1947, %v1948
        %v2009 = vsel %vm1978, %v1946, %v1947
        %v2010 = vsel %vm1978, %v1977, %v1946
        %v2011 = vsel %vm1914, 1, 0
        %v2012 = vsel %vm1915, 1, 0
        %v2013 = vsel %vm1916, 1, 0
        %v2014 = vsel %vm1917, 1, 0
        %v2015 = vsel %vm1918, 1, 0
        %v2016 = vsel %vm1919, 1, 0
        %v2017 = vsel %vm1920, 1, 0
        %v2018 = vsel %vm1921, 1, 0
        %v2019 = vsel %vm1922, 1, 0
        %v2020 = vsel %vm1923, 1, 0
        %v2021 = vsel %vm1924, 1, 0
        %v2022 = vsel %vm1925, 1, 0
        %v2023 = vsel %vm1926, 1, 0
        %v2024 = vsel %vm1927, 1, 0
        %v2025 = vsel %vm1928, 1, 0
        %v2026 = vsel %vm1929, 1, 0
        %v2027 = vsel %vm1930, 1, 0
        %v2028 = vsel %vm1931, 1, 0
        %v2029 = vsel %vm1932, 1, 0
        %v2030 = vsel %vm1933, 1, 0
        %v2031 = vsel %vm1934, 1, 0
        %v2032 = vsel %vm1935, 1, 0
        %v2033 = vsel %vm1936, 1, 0
        %v2034 = vsel %vm1937, 1, 0
        %v2035 = vsel %vm1938, 1, 0
        %v2036 = vsel %vm1939, 1, 0
        %v2037 = vsel %vm1940, 1, 0
        %v2038 = vsel %vm1941, 1, 0
        %v2039 = vsel %vm1942, 1, 0
        %v2040 = vsel %vm1943, 1, 0
        %v2041 = vsel %vm1944, 1, 0
        %v2042 = vsel %vm1945, 1, 0
        %vm2043 = vcmp.eq.s32.totalorder %v2011, 1
        %vm2044 = vcmp.eq.s32.totalorder %v2012, 1
        %vm2045 = vcmp.eq.s32.totalorder %v2013, 1
        %vm2046 = vcmp.eq.s32.totalorder %v2014, 1
        %vm2047 = vcmp.eq.s32.totalorder %v2015, 1
        %vm2048 = vcmp.eq.s32.totalorder %v2016, 1
        %vm2049 = vcmp.eq.s32.totalorder %v2017, 1
        %vm2050 = vcmp.eq.s32.totalorder %v2018, 1
        %vm2051 = vcmp.eq.s32.totalorder %v2019, 1
        %vm2052 = vcmp.eq.s32.totalorder %v2020, 1
        %vm2053 = vcmp.eq.s32.totalorder %v2021, 1
        %vm2054 = vcmp.eq.s32.totalorder %v2022, 1
        %vm2055 = vcmp.eq.s32.totalorder %v2023, 1
        %vm2056 = vcmp.eq.s32.totalorder %v2024, 1
        %vm2057 = vcmp.eq.s32.totalorder %v2025, 1
        %vm2058 = vcmp.eq.s32.totalorder %v2026, 1
        %vm2059 = vcmp.eq.s32.totalorder %v2027, 1
        %vm2060 = vcmp.eq.s32.totalorder %v2028, 1
        %vm2061 = vcmp.eq.s32.totalorder %v2029, 1
        %vm2062 = vcmp.eq.s32.totalorder %v2030, 1
        %vm2063 = vcmp.eq.s32.totalorder %v2031, 1
        %vm2064 = vcmp.eq.s32.totalorder %v2032, 1
        %vm2065 = vcmp.eq.s32.totalorder %v2033, 1
        %vm2066 = vcmp.eq.s32.totalorder %v2034, 1
        %vm2067 = vcmp.eq.s32.totalorder %v2035, 1
        %vm2068 = vcmp.eq.s32.totalorder %v2036, 1
        %vm2069 = vcmp.eq.s32.totalorder %v2037, 1
        %vm2070 = vcmp.eq.s32.totalorder %v2038, 1
        %vm2071 = vcmp.eq.s32.totalorder %v2039, 1
        %vm2072 = vcmp.eq.s32.totalorder %v2040, 1
        %vm2073 = vcmp.eq.s32.totalorder %v2041, 1
        %vm2074 = vcmp.eq.s32.totalorder %v2042, 1
        %v2075 = vsel %vm2043, %v2010, 0.0
        %v2076 = vsel %vm2044, %v2009, 0.0
        %v2077 = vsel %vm2045, %v2008, 0.0
        %v2078 = vsel %vm2046, %v2007, 0.0
        %v2079 = vsel %vm2047, %v2006, 0.0
        %v2080 = vsel %vm2048, %v2005, 0.0
        %v2081 = vsel %vm2049, %v2004, 0.0
        %v2082 = vsel %vm2050, %v2003, 0.0
        %v2083 = vsel %vm2051, %v2002, 0.0
        %v2084 = vsel %vm2052, %v2001, 0.0
        %v2085 = vsel %vm2053, %v2000, 0.0
        %v2086 = vsel %vm2054, %v1999, 0.0
        %v2087 = vsel %vm2055, %v1998, 0.0
        %v2088 = vsel %vm2056, %v1997, 0.0
        %v2089 = vsel %vm2057, %v1996, 0.0
        %v2090 = vsel %vm2058, %v1995, 0.0
        %v2091 = vsel %vm2059, %v1994, 0.0
        %v2092 = vsel %vm2060, %v1993, 0.0
        %v2093 = vsel %vm2061, %v1992, 0.0
        %v2094 = vsel %vm2062, %v1991, 0.0
        %v2095 = vsel %vm2063, %v1990, 0.0
        %v2096 = vsel %vm2064, %v1989, 0.0
        %v2097 = vsel %vm2065, %v1988, 0.0
        %v2098 = vsel %vm2066, %v1987, 0.0
        %v2099 = vsel %vm2067, %v1986, 0.0
        %v2100 = vsel %vm2068, %v1985, 0.0
        %v2101 = vsel %vm2069, %v1984, 0.0
        %v2102 = vsel %vm2070, %v1983, 0.0
        %v2103 = vsel %vm2071, %v1982, 0.0
        %v2104 = vsel %vm2072, %v1981, 0.0
        %v2105 = vsel %vm2073, %v1980, 0.0
        %v2106 = vsel %vm2074, %v1979, 0.0
        %vm2107 = vcmp.lt.s32.totalorder %v1445, 15
        %vm2108 = vcmp.lt.s32.totalorder %v1446, 15
        %vm2109 = vcmp.lt.s32.totalorder %v1447, 15
        %vm2110 = vcmp.lt.s32.totalorder %v1448, 15
        %vm2111 = vcmp.lt.s32.totalorder %v1449, 15
        %vm2112 = vcmp.lt.s32.totalorder %v1450, 15
        %vm2113 = vcmp.lt.s32.totalorder %v1451, 15
        %vm2114 = vcmp.lt.s32.totalorder %v1452, 15
        %vm2115 = vcmp.lt.s32.totalorder %v1453, 15
        %vm2116 = vcmp.lt.s32.totalorder %v1454, 15
        %vm2117 = vcmp.lt.s32.totalorder %v1455, 15
        %vm2118 = vcmp.lt.s32.totalorder %v1456, 15
        %vm2119 = vcmp.lt.s32.totalorder %v1457, 15
        %vm2120 = vcmp.lt.s32.totalorder %v1458, 15
        %vm2121 = vcmp.lt.s32.totalorder %v1459, 15
        %vm2122 = vcmp.lt.s32.totalorder %v1460, 15
        %vm2123 = vcmp.lt.s32.totalorder %v1461, 15
        %vm2124 = vcmp.lt.s32.totalorder %v1462, 15
        %vm2125 = vcmp.lt.s32.totalorder %v1463, 15
        %vm2126 = vcmp.lt.s32.totalorder %v1464, 15
        %vm2127 = vcmp.lt.s32.totalorder %v1465, 15
        %vm2128 = vcmp.lt.s32.totalorder %v1466, 15
        %vm2129 = vcmp.lt.s32.totalorder %v1467, 15
        %vm2130 = vcmp.lt.s32.totalorder %v1468, 15
        %vm2131 = vcmp.lt.s32.totalorder %v1469, 15
        %vm2132 = vcmp.lt.s32.totalorder %v1470, 15
        %vm2133 = vcmp.lt.s32.totalorder %v1471, 15
        %vm2134 = vcmp.lt.s32.totalorder %v1472, 15
        %vm2135 = vcmp.lt.s32.totalorder %v1473, 15
        %vm2136 = vcmp.lt.s32.totalorder %v1474, 15
        %vm2137 = vcmp.lt.s32.totalorder %v1475, 15
        %vm2138 = vcmp.lt.s32.totalorder %v1476, 15
        %v2139 = vrot.slane %v1882, 1
        %v2140 = vrot.slane %v1883, 1
        %v2141 = vrot.slane %v1884, 1
        %v2142 = vrot.slane %v1885, 1
        %v2143 = vrot.slane %v1886, 1
        %v2144 = vrot.slane %v1887, 1
        %v2145 = vrot.slane %v1888, 1
        %v2146 = vrot.slane %v1889, 1
        %v2147 = vrot.slane %v1890, 1
        %v2148 = vrot.slane %v1891, 1
        %v2149 = vrot.slane %v1892, 1
        %v2150 = vrot.slane %v1893, 1
        %v2151 = vrot.slane %v1894, 1
        %v2152 = vrot.slane %v1895, 1
        %v2153 = vrot.slane %v1896, 1
        %v2154 = vrot.slane %v1897, 1
        %v2155 = vrot.slane %v1898, 1
        %v2156 = vrot.slane %v1899, 1
        %v2157 = vrot.slane %v1900, 1
        %v2158 = vrot.slane %v1901, 1
        %v2159 = vrot.slane %v1902, 1
        %v2160 = vrot.slane %v1903, 1
        %v2161 = vrot.slane %v1904, 1
        %v2162 = vrot.slane %v1905, 1
        %v2163 = vrot.slane %v1906, 1
        %v2164 = vrot.slane %v1907, 1
        %v2165 = vrot.slane %v1908, 1
        %v2166 = vrot.slane %v1909, 1
        %v2167 = vrot.slane %v1910, 1
        %v2168 = vrot.slane %v1911, 1
        %v2169 = vrot.slane %v1912, 1
        %v2170 = vrot.slane %v1913, 1
        %vm2171 = vcmp.lt.s32.totalorder %v1061, 7
        %v2172 = vsel %vm2171, %v2169, %v2170
        %v2173 = vsel %vm2171, %v2168, %v2169
        %v2174 = vsel %vm2171, %v2167, %v2168
        %v2175 = vsel %vm2171, %v2166, %v2167
        %v2176 = vsel %vm2171, %v2165, %v2166
        %v2177 = vsel %vm2171, %v2164, %v2165
        %v2178 = vsel %vm2171, %v2163, %v2164
        %v2179 = vsel %vm2171, %v2162, %v2163
        %v2180 = vsel %vm2171, %v2161, %v2162
        %v2181 = vsel %vm2171, %v2160, %v2161
        %v2182 = vsel %vm2171, %v2159, %v2160
        %v2183 = vsel %vm2171, %v2158, %v2159
        %v2184 = vsel %vm2171, %v2157, %v2158
        %v2185 = vsel %vm2171, %v2156, %v2157
        %v2186 = vsel %vm2171, %v2155, %v2156
        %v2187 = vsel %vm2171, %v2154, %v2155
        %v2188 = vsel %vm2171, %v2153, %v2154
        %v2189 = vsel %vm2171, %v2152, %v2153
        %v2190 = vsel %vm2171, %v2151, %v2152
        %v2191 = vsel %vm2171, %v2150, %v2151
        %v2192 = vsel %vm2171, %v2149, %v2150
        %v2193 = vsel %vm2171, %v2148, %v2149
        %v2194 = vsel %vm2171, %v2147, %v2148
        %v2195 = vsel %vm2171, %v2146, %v2147
        %v2196 = vsel %vm2171, %v2145, %v2146
        %v2197 = vsel %vm2171, %v2144, %v2145
        %v2198 = vsel %vm2171, %v2143, %v2144
        %v2199 = vsel %vm2171, %v2142, %v2143
        %v2200 = vsel %vm2171, %v2141, %v2142
        %v2201 = vsel %vm2171, %v2140, %v2141
        %v2202 = vsel %vm2171, %v2139, %v2140
        %v2203 = vsel %vm2171, %v2170, %v2139
        %v2204 = vsel %vm2107, 1, 0
        %v2205 = vsel %vm2108, 1, 0
        %v2206 = vsel %vm2109, 1, 0
        %v2207 = vsel %vm2110, 1, 0
        %v2208 = vsel %vm2111, 1, 0
        %v2209 = vsel %vm2112, 1, 0
        %v2210 = vsel %vm2113, 1, 0
        %v2211 = vsel %vm2114, 1, 0
        %v2212 = vsel %vm2115, 1, 0
        %v2213 = vsel %vm2116, 1, 0
        %v2214 = vsel %vm2117, 1, 0
        %v2215 = vsel %vm2118, 1, 0
        %v2216 = vsel %vm2119, 1, 0
        %v2217 = vsel %vm2120, 1, 0
        %v2218 = vsel %vm2121, 1, 0
        %v2219 = vsel %vm2122, 1, 0
        %v2220 = vsel %vm2123, 1, 0
        %v2221 = vsel %vm2124, 1, 0
        %v2222 = vsel %vm2125, 1, 0
        %v2223 = vsel %vm2126, 1, 0
        %v2224 = vsel %vm2127, 1, 0
        %v2225 = vsel %vm2128, 1, 0
        %v2226 = vsel %vm2129, 1, 0
        %v2227 = vsel %vm2130, 1, 0
        %v2228 = vsel %vm2131, 1, 0
        %v2229 = vsel %vm2132, 1, 0
        %v2230 = vsel %vm2133, 1, 0
        %v2231 = vsel %vm2134, 1, 0
        %v2232 = vsel %vm2135, 1, 0
        %v2233 = vsel %vm2136, 1, 0
        %v2234 = vsel %vm2137, 1, 0
        %v2235 = vsel %vm2138, 1, 0
        %vm2236 = vcmp.eq.s32.totalorder %v2204, 1
        %vm2237 = vcmp.eq.s32.totalorder %v2205, 1
        %vm2238 = vcmp.eq.s32.totalorder %v2206, 1
        %vm2239 = vcmp.eq.s32.totalorder %v2207, 1
        %vm2240 = vcmp.eq.s32.totalorder %v2208, 1
        %vm2241 = vcmp.eq.s32.totalorder %v2209, 1
        %vm2242 = vcmp.eq.s32.totalorder %v2210, 1
        %vm2243 = vcmp.eq.s32.totalorder %v2211, 1
        %vm2244 = vcmp.eq.s32.totalorder %v2212, 1
        %vm2245 = vcmp.eq.s32.totalorder %v2213, 1
        %vm2246 = vcmp.eq.s32.totalorder %v2214, 1
        %vm2247 = vcmp.eq.s32.totalorder %v2215, 1
        %vm2248 = vcmp.eq.s32.totalorder %v2216, 1
        %vm2249 = vcmp.eq.s32.totalorder %v2217, 1
        %vm2250 = vcmp.eq.s32.totalorder %v2218, 1
        %vm2251 = vcmp.eq.s32.totalorder %v2219, 1
        %vm2252 = vcmp.eq.s32.totalorder %v2220, 1
        %vm2253 = vcmp.eq.s32.totalorder %v2221, 1
        %vm2254 = vcmp.eq.s32.totalorder %v2222, 1
        %vm2255 = vcmp.eq.s32.totalorder %v2223, 1
        %vm2256 = vcmp.eq.s32.totalorder %v2224, 1
        %vm2257 = vcmp.eq.s32.totalorder %v2225, 1
        %vm2258 = vcmp.eq.s32.totalorder %v2226, 1
        %vm2259 = vcmp.eq.s32.totalorder %v2227, 1
        %vm2260 = vcmp.eq.s32.totalorder %v2228, 1
        %vm2261 = vcmp.eq.s32.totalorder %v2229, 1
        %vm2262 = vcmp.eq.s32.totalorder %v2230, 1
        %vm2263 = vcmp.eq.s32.totalorder %v2231, 1
        %vm2264 = vcmp.eq.s32.totalorder %v2232, 1
        %vm2265 = vcmp.eq.s32.totalorder %v2233, 1
        %vm2266 = vcmp.eq.s32.totalorder %v2234, 1
        %vm2267 = vcmp.eq.s32.totalorder %v2235, 1
        %v2268 = vsel %vm2236, %v2202, 0.0
        %v2269 = vsel %vm2237, %v2201, 0.0
        %v2270 = vsel %vm2238, %v2200, 0.0
        %v2271 = vsel %vm2239, %v2199, 0.0
        %v2272 = vsel %vm2240, %v2198, 0.0
        %v2273 = vsel %vm2241, %v2197, 0.0
        %v2274 = vsel %vm2242, %v2196, 0.0
        %v2275 = vsel %vm2243, %v2195, 0.0
        %v2276 = vsel %vm2244, %v2194, 0.0
        %v2277 = vsel %vm2245, %v2193, 0.0
        %v2278 = vsel %vm2246, %v2192, 0.0
        %v2279 = vsel %vm2247, %v2191, 0.0
        %v2280 = vsel %vm2248, %v2190, 0.0
        %v2281 = vsel %vm2249, %v2189, 0.0
        %v2282 = vsel %vm2250, %v2188, 0.0
        %v2283 = vsel %vm2251, %v2187, 0.0
        %v2284 = vsel %vm2252, %v2186, 0.0
        %v2285 = vsel %vm2253, %v2185, 0.0
        %v2286 = vsel %vm2254, %v2184, 0.0
        %v2287 = vsel %vm2255, %v2183, 0.0
        %v2288 = vsel %vm2256, %v2182, 0.0
        %v2289 = vsel %vm2257, %v2181, 0.0
        %v2290 = vsel %vm2258, %v2180, 0.0
        %v2291 = vsel %vm2259, %v2179, 0.0
        %v2292 = vsel %vm2260, %v2178, 0.0
        %v2293 = vsel %vm2261, %v2177, 0.0
        %v2294 = vsel %vm2262, %v2176, 0.0
        %v2295 = vsel %vm2263, %v2175, 0.0
        %v2296 = vsel %vm2264, %v2174, 0.0
        %v2297 = vsel %vm2265, %v2173, 0.0
        %v2298 = vsel %vm2266, %v2172, 0.0
        %v2299 = vsel %vm2267, %v2203, 0.0
        %v2300 = vld [vmem:[%s10] sm:$0x1]
        %v2302 = vlaneseq
        %v2303 = vshrl.u32 %v2302, 7
        %v2304 = vsub.s32 0, %v2303
        %v2305 = vrot.slane %v2300, %v2304
        %v2307 = vmul.f32 %v2305, %v2075
        %v2308 = vmul.f32 %v2305, %v2076
        %v2309 = vmul.f32 %v2305, %v2077
        %v2310 = vmul.f32 %v2305, %v2078
        %v2311 = vmul.f32 %v2305, %v2079
        %v2312 = vmul.f32 %v2305, %v2080
        %v2313 = vmul.f32 %v2305, %v2081
        %v2314 = vmul.f32 %v2305, %v2082
        %v2315 = vmul.f32 %v2305, %v2083
        %v2316 = vmul.f32 %v2305, %v2084
        %v2317 = vmul.f32 %v2305, %v2085
        %v2318 = vmul.f32 %v2305, %v2086
        %v2319 = vmul.f32 %v2305, %v2087
        %v2320 = vmul.f32 %v2305, %v2088
        %v2321 = vmul.f32 %v2305, %v2089
        %v2322 = vmul.f32 %v2305, %v2090
        %v2323 = vmul.f32 %v2305, %v2091
        %v2324 = vmul.f32 %v2305, %v2092
        %v2325 = vmul.f32 %v2305, %v2093
        %v2326 = vmul.f32 %v2305, %v2094
        %v2327 = vmul.f32 %v2305, %v2095
        %v2328 = vmul.f32 %v2305, %v2096
        %v2329 = vmul.f32 %v2305, %v2097
        %v2330 = vmul.f32 %v2305, %v2098
        %v2331 = vmul.f32 %v2305, %v2099
        %v2332 = vmul.f32 %v2305, %v2100
        %v2333 = vmul.f32 %v2305, %v2101
        %v2334 = vmul.f32 %v2305, %v2102
        %v2335 = vmul.f32 %v2305, %v2103
        %v2336 = vmul.f32 %v2305, %v2104
        %v2337 = vmul.f32 %v2305, %v2105
        %v2338 = vmul.f32 %v2305, %v2106
        %v2339 = vld [vmem:[%s11] sm:$0x1]
        %v2341 = vlaneseq
        %v2342 = vshrl.u32 %v2341, 7
        %v2343 = vsub.s32 0, %v2342
        %v2344 = vrot.slane %v2339, %v2343
        %v2346 = vmul.f32 %v2344, %v1882
        %v2347 = vmul.f32 %v2344, %v1883
        %v2348 = vmul.f32 %v2344, %v1884
        %v2349 = vmul.f32 %v2344, %v1885
        %v2350 = vmul.f32 %v2344, %v1886
        %v2351 = vmul.f32 %v2344, %v1887
        %v2352 = vmul.f32 %v2344, %v1888
        %v2353 = vmul.f32 %v2344, %v1889
        %v2354 = vmul.f32 %v2344, %v1890
        %v2355 = vmul.f32 %v2344, %v1891
        %v2356 = vmul.f32 %v2344, %v1892
        %v2357 = vmul.f32 %v2344, %v1893
        %v2358 = vmul.f32 %v2344, %v1894
        %v2359 = vmul.f32 %v2344, %v1895
        %v2360 = vmul.f32 %v2344, %v1896
        %v2361 = vmul.f32 %v2344, %v1897
        %v2362 = vmul.f32 %v2344, %v1898
        %v2363 = vmul.f32 %v2344, %v1899
        %v2364 = vmul.f32 %v2344, %v1900
        %v2365 = vmul.f32 %v2344, %v1901
        %v2366 = vmul.f32 %v2344, %v1902
        %v2367 = vmul.f32 %v2344, %v1903
        %v2368 = vmul.f32 %v2344, %v1904
        %v2369 = vmul.f32 %v2344, %v1905
        %v2370 = vmul.f32 %v2344, %v1906
        %v2371 = vmul.f32 %v2344, %v1907
        %v2372 = vmul.f32 %v2344, %v1908
        %v2373 = vmul.f32 %v2344, %v1909
        %v2374 = vmul.f32 %v2344, %v1910
        %v2375 = vmul.f32 %v2344, %v1911
        %v2376 = vmul.f32 %v2344, %v1912
        %v2377 = vmul.f32 %v2344, %v1913
        %v2378 = vadd.f32 %v2307, %v2346
        %v2379 = vadd.f32 %v2308, %v2347
        %v2380 = vadd.f32 %v2309, %v2348
        %v2381 = vadd.f32 %v2310, %v2349
        %v2382 = vadd.f32 %v2311, %v2350
        %v2383 = vadd.f32 %v2312, %v2351
        %v2384 = vadd.f32 %v2313, %v2352
        %v2385 = vadd.f32 %v2314, %v2353
        %v2386 = vadd.f32 %v2315, %v2354
        %v2387 = vadd.f32 %v2316, %v2355
        %v2388 = vadd.f32 %v2317, %v2356
        %v2389 = vadd.f32 %v2318, %v2357
        %v2390 = vadd.f32 %v2319, %v2358
        %v2391 = vadd.f32 %v2320, %v2359
        %v2392 = vadd.f32 %v2321, %v2360
        %v2393 = vadd.f32 %v2322, %v2361
        %v2394 = vadd.f32 %v2323, %v2362
        %v2395 = vadd.f32 %v2324, %v2363
        %v2396 = vadd.f32 %v2325, %v2364
        %v2397 = vadd.f32 %v2326, %v2365
        %v2398 = vadd.f32 %v2327, %v2366
        %v2399 = vadd.f32 %v2328, %v2367
        %v2400 = vadd.f32 %v2329, %v2368
        %v2401 = vadd.f32 %v2330, %v2369
        %v2402 = vadd.f32 %v2331, %v2370
        %v2403 = vadd.f32 %v2332, %v2371
        %v2404 = vadd.f32 %v2333, %v2372
        %v2405 = vadd.f32 %v2334, %v2373
        %v2406 = vadd.f32 %v2335, %v2374
        %v2407 = vadd.f32 %v2336, %v2375
        %v2408 = vadd.f32 %v2337, %v2376
        %v2409 = vadd.f32 %v2338, %v2377
        %v2410 = vld [vmem:[%s12] sm:$0x1]
        %v2412 = vlaneseq
        %v2413 = vshrl.u32 %v2412, 7
        %v2414 = vsub.s32 0, %v2413
        %v2415 = vrot.slane %v2410, %v2414
        %v2417 = vmul.f32 %v2415, %v2268
        %v2418 = vmul.f32 %v2415, %v2269
        %v2419 = vmul.f32 %v2415, %v2270
        %v2420 = vmul.f32 %v2415, %v2271
        %v2421 = vmul.f32 %v2415, %v2272
        %v2422 = vmul.f32 %v2415, %v2273
        %v2423 = vmul.f32 %v2415, %v2274
        %v2424 = vmul.f32 %v2415, %v2275
        %v2425 = vmul.f32 %v2415, %v2276
        %v2426 = vmul.f32 %v2415, %v2277
        %v2427 = vmul.f32 %v2415, %v2278
        %v2428 = vmul.f32 %v2415, %v2279
        %v2429 = vmul.f32 %v2415, %v2280
        %v2430 = vmul.f32 %v2415, %v2281
        %v2431 = vmul.f32 %v2415, %v2282
        %v2432 = vmul.f32 %v2415, %v2283
        %v2433 = vmul.f32 %v2415, %v2284
        %v2434 = vmul.f32 %v2415, %v2285
        %v2435 = vmul.f32 %v2415, %v2286
        %v2436 = vmul.f32 %v2415, %v2287
        %v2437 = vmul.f32 %v2415, %v2288
        %v2438 = vmul.f32 %v2415, %v2289
        %v2439 = vmul.f32 %v2415, %v2290
        %v2440 = vmul.f32 %v2415, %v2291
        %v2441 = vmul.f32 %v2415, %v2292
        %v2442 = vmul.f32 %v2415, %v2293
        %v2443 = vmul.f32 %v2415, %v2294
        %v2444 = vmul.f32 %v2415, %v2295
        %v2445 = vmul.f32 %v2415, %v2296
        %v2446 = vmul.f32 %v2415, %v2297
        %v2447 = vmul.f32 %v2415, %v2298
        %v2448 = vmul.f32 %v2415, %v2299
        %v2449 = vadd.f32 %v2378, %v2417
        %v2450 = vadd.f32 %v2379, %v2418
        %v2451 = vadd.f32 %v2380, %v2419
        %v2452 = vadd.f32 %v2381, %v2420
        %v2453 = vadd.f32 %v2382, %v2421
        %v2454 = vadd.f32 %v2383, %v2422
        %v2455 = vadd.f32 %v2384, %v2423
        %v2456 = vadd.f32 %v2385, %v2424
        %v2457 = vadd.f32 %v2386, %v2425
        %v2458 = vadd.f32 %v2387, %v2426
        %v2459 = vadd.f32 %v2388, %v2427
        %v2460 = vadd.f32 %v2389, %v2428
        %v2461 = vadd.f32 %v2390, %v2429
        %v2462 = vadd.f32 %v2391, %v2430
        %v2463 = vadd.f32 %v2392, %v2431
        %v2464 = vadd.f32 %v2393, %v2432
        %v2465 = vadd.f32 %v2394, %v2433
        %v2466 = vadd.f32 %v2395, %v2434
        %v2467 = vadd.f32 %v2396, %v2435
        %v2468 = vadd.f32 %v2397, %v2436
        %v2469 = vadd.f32 %v2398, %v2437
        %v2470 = vadd.f32 %v2399, %v2438
        %v2471 = vadd.f32 %v2400, %v2439
        %v2472 = vadd.f32 %v2401, %v2440
        %v2473 = vadd.f32 %v2402, %v2441
        %v2474 = vadd.f32 %v2403, %v2442
        %v2475 = vadd.f32 %v2404, %v2443
        %v2476 = vadd.f32 %v2405, %v2444
        %v2477 = vadd.f32 %v2406, %v2445
        %v2478 = vadd.f32 %v2407, %v2446
        %v2479 = vadd.f32 %v2408, %v2447
        %v2480 = vadd.f32 %v2409, %v2448
        %v2481 = vpack.c.bf16 %v2450, %v2449
        %v2482 = vpack.c.bf16 %v2452, %v2451
        %v2483 = vpack.c.bf16 %v2454, %v2453
        %v2484 = vpack.c.bf16 %v2456, %v2455
        %v2485 = vpack.c.bf16 %v2458, %v2457
        %v2486 = vpack.c.bf16 %v2460, %v2459
        %v2487 = vpack.c.bf16 %v2462, %v2461
        %v2488 = vpack.c.bf16 %v2464, %v2463
        %v2489 = vpack.c.bf16 %v2466, %v2465
        %v2490 = vpack.c.bf16 %v2468, %v2467
        %v2491 = vpack.c.bf16 %v2470, %v2469
        %v2492 = vpack.c.bf16 %v2472, %v2471
        %v2493 = vpack.c.bf16 %v2474, %v2473
        %v2494 = vpack.c.bf16 %v2476, %v2475
        %v2495 = vpack.c.bf16 %v2478, %v2477
        %v2496 = vpack.c.bf16 %v2480, %v2479
        %v2497 = vld [vmem:[%s13] sm:$0xf]
        %v2498 = vld [vmem:[%s13 + $0x4] sm:$0xf]
        %v2499 = vld [vmem:[%s13 + $0x8] sm:$0xf]
        %v2500 = vld [vmem:[%s523] sm:$0xff]
        %v2501 = vld [vmem:[%s523 + $0x8] sm:$0xff]
        %v2502 = vld [vmem:[%s523 + $0x10] sm:$0xff]
        %v2503 = vld [vmem:[%s523 + $0x18] sm:$0xff]
        %v2504 = vld [vmem:[%s523 + $0x20] sm:$0xff]
        %v2505 = vld [vmem:[%s523 + $0x28] sm:$0xff]
        %v2506 = vld [vmem:[%s523 + $0x30] sm:$0xff]
        %v2507 = vld [vmem:[%s523 + $0x38] sm:$0xff]
        %v2508 = vld [vmem:[%s523 + $0x40] sm:$0xff]
        %v2509 = vld [vmem:[%s523 + $0x48] sm:$0xff]
        %v2510 = vld [vmem:[%s523 + $0x50] sm:$0xff]
        %v2511 = vld [vmem:[%s523 + $0x58] sm:$0xff]
        %v2512 = vld [vmem:[%s523 + $0x60] sm:$0xff]
        %v2513 = vld [vmem:[%s523 + $0x68] sm:$0xff]
        %v2514 = vld [vmem:[%s523 + $0x70] sm:$0xff]
        %v2515 = vld [vmem:[%s523 + $0x78] sm:$0xff]
        %v2516 = vld [vmem:[%s523 + $0x80] sm:$0xff]
        %v2517 = vld [vmem:[%s523 + $0x88] sm:$0xff]
        %v2518 = vld [vmem:[%s523 + $0x90] sm:$0xff]
        %v2519 = vld [vmem:[%s523 + $0x98] sm:$0xff]
        %v2520 = vld [vmem:[%s523 + $0xa0] sm:$0xff]
        %v2521 = vld [vmem:[%s523 + $0xa8] sm:$0xff]
        %v2522 = vld [vmem:[%s523 + $0xb0] sm:$0xff]
        %v2523 = vld [vmem:[%s523 + $0xb8] sm:$0xff]
        %v2524 = vld [vmem:[%s523 + $0xc0] sm:$0xff]
        %v2525 = vld [vmem:[%s523 + $0xc8] sm:$0xff]
        %v2526 = vld [vmem:[%s523 + $0xd0] sm:$0xff]
        %v2527 = vld [vmem:[%s523 + $0xd8] sm:$0xff]
        %v2528 = vld [vmem:[%s523 + $0xe0] sm:$0xff]
        %v2529 = vld [vmem:[%s523 + $0xe8] sm:$0xff]
        %v2530 = vld [vmem:[%s523 + $0xf0] sm:$0xff]
        %v2531 = vld [vmem:[%s523 + $0xf8] sm:$0xff]
        %v2535 = vunpack.c.l.b16 %v2497
        %v2536 = vunpack.c.l.b16 %v2498
        %v2537 = vunpack.c.l.b16 %v2499
        %v2538 = vpack.c.b16 %v2536, %v2535
        %v2539 = vpack.c.b16 %v2537, %v2537
        %v2542 = vsel %vm917, %v2481, 0
        %v2545 = vsel %vm917, %v2482, 0
        %v2548 = vsel %vm917, %v2483, 0
        %v2551 = vsel %vm917, %v2484, 0
        %v2554 = vsel %vm917, %v2485, 0
        %v2557 = vsel %vm917, %v2486, 0
        %v2560 = vsel %vm917, %v2487, 0
        %v2563 = vsel %vm917, %v2488, 0
        %v2566 = vsel %vm917, %v2489, 0
        %v2569 = vsel %vm917, %v2490, 0
        %v2572 = vsel %vm917, %v2491, 0
        %v2575 = vsel %vm917, %v2492, 0
        %v2578 = vsel %vm917, %v2493, 0
        %v2581 = vsel %vm917, %v2494, 0
        %v2584 = vsel %vm917, %v2495, 0
        %v2587 = vsel %vm917, %v2496, 0
        %vm2589 = vcmask 1043456
        %v2591 = vsel %vm2589, %v2539, 0
        %2593 = vmatprep.subr.bf16.mxu0 0
        %2594 = vmatpush1.bf16.msra.mxu0 %v2538
        %2595 = vmatprep.subr.bf16.mxu0 0
        %2596 = vmatpush1.bf16.msra.mxu0 %v2591
        %2597 = vmatprep.subr.bf16.mxu0 0
        %2598 = vmatpush1.bf16.msra.mxu0 0
        %2599 = vmatprep.subr.bf16.mxu0 0
        %2600 = vmatpush1.bf16.msra.mxu0 0
        %2601 = vmatprep.subr.bf16.mxu0 0
        %2602 = vmatpush1.bf16.msra.mxu0 0
        %2603 = vmatprep.subr.bf16.mxu0 0
        %2604 = vmatpush1.bf16.msra.mxu0 0
        %2605 = vmatprep.subr.bf16.mxu0 0
        %2606 = vmatpush1.bf16.msra.mxu0 0
        %2607 = vmatprep.subr.bf16.mxu0 0
        %2608 = vmatpush1.bf16.msra.mxu0 0
        %2609 = vmatprep.subr.bf16.mxu0 0
        %2610 = vmatpush1.bf16.msra.mxu0 0
        %2611 = vmatprep.subr.bf16.mxu0 0
        %2612 = vmatpush1.bf16.msra.mxu0 0
        %2613 = vmatprep.subr.bf16.mxu0 0
        %2614 = vmatpush1.bf16.msra.mxu0 0
        %2615 = vmatprep.subr.bf16.mxu0 0
        %2616 = vmatpush1.bf16.msra.mxu0 0
        %2617 = vmatprep.subr.bf16.mxu0 0
        %2618 = vmatpush1.bf16.msra.mxu0 0
        %2619 = vmatprep.subr.bf16.mxu0 0
        %2620 = vmatpush1.bf16.msra.mxu0 0
        %2621 = vmatprep.subr.bf16.mxu0 0
        %2622 = vmatpush1.bf16.msra.mxu0 0
        %2623 = vmatprep.subr.bf16.mxu0 0
        %2624 = vmatpush1.bf16.msra.mxu0 0
        %2625 = vmatprep.mubr.bf16.mxu0 0
        %2626 = vmatmul.mubr.bf16.gmra.mrb[0].mxu0 %v2542
        %v2627 = vpop.f32.mrb[0].mxu0
        %v2628 = vadd.f32 %v2500, %v2627
        %v2629 = vpop.f32.mrb[0].mxu0
        %v2630 = vpop.f32.mrb[0].mxu0
        %v2631 = vadd.f32 %v2501, %v2630
        %v2632 = vpop.f32.mrb[0].mxu0
        %2633 = vmatprep.mubr.bf16.mxu0 0
        %2634 = vmatmul.mubr.bf16.gmra.mrb[0].mxu0 %v2545
        %v2635 = vpop.f32.mrb[0].mxu0
        %v2636 = vadd.f32 %v2502, %v2635
        %v2637 = vpop.f32.mrb[0].mxu0
        %v2638 = vpop.f32.mrb[0].mxu0
        %v2639 = vadd.f32 %v2503, %v2638
        %v2640 = vpop.f32.mrb[0].mxu0
        %2641 = vmatprep.mubr.bf16.mxu0 0
        %2642 = vmatmul.mubr.bf16.gmra.mrb[0].mxu0 %v2548
        %v2643 = vpop.f32.mrb[0].mxu0
        %v2644 = vadd.f32 %v2504, %v2643
        %v2645 = vpop.f32.mrb[0].mxu0
        %v2646 = vpop.f32.mrb[0].mxu0
        %v2647 = vadd.f32 %v2505, %v2646
        %v2648 = vpop.f32.mrb[0].mxu0
        %2649 = vmatprep.mubr.bf16.mxu0 0
        %2650 = vmatmul.mubr.bf16.gmra.mrb[0].mxu0 %v2551
        %v2651 = vpop.f32.mrb[0].mxu0
        %v2652 = vadd.f32 %v2506, %v2651
        %v2653 = vpop.f32.mrb[0].mxu0
        %v2654 = vpop.f32.mrb[0].mxu0
        %v2655 = vadd.f32 %v2507, %v2654
        %v2656 = vpop.f32.mrb[0].mxu0
        %2657 = vmatprep.mubr.bf16.mxu0 0
        %2658 = vmatmul.mubr.bf16.gmra.mrb[0].mxu0 %v2554
        %v2659 = vpop.f32.mrb[0].mxu0
        %v2660 = vadd.f32 %v2508, %v2659
        %v2661 = vpop.f32.mrb[0].mxu0
        %v2662 = vpop.f32.mrb[0].mxu0
        %v2663 = vadd.f32 %v2509, %v2662
        %v2664 = vpop.f32.mrb[0].mxu0
        %2665 = vmatprep.mubr.bf16.mxu0 0
        %2666 = vmatmul.mubr.bf16.gmra.mrb[0].mxu0 %v2557
        %v2667 = vpop.f32.mrb[0].mxu0
        %v2668 = vadd.f32 %v2510, %v2667
        %v2669 = vpop.f32.mrb[0].mxu0
        %v2670 = vpop.f32.mrb[0].mxu0
        %v2671 = vadd.f32 %v2511, %v2670
        %v2672 = vpop.f32.mrb[0].mxu0
        %2673 = vmatprep.mubr.bf16.mxu0 0
        %2674 = vmatmul.mubr.bf16.gmra.mrb[0].mxu0 %v2560
        %v2675 = vpop.f32.mrb[0].mxu0
        %v2676 = vadd.f32 %v2512, %v2675
        %v2677 = vpop.f32.mrb[0].mxu0
        %v2678 = vpop.f32.mrb[0].mxu0
        %v2679 = vadd.f32 %v2513, %v2678
        %v2680 = vpop.f32.mrb[0].mxu0
        %2681 = vmatprep.mubr.bf16.mxu0 0
        %2682 = vmatmul.mubr.bf16.gmra.mrb[0].mxu0 %v2563
        %v2683 = vpop.f32.mrb[0].mxu0
        %v2684 = vadd.f32 %v2514, %v2683
        %v2685 = vpop.f32.mrb[0].mxu0
        %v2686 = vpop.f32.mrb[0].mxu0
        %v2687 = vadd.f32 %v2515, %v2686
        %v2688 = vpop.f32.mrb[0].mxu0
        %2689 = vmatprep.mubr.bf16.mxu0 0
        %2690 = vmatmul.mubr.bf16.gmra.mrb[0].mxu0 %v2566
        %v2691 = vpop.f32.mrb[0].mxu0
        %v2692 = vadd.f32 %v2516, %v2691
        %v2693 = vpop.f32.mrb[0].mxu0
        %v2694 = vpop.f32.mrb[0].mxu0
        %v2695 = vadd.f32 %v2517, %v2694
        %v2696 = vpop.f32.mrb[0].mxu0
        %2697 = vmatprep.mubr.bf16.mxu0 0
        %2698 = vmatmul.mubr.bf16.gmra.mrb[0].mxu0 %v2569
        %v2699 = vpop.f32.mrb[0].mxu0
        %v2700 = vadd.f32 %v2518, %v2699
        %v2701 = vpop.f32.mrb[0].mxu0
        %v2702 = vpop.f32.mrb[0].mxu0
        %v2703 = vadd.f32 %v2519, %v2702
        %v2704 = vpop.f32.mrb[0].mxu0
        %2705 = vmatprep.mubr.bf16.mxu0 0
        %2706 = vmatmul.mubr.bf16.gmra.mrb[0].mxu0 %v2572
        %v2707 = vpop.f32.mrb[0].mxu0
        %v2708 = vadd.f32 %v2520, %v2707
        %v2709 = vpop.f32.mrb[0].mxu0
        %v2710 = vpop.f32.mrb[0].mxu0
        %v2711 = vadd.f32 %v2521, %v2710
        %v2712 = vpop.f32.mrb[0].mxu0
        %2713 = vmatprep.mubr.bf16.mxu0 0
        %2714 = vmatmul.mubr.bf16.gmra.mrb[0].mxu0 %v2575
        %v2715 = vpop.f32.mrb[0].mxu0
        %v2716 = vadd.f32 %v2522, %v2715
        %v2717 = vpop.f32.mrb[0].mxu0
        %v2718 = vpop.f32.mrb[0].mxu0
        %v2719 = vadd.f32 %v2523, %v2718
        %v2720 = vpop.f32.mrb[0].mxu0
        %2721 = vmatprep.mubr.bf16.mxu0 0
        %2722 = vmatmul.mubr.bf16.gmra.mrb[0].mxu0 %v2578
        %v2723 = vpop.f32.mrb[0].mxu0
        %v2724 = vadd.f32 %v2524, %v2723
        %v2725 = vpop.f32.mrb[0].mxu0
        %v2726 = vpop.f32.mrb[0].mxu0
        %v2727 = vadd.f32 %v2525, %v2726
        %v2728 = vpop.f32.mrb[0].mxu0
        %2729 = vmatprep.mubr.bf16.mxu0 0
        %2730 = vmatmul.mubr.bf16.gmra.mrb[0].mxu0 %v2581
        %v2731 = vpop.f32.mrb[0].mxu0
        %v2732 = vadd.f32 %v2526, %v2731
        %v2733 = vpop.f32.mrb[0].mxu0
        %v2734 = vpop.f32.mrb[0].mxu0
        %v2735 = vadd.f32 %v2527, %v2734
        %v2736 = vpop.f32.mrb[0].mxu0
        %2737 = vmatprep.mubr.bf16.mxu0 0
        %2738 = vmatmul.mubr.bf16.gmra.mrb[0].mxu0 %v2584
        %v2739 = vpop.f32.mrb[0].mxu0
        %v2740 = vadd.f32 %v2528, %v2739
        %v2741 = vpop.f32.mrb[0].mxu0
        %v2742 = vpop.f32.mrb[0].mxu0
        %v2743 = vadd.f32 %v2529, %v2742
        %v2744 = vpop.f32.mrb[0].mxu0
        %2745 = vmatprep.mubr.bf16.mxu0 0
        %2746 = vmatmul.mubr.bf16.gmra.mrb[0].mxu0 %v2587
        %v2747 = vpop.f32.mrb[0].mxu0
        %v2748 = vadd.f32 %v2530, %v2747
        %v2749 = vpop.f32.mrb[0].mxu0
        %v2750 = vpop.f32.mrb[0].mxu0
        %v2751 = vadd.f32 %v2531, %v2750
        %v2752 = vpop.f32.mrb[0].mxu0
        %2753 = vdwg.mxu0
        %2754 = vst.msk [vmem:[%s506] sm:$0xff] %vm917, %v2628
        %2755 = vst.msk [vmem:[%s506 + $0x8] sm:$0xff] %vm917, %v2631
        %2756 = vst.msk [vmem:[%s506 + $0x10] sm:$0xff] %vm917, %v2636
        %2757 = vst.msk [vmem:[%s506 + $0x18] sm:$0xff] %vm917, %v2639
        %2758 = vst.msk [vmem:[%s506 + $0x20] sm:$0xff] %vm917, %v2644
        %2759 = vst.msk [vmem:[%s506 + $0x28] sm:$0xff] %vm917, %v2647
        %2760 = vst.msk [vmem:[%s506 + $0x30] sm:$0xff] %vm917, %v2652
        %2761 = vst.msk [vmem:[%s506 + $0x38] sm:$0xff] %vm917, %v2655
        %2762 = vst.msk [vmem:[%s506 + $0x40] sm:$0xff] %vm917, %v2660
        %2763 = vst.msk [vmem:[%s506 + $0x48] sm:$0xff] %vm917, %v2663
        %2764 = vst.msk [vmem:[%s506 + $0x50] sm:$0xff] %vm917, %v2668
        %2765 = vst.msk [vmem:[%s506 + $0x58] sm:$0xff] %vm917, %v2671
        %2766 = vst.msk [vmem:[%s506 + $0x60] sm:$0xff] %vm917, %v2676
        %2767 = vst.msk [vmem:[%s506 + $0x68] sm:$0xff] %vm917, %v2679
        %2768 = vst.msk [vmem:[%s506 + $0x70] sm:$0xff] %vm917, %v2684
        %2769 = vst.msk [vmem:[%s506 + $0x78] sm:$0xff] %vm917, %v2687
        %2770 = vst.msk [vmem:[%s506 + $0x80] sm:$0xff] %vm917, %v2692
        %2771 = vst.msk [vmem:[%s506 + $0x88] sm:$0xff] %vm917, %v2695
        %2772 = vst.msk [vmem:[%s506 + $0x90] sm:$0xff] %vm917, %v2700
        %2773 = vst.msk [vmem:[%s506 + $0x98] sm:$0xff] %vm917, %v2703
        %2774 = vst.msk [vmem:[%s506 + $0xa0] sm:$0xff] %vm917, %v2708
        %2775 = vst.msk [vmem:[%s506 + $0xa8] sm:$0xff] %vm917, %v2711
        %2776 = vst.msk [vmem:[%s506 + $0xb0] sm:$0xff] %vm917, %v2716
        %2777 = vst.msk [vmem:[%s506 + $0xb8] sm:$0xff] %vm917, %v2719
        %2778 = vst.msk [vmem:[%s506 + $0xc0] sm:$0xff] %vm917, %v2724
        %2779 = vst.msk [vmem:[%s506 + $0xc8] sm:$0xff] %vm917, %v2727
        %2780 = vst.msk [vmem:[%s506 + $0xd0] sm:$0xff] %vm917, %v2732
        %2781 = vst.msk [vmem:[%s506 + $0xd8] sm:$0xff] %vm917, %v2735
        %2782 = vst.msk [vmem:[%s506 + $0xe0] sm:$0xff] %vm917, %v2740
        %2783 = vst.msk [vmem:[%s506 + $0xe8] sm:$0xff] %vm917, %v2743
        %2784 = vst.msk [vmem:[%s506 + $0xf0] sm:$0xff] %vm917, %v2748
        %2785 = vst.msk [vmem:[%s506 + $0xf8] sm:$0xff] %vm917, %v2751
        %s2786 = sand.u32 %s345, 1
        %s2787 = scalar_lea.sflag [#allocation3], %s2786
        %s2788 = sand.u32 %s345, 1
        %s2789 = smul.addr %s2788, 256
        %s2790 = scalar_lea.vmem [#allocation2], %s2789
        %s2791 = sand.u32 %s371, 1
        %s2792 = scalar_lea.sflag [#allocation5], %s2791
        %s2793 = sand.u32 %s371, 1
        %s2794 = smul.addr %s2793, 256
        %s2795 = scalar_lea.vmem [#allocation4], %s2794
        // Predicated region
        $region77: #{basic_block_forward.1} parent=75 // pred_check
          %p2796 = pneg %p355
        $region78: #{basic_block_forward.1} parent=75 // pred_check_branch
          %2798 = sbr.rel (%p2796) target = $region80
        $region79: #{basic_block_forward.1} parent=75 // pred_region
          %s2800 = ssub.s32 4096, 4096
          %2801 = vsyncadd %s2787, %s2800
          %s2802 = smul.addr %s33, 32
          %s2803 = smul.addr %s2802, 128
          %s2804 = scalar_lea.hbm %s14, %s2803
          %s2805 = sshll.u32 %s2790, 4
          %s2806 = int_to_ptr.vmem [resolvable:$true] %s2805
          %2811 = dma.vmem_to_hbm [thread:$0]  %s2806, 4096, %s2804, %s2787, 128, 128, 8
        $region80: #{basic_block_forward.1} parent=75 // pred_fallthru
          _
        // Predicated region
        $region81: #{basic_block_forward.1} parent=75 // pred_check
          %p2812 = pneg %p381
        $region82: #{basic_block_forward.1} parent=75 // pred_check_branch
          %2814 = sbr.rel (%p2812) target = $region84
        $region83: #{basic_block_forward.1} parent=75 // pred_region
          %s2816 = ssub.s32 4096, 4096
          %2817 = vsyncadd %s2792, %s2816
          %s2818 = smul.addr %s33, 32
          %s2819 = smul.addr %s2818, 128
          %s2820 = scalar_lea.hbm %s15, %s2819
          %s2821 = sshll.u32 %s2795, 4
          %s2822 = int_to_ptr.vmem [resolvable:$true] %s2821
          %2827 = dma.vmem_to_hbm [thread:$0]  %s2822, 4096, %s2820, %s2792, 128, 128, 8
        $region84: #{basic_block_forward.1} parent=75 // pred_fallthru
          _
      $region76: #{basic_block_forward.1} parent=5 // pred_fallthru
        _
      %p2828 = scmp.le.s32.totalorder 2, %s28
      // Predicated region
      $region85: #{basic_block_forward.1} parent=5 // pred_check
        %p2829 = pneg %p2828
      $region86: #{basic_block_forward.1} parent=5 // pred_check_branch
        %2831 = sbr.rel (%p2829) target = $region88
      $region87: #{basic_block_forward.1} parent=5 // pred_region
        %s2832 = ssub.s32 %s28, 2
        // Predicated region
        $region89: #{basic_block_forward.1} parent=87 // pred_check
          %p2833 = pneg %p361
        $region90: #{basic_block_forward.1} parent=87 // pred_check_branch
          %2835 = sbr.rel (%p2833) target = $region92
        $region91: #{basic_block_forward.1} parent=87 // pred_region
          %s2836 = sand.u32 %s346, 1
          %s2837 = scalar_lea.sflag [#allocation3], %s2836
          %s2838 = sand.u32 %s346, 1
          %s2839 = smul.addr %s2838, 256
          %s2840 = scalar_lea.vmem [#allocation2], %s2839
          %2841 = dma.done %s2837, 4096
        $region92: #{basic_block_forward.1} parent=87 // pred_fallthru
          _
        // Predicated region
        $region93: #{basic_block_forward.1} parent=87 // pred_check
          %p2842 = pneg %p387
        $region94: #{basic_block_forward.1} parent=87 // pred_check_branch
          %2844 = sbr.rel (%p2842) target = $region96
        $region95: #{basic_block_forward.1} parent=87 // pred_region
          %s2845 = sand.u32 %s372, 1
          %s2846 = scalar_lea.sflag [#allocation5], %s2845
          %s2847 = sand.u32 %s372, 1
          %s2848 = smul.addr %s2847, 256
          %s2849 = scalar_lea.vmem [#allocation4], %s2848
          %2850 = dma.done %s2846, 4096
        $region96: #{basic_block_forward.1} parent=87 // pred_fallthru
          _
      $region88: #{basic_block_forward.1} parent=5 // pred_fallthru
        _
    $region6: #{basic_block_forward.1} parent=1 // loop_footer
      %s32 = sadd.s32 1, %s28
    $region7: #{basic_block_forward.1} parent=1 // loop_footer_branch
      %27 = sbr.rel target = $region3
    $region8: #{basic_block_forward.1} parent=1 // loop_exit
      _
    %2851 = vsyncpa [#allocation3], 1
    %s2852 = scalar_lea.sflag [#allocation3], 1
    %2853 = vsyncpa %s2852, 1
    %2854 = vsyncpa [#allocation5], 1
    %s2855 = scalar_lea.sflag [#allocation5], 1
    %2856 = vsyncpa %s2855, 1

</llo_original>
